<compile_context>
chip_gen: v6e
topology: v6e:2x2x1
jax: 0.10.0
libtpu: 0.0.40
codegen_flags: <defaults>
</compile_context>

<pallas_src>
import functools

import jax
import jax.numpy as jnp
from jax.experimental import pallas as pl
from jax.experimental.pallas import tpu as pltpu


def _relu_conv1x1_kernel(x_ref, w_ref, o_ref, *, compute_dtype):
    # x_ref: (C_in, HW)      full-spatial activation block (lane-dense, 784)
    # w_ref: (T_co, C_in)    one output-channel block of the 1x1 conv weight
    # o_ref: (T_co, HW)      output block (already NCHW-ordered)
    x = jnp.maximum(x_ref[...], jnp.zeros((), x_ref.dtype))  # fused ReLU
    x = x.astype(compute_dtype)
    w = w_ref[...].astype(compute_dtype)
    o_ref[...] = jnp.dot(w, x, preferred_element_type=jnp.float32).astype(
        o_ref.dtype
    )


@functools.partial(jax.jit, static_argnames=("t_co", "use_bf16"))
def relu_conv1x1(x_nchw, w_oi, *, t_co=None, use_bf16=True):
    """ReLU followed by a bias-free 1x1 conv, fused in one Pallas kernel.

    x_nchw: (N, C_in, H, W) float32
    w_oi:   (C_out, C_in)   float32  (conv weight with trailing 1x1 squeezed)
    returns (N, C_out, H, W) float32
    """
    n, c_in, h, w = x_nchw.shape
    c_out = w_oi.shape[0]
    hw = h * w

    # Output-channel tile: 2 blocks (ideal for v7x dual-TC sharding) when
    # C_out splits evenly, otherwise a single block.  672 -> 2 x 336.
    if t_co is None:
        t_co = c_out // 2 if (c_out % 2 == 0 and c_out >= 16) else c_out
    assert c_out % t_co == 0

    # NCHW -> (N, C_in, H*W): contiguous reshape, zero data movement.
    x_mat = x_nchw.reshape(n, c_in, hw)

    grid = (n, c_out // t_co)
    compute_dtype = jnp.bfloat16 if use_bf16 else x_nchw.dtype

    cost = pl.CostEstimate(
        flops=2 * n * hw * c_in * c_out,
        transcendentals=0,
        bytes_accessed=(x_mat.size + w_oi.size + n * c_out * hw)
        * x_nchw.dtype.itemsize,
    )

    out = pl.pallas_call(
        functools.partial(_relu_conv1x1_kernel, compute_dtype=compute_dtype),
        out_shape=jax.ShapeDtypeStruct((n, c_out, hw), x_nchw.dtype),
        grid_spec=pltpu.PrefetchScalarGridSpec(
            num_scalar_prefetch=0,
            grid=grid,
            in_specs=[
                # Full-spatial, full-C_in activation; batch dim squeezed out.
                # Block index constant across the C_out axis -> DMA'd once
                # per batch and kept resident while both weight halves run.
                pl.BlockSpec((None, c_in, hw), lambda b, j: (b, 0, 0)),
                # One output-channel slice of the weight per grid step; the
                # two halves pipeline across steps.
                pl.BlockSpec((t_co, c_in), lambda b, j: (j, 0)),
            ],
            out_specs=pl.BlockSpec((None, t_co, hw), lambda b, j: (b, j, 0)),
        ),
        compiler_params=pltpu.CompilerParams(
            dimension_semantics=("parallel", "parallel")
        ),
        cost_estimate=cost,
    )(x_mat, w_oi)

    # (N, C_out, H*W) -> NCHW: again a free reshape.
    return out.reshape(n, c_out, h, w)


def reference(x_nchw, w_oi):
    """Pure-JAX reference for correctness check."""
    x = jnp.maximum(x_nchw, 0.0)
    return jnp.einsum("nchw,oc->nohw", x, w_oi)


if __name__ == "__main__":
    key = jax.random.PRNGKey(0)
    kx, kw = jax.random.split(key)

    # Module fixes channels at 672 (Conv2d(672, 672, 1)); spatial 28x28 as in spec.
    N, C, H, W = 1, 672, 28, 28
    x = jax.random.normal(kx, (N, C, H, W), dtype=jnp.float32)

    # Deterministic weight init (kaiming-uniform-like scale); conv weight
    # shape (C_out, C_in, 1, 1) with the trailing 1x1 squeezed away.
    fan_in = C
    bound = 1.0 / (fan_in ** 0.5)
    w = jax.random.uniform(kw, (C, C), dtype=jnp.float32, minval=-bound, maxval=bound)

    y_ref = jax.block_until_ready(reference(x, w))

    # Exact (fp32 MXU) path: must match the reference tightly.
    y_fp32 = jax.block_until_ready(relu_conv1x1(x, w, use_bf16=False))
    assert y_fp32.shape == (N, C, H, W), y_fp32.shape
    assert jnp.allclose(y_fp32, y_ref, atol=1e-4, rtol=1e-4), float(
        jnp.max(jnp.abs(y_fp32 - y_ref))
    )

    # Fast (bf16 inputs, fp32 accumulate) path: relaxed tolerance per review.
    y_bf16 = jax.block_until_ready(relu_conv1x1(x, w))
    assert y_bf16.shape == (N, C, H, W), y_bf16.shape
    assert jnp.allclose(y_bf16, y_ref, atol=3e-2, rtol=3e-2), float(
        jnp.max(jnp.abs(y_bf16 - y_ref))
    )

    print("KERNEL_OK")
</pallas_src>

<mosaic_0001>
module attributes {stable_mosaic.version = 11 : i64} {
  func.func @_relu_conv1x1_kernel(%arg0: i32, %arg1: i32, %arg2: memref<1x672x784xf32, #tpu.memory_space<vmem>>, %arg3: memref<336x672xf32, #tpu.memory_space<vmem>>, %arg4: memref<1x336x784xf32, #tpu.memory_space<vmem>>) attributes {dimension_semantics = [#tpu.dimension_semantics<parallel>, #tpu.dimension_semantics<parallel>], iteration_bounds = array<i64: 1, 2>, scalar_prefetch = 0 : i64, scratch_operands = 0 : i64, tpu.core_type = #tpu.core_type<tc>, window_params = [{transform_indices = @transform_0, window_bounds = array<i64: 1, 672, 784>}, {transform_indices = @transform_1, window_bounds = array<i64: 336, 672>}, {transform_indices = @transform_2, window_bounds = array<i64: 1, 336, 784>}]} {
    %c0 = arith.constant 0 : index
    %c0_0 = arith.constant 0 : index
    %c0_1 = arith.constant 0 : index
    %0 = vector.load %arg2[%c0, %c0_0, %c0_1] : memref<1x672x784xf32, #tpu.memory_space<vmem>>, vector<1x672x784xf32>
    %1 = vector.shape_cast %0 : vector<1x672x784xf32> to vector<672x784xf32>
    %cst = arith.constant 0.000000e+00 : f32
    %2 = vector.broadcast %cst : f32 to vector<672x784xf32>
    %3 = arith.maximumf %1, %2 : vector<672x784xf32>
    %c0_2 = arith.constant 0 : index
    %c0_3 = arith.constant 0 : index
    %4 = vector.load %arg3[%c0_2, %c0_3] : memref<336x672xf32, #tpu.memory_space<vmem>>, vector<336x672xf32>
    %cst_4 = arith.constant dense<0.000000e+00> : vector<336x784xf32>
    %5 = tpu.matmul %4, %3, %cst_4 {dimension_numbers = #tpu.dot_dimension_numbers<[1], [0], [0], [1], [0, 0, 1, 1], [], []>} : vector<336x672xf32>, vector<672x784xf32>, vector<336x784xf32> -> vector<336x784xf32>
    %c0_5 = arith.constant 0 : index
    %c0_6 = arith.constant 0 : index
    %c0_7 = arith.constant 0 : index
    %6 = vector.load %arg4[%c0_5, %c0_6, %c0_7] : memref<1x336x784xf32, #tpu.memory_space<vmem>>, vector<1x336x784xf32>
    %7 = vector.shape_cast %6 : vector<1x336x784xf32> to vector<336x784xf32>
    %8 = vector.shape_cast %5 : vector<336x784xf32> to vector<1x336x784xf32>
    tpu.vector_store %arg4[%c0_5, %c0_6, %c0_7], %8 {strides = array<i32>} : memref<1x336x784xf32, #tpu.memory_space<vmem>>, vector<1x336x784xf32>,
    return
  }
  func.func @transform_0(%arg0: i32, %arg1: i32) -> (i32, i32, i32) {
    %c0_i32 = arith.constant 0 : i32
    %c0_i32_0 = arith.constant 0 : i32
    %c0_i32_1 = arith.constant 0 : i32
    return %arg0, %c0_i32, %c0_i32_0 : i32, i32, i32
  }
  func.func @transform_1(%arg0: i32, %arg1: i32) -> (i32, i32) {
    %c0_i32 = arith.constant 0 : i32
    %c0_i32_0 = arith.constant 0 : i32
    return %arg1, %c0_i32 : i32, i32
  }
  func.func @transform_2(%arg0: i32, %arg1: i32) -> (i32, i32, i32) {
    %c0_i32 = arith.constant 0 : i32
    %c0_i32_0 = arith.constant 0 : i32
    return %arg0, %arg1, %c0_i32 : i32, i32, i32
  }
}

</mosaic_0001>

<llo_original>
// kernel: relu_conv1x1.1
$region0: #{relu_conv1x1.1}
  #allocation0 [shape = 'u32[]', space=smem, size = 0x4, offset = 0x4, fixed_abs, tag = 'smem constant byte address 0x4 - core index']
  #allocation1 [shape = 'u32[144,128]{1,0:T(1,128)}', space=vmem, size = 0x12000, scoped, tag = 'internal scratch']
  %s0 = inlined_call_operand.vmem [shape: f32[1,672,784], index: 0, kind: input, shape index: {}]
  %s1 = inlined_call_operand.vmem [shape: f32[672,672], index: 1, kind: input, shape index: {}]
  %s2 = inlined_call_operand.vmem [shape: f32[1,672,784], index: 2, kind: output, shape index: {}]
  %s3 = sld [smem:[#allocation0]]
  $region41: #{relu_conv1x1.1} parent=0
    _
  %s5 = ssub.s32 1, %s3
  %s6 = scalar_select 0, %s5, %s3
  loop: start=0, step=1, limit=4
  $region2: #{relu_conv1x1.1} parent=0 // loop_pre_header
    _
  $region3: #{relu_conv1x1.1} parent=0 // loop_header
    %s8 = sphi 0, %s12
    %p9 = scmp.ge.s32.totalorder %s8, 4
    %s15 = sphi 0, %s27
    %s16 = sphi 0, %s23
    %s17 = sphi 0, %s15
    %s18 = sphi 0, %s16
    %s19 = sphi 0, %s17
    %s20 = sphi 0, %s18
    %s30 = sphi 0, %s32
    %s33 = sphi 0, %s30
    %s34 = sphi 0, %s33
    %s50 = sphi 0, %s34
    %s56 = sphi 0, %s58
    %s59 = sphi 0, %s56
    %s60 = sphi 0, %s59
    %s76 = sphi 0, %s60
    %s84 = sphi 0, %s86
    %s87 = sphi 0, %s84
    %s88 = sphi 0, %s87
    %s104 = sphi 0, %s88
  $region4: #{relu_conv1x1.1} parent=0 // loop_header_branch
    %11 = sbr.rel (%p9) target = $region8
  $region5: #{relu_conv1x1.1} parent=0 // loop_body
    %s13 = ssub.s32 %s8, 1
    %s14 = ssub.s32 %s8, 2
    %s21 = sadd.s32 1, %s16
    %p22 = scmp.ge.s32.totalorder %s21, 2
    %s23 = scalar_select %p22, 0, %s21
    %s24 = sadd.s32 1, %s15
    %s25 = scalar_select %p22, %s24, %s15
    %p26 = scmp.ge.s32.totalorder %s25, 1
    %s27 = scalar_select %p26, 0, %s25
    %s28 = ssub.s32 %s15, %s27
    %p29 = scmp.eq.s32.totalorder %s28, 0
    %s31 = sadd.s32 %s30, 1
    %s32 = scalar_select %p29, %s30, %s31
    %p35 = pneg %p29
    %p36 = scmp.eq.s32.totalorder %s8, 1
    %p37 = por %p35, %p36
    %p38 = scmp.ne.s32.totalorder %s30, %s33
    %p39 = scmp.eq.s32.totalorder %s8, 0
    %p40 = por %p38, %p39
    %p41 = scmp.ne.s32.totalorder %s30, %s33
    %p42 = scmp.eq.s32.totalorder %s13, 1
    %p43 = por %p41, %p42
    %p44 = scmp.ne.s32.totalorder %s33, %s34
    %p45 = scmp.eq.s32.totalorder %s13, 0
    %p46 = por %p44, %p45
    %p47 = scmp.ne.s32.totalorder %s33, %s34
    %p48 = scmp.eq.s32.totalorder %s14, 1
    %p49 = por %p47, %p48
    %p51 = scmp.ne.s32.totalorder %s34, %s50
    %p52 = scmp.eq.s32.totalorder %s14, 0
    %p53 = por %p51, %p52
    %s54 = ssub.s32 %s16, %s23
    %p55 = scmp.eq.s32.totalorder %s54, 0
    %s57 = sadd.s32 %s56, 1
    %s58 = scalar_select %p55, %s56, %s57
    %p61 = pneg %p55
    %p62 = scmp.eq.s32.totalorder %s8, 1
    %p63 = por %p61, %p62
    %p64 = scmp.ne.s32.totalorder %s56, %s59
    %p65 = scmp.eq.s32.totalorder %s8, 0
    %p66 = por %p64, %p65
    %p67 = scmp.ne.s32.totalorder %s56, %s59
    %p68 = scmp.eq.s32.totalorder %s13, 1
    %p69 = por %p67, %p68
    %p70 = scmp.ne.s32.totalorder %s59, %s60
    %p71 = scmp.eq.s32.totalorder %s13, 0
    %p72 = por %p70, %p71
    %p73 = scmp.ne.s32.totalorder %s59, %s60
    %p74 = scmp.eq.s32.totalorder %s14, 1
    %p75 = por %p73, %p74
    %p77 = scmp.ne.s32.totalorder %s60, %s76
    %p78 = scmp.eq.s32.totalorder %s14, 0
    %p79 = por %p77, %p78
    %s80 = ssub.s32 %s15, %s27
    %s81 = ssub.s32 %s16, %s23
    %s82 = sor.u32 %s80, %s81
    %p83 = scmp.eq.s32.totalorder %s82, 0
    %s85 = sadd.s32 %s84, 1
    %s86 = scalar_select %p83, %s84, %s85
    %p89 = pneg %p83
    %p90 = scmp.eq.s32.totalorder %s8, 1
    %p91 = por %p89, %p90
    %p92 = scmp.ne.s32.totalorder %s84, %s87
    %p93 = scmp.eq.s32.totalorder %s8, 0
    %p94 = por %p92, %p93
    %p95 = scmp.ne.s32.totalorder %s84, %s87
    %p96 = scmp.eq.s32.totalorder %s13, 1
    %p97 = por %p95, %p96
    %p98 = scmp.ne.s32.totalorder %s87, %s88
    %p99 = scmp.eq.s32.totalorder %s13, 0
    %p100 = por %p98, %p99
    %p101 = scmp.ne.s32.totalorder %s87, %s88
    %p102 = scmp.eq.s32.totalorder %s14, 1
    %p103 = por %p101, %p102
    %p105 = scmp.ne.s32.totalorder %s88, %s104
    %p106 = scmp.eq.s32.totalorder %s14, 0
    %p107 = por %p105, %p106
    %p108 = scmp.le.s32.totalorder 1, %s8
    %p109 = scmp.lt.s32.totalorder %s8, 3
    %p110 = pnand %p108, %p109
    %p111 = pneg %p110
    // Predicated region
    $region9: #{relu_conv1x1.1} parent=5 // pred_check
      _
    $region10: #{relu_conv1x1.1} parent=5 // pred_check_branch
      %113 = sbr.rel (%p110) target = $region12
    $region11: #{relu_conv1x1.1} parent=5 // pred_region
      %s114 = ssub.s32 %s8, 1
      // Predicated region
      $region13: #{relu_conv1x1.1} parent=11 // pred_check
        %p115 = pneg %p46
      $region14: #{relu_conv1x1.1} parent=11 // pred_check_branch
        %117 = sbr.rel (%p115) target = $region16
      $region15: #{relu_conv1x1.1} parent=11 // pred_region
        %p118 = scmp.lt.s32.totalorder %s17, 0
        %s119 = scalar_select %p118, %s17, 0
        %s120 = smul.addr %s119, 588
        %s121 = smul.addr %s120, 8
        %s122 = scalar_lea.vmem %s0, %s121
      $region16: #{relu_conv1x1.1} parent=11 // pred_fallthru
        _
    $region12: #{relu_conv1x1.1} parent=5 // pred_fallthru
      _
    %p123 = scmp.lt.s32.totalorder %s8, 2
    // Predicated region
    $region17: #{relu_conv1x1.1} parent=5 // pred_check
      %p124 = pneg %p123
    $region18: #{relu_conv1x1.1} parent=5 // pred_check_branch
      %126 = sbr.rel (%p124) target = $region20
    $region19: #{relu_conv1x1.1} parent=5 // pred_region
      // Predicated region
      $region21: #{relu_conv1x1.1} parent=19 // pred_check
        %p127 = pneg %p66
      $region22: #{relu_conv1x1.1} parent=19 // pred_check_branch
        %129 = sbr.rel (%p127) target = $region24
      $region23: #{relu_conv1x1.1} parent=19 // pred_region
        %s130 = smul.u32 42, %s16
        %p131 = scmp.lt.s32.totalorder %s130, 83
        %s132 = scalar_select %p131, %s130, 83
        %s133 = smul.addr %s132, 6
        %s134 = smul.addr %s133, 8
        %s135 = scalar_lea.vmem %s1, %s134
        %s136 = smul.u32 42, %s16
      $region24: #{relu_conv1x1.1} parent=19 // pred_fallthru
        _
    $region20: #{relu_conv1x1.1} parent=5 // pred_fallthru
      _
    %p137 = scmp.le.s32.totalorder 1, %s8
    %p138 = scmp.lt.s32.totalorder %s8, 3
    %p139 = pnand %p137, %p138
    %p140 = pneg %p139
    // Predicated region
    $region25: #{relu_conv1x1.1} parent=5 // pred_check
      _
    $region26: #{relu_conv1x1.1} parent=5 // pred_check_branch
      %142 = sbr.rel (%p139) target = $region28
    $region27: #{relu_conv1x1.1} parent=5 // pred_region
      %s143 = ssub.s32 %s8, 1
      %p144 = scmp.lt.s32.totalorder %s17, 0
      %s145 = scalar_select %p144, %s17, 0
      %s146 = smul.addr %s145, 588
      %s147 = smul.addr %s146, 8
      %s148 = scalar_lea.vmem %s0, %s147
      %p149 = pneg %p46
      %p150 = pneg %p43
      %s151 = smul.u32 42, %s18
      %p152 = scmp.lt.s32.totalorder %s151, 83
      %s153 = scalar_select %p152, %s151, 83
      %s154 = smul.addr %s153, 6
      %s155 = smul.addr %s154, 8
      %s156 = scalar_lea.vmem %s1, %s155
      %p157 = pneg %p72
      %p158 = pneg %p69
      %p159 = pneg %p100
      %p160 = pneg %p97
      %s161 = smul.u32 42, %s18
      %p162 = scmp.lt.s32.totalorder %s17, 0
      %s163 = scalar_select %p162, %s17, 0
      %p164 = scmp.lt.s32.totalorder %s161, 83
      %s165 = scalar_select %p164, %s161, 83
      %s166 = smul.addr %s165, 7
      %s167 = smul.addr %s163, 588
      %s168 = sadd.s32 %s166, %s167
      %s169 = smul.addr %s168, 8
      %s170 = scalar_lea.vmem %s2, %s169
      %p171 = scmp.lt.s32.totalorder %s17, 0
      %s172 = scalar_select %p171, %s17, 0
      %s173 = smul.addr %s172, 588
      %s174 = smul.addr %s173, 8
      %s175 = scalar_lea.vmem %s0, %s174
      %s176 = smul.u32 42, %s18
      %p177 = scmp.lt.s32.totalorder %s176, 83
      %s178 = scalar_select %p177, %s176, 83
      %s179 = smul.addr %s178, 6
      %s180 = smul.addr %s179, 8
      %s181 = scalar_lea.vmem %s1, %s180
      %s182 = smul.u32 42, %s18
      %s183 = smul.u32 42, %s18
      %p184 = scmp.lt.s32.totalorder %s17, 0
      %s185 = scalar_select %p184, %s17, 0
      %p186 = scmp.lt.s32.totalorder %s183, 83
      %s187 = scalar_select %p186, %s183, 83
      %s188 = smul.addr %s187, 7
      %s189 = smul.addr %s185, 588
      %s190 = sadd.s32 %s188, %s189
      %s191 = smul.addr %s190, 8
      %s192 = scalar_lea.vmem %s2, %s191
      %s193 = smul.u32 42, %s18
      %v194 = vld [vmem:[%s175] sm:$0xff]
      %v195 = vld [vmem:[%s175 + $0x8] sm:$0xff]
      %v196 = vld [vmem:[%s175 + $0x10] sm:$0xff]
      %v197 = vld [vmem:[%s175 + $0x18] sm:$0xff]
      %v198 = vld [vmem:[%s175 + $0x20] sm:$0xff]
      %v199 = vld [vmem:[%s175 + $0x28] sm:$0xff]
      %v200 = vld [vmem:[%s175 + $0x30] sm:$0xff]
      %v201 = vld [vmem:[%s175 + $0x38] sm:$0xff]
      %v202 = vld [vmem:[%s175 + $0x40] sm:$0xff]
      %v203 = vld [vmem:[%s175 + $0x48] sm:$0xff]
      %v204 = vld [vmem:[%s175 + $0x50] sm:$0xff]
      %v205 = vld [vmem:[%s175 + $0x58] sm:$0xff]
      %v206 = vld [vmem:[%s175 + $0x60] sm:$0xff]
      %v207 = vld [vmem:[%s175 + $0x68] sm:$0xff]
      %v208 = vld [vmem:[%s175 + $0x70] sm:$0xff]
      %v209 = vld [vmem:[%s175 + $0x78] sm:$0xff]
      %v210 = vld [vmem:[%s175 + $0x80] sm:$0xff]
      %v211 = vld [vmem:[%s175 + $0x88] sm:$0xff]
      %v212 = vld [vmem:[%s175 + $0x90] sm:$0xff]
      %v213 = vld [vmem:[%s175 + $0x98] sm:$0xff]
      %v214 = vld [vmem:[%s175 + $0xa0] sm:$0xff]
      %v215 = vld [vmem:[%s175 + $0xa8] sm:$0xff]
      %v216 = vld [vmem:[%s175 + $0xb0] sm:$0xff]
      %v217 = vld [vmem:[%s175 + $0xb8] sm:$0xff]
      %v218 = vld [vmem:[%s175 + $0xc0] sm:$0xff]
      %v219 = vld [vmem:[%s175 + $0xc8] sm:$0xff]
      %v220 = vld [vmem:[%s175 + $0xd0] sm:$0xff]
      %v221 = vld [vmem:[%s175 + $0xd8] sm:$0xff]
      %v222 = vld [vmem:[%s175 + $0xe0] sm:$0xff]
      %v223 = vld [vmem:[%s175 + $0xe8] sm:$0xff]
      %v224 = vld [vmem:[%s175 + $0xf0] sm:$0xff]
      %v225 = vld [vmem:[%s175 + $0xf8] sm:$0xff]
      %v226 = vld [vmem:[%s175 + $0x100] sm:$0xff]
      %v227 = vld [vmem:[%s175 + $0x108] sm:$0xff]
      %v228 = vld [vmem:[%s175 + $0x110] sm:$0xff]
      %v229 = vld [vmem:[%s175 + $0x118] sm:$0xff]
      %v230 = vld [vmem:[%s175 + $0x120] sm:$0xff]
      %v231 = vld [vmem:[%s175 + $0x128] sm:$0xff]
      %v232 = vld [vmem:[%s175 + $0x130] sm:$0xff]
      %v233 = vld [vmem:[%s175 + $0x138] sm:$0xff]
      %v234 = vld [vmem:[%s175 + $0x140] sm:$0xff]
      %v235 = vld [vmem:[%s175 + $0x148] sm:$0xff]
      %v236 = vld [vmem:[%s175 + $0x150] sm:$0xff]
      %v237 = vld [vmem:[%s175 + $0x158] sm:$0xff]
      %v238 = vld [vmem:[%s175 + $0x160] sm:$0xff]
      %v239 = vld [vmem:[%s175 + $0x168] sm:$0xff]
      %v240 = vld [vmem:[%s175 + $0x170] sm:$0xff]
      %v241 = vld [vmem:[%s175 + $0x178] sm:$0xff]
      %v242 = vld [vmem:[%s175 + $0x180] sm:$0xff]
      %v243 = vld [vmem:[%s175 + $0x188] sm:$0xff]
      %v244 = vld [vmem:[%s175 + $0x190] sm:$0xff]
      %v245 = vld [vmem:[%s175 + $0x198] sm:$0xff]
      %v246 = vld [vmem:[%s175 + $0x1a0] sm:$0xff]
      %v247 = vld [vmem:[%s175 + $0x1a8] sm:$0xff]
      %v248 = vld [vmem:[%s175 + $0x1b0] sm:$0xff]
      %v249 = vld [vmem:[%s175 + $0x1b8] sm:$0xff]
      %v250 = vld [vmem:[%s175 + $0x1c0] sm:$0xff]
      %v251 = vld [vmem:[%s175 + $0x1c8] sm:$0xff]
      %v252 = vld [vmem:[%s175 + $0x1d0] sm:$0xff]
      %v253 = vld [vmem:[%s175 + $0x1d8] sm:$0xff]
      %v254 = vld [vmem:[%s175 + $0x1e0] sm:$0xff]
      %v255 = vld [vmem:[%s175 + $0x1e8] sm:$0xff]
      %v256 = vld [vmem:[%s175 + $0x1f0] sm:$0xff]
      %v257 = vld [vmem:[%s175 + $0x1f8] sm:$0xff]
      %v258 = vld [vmem:[%s175 + $0x200] sm:$0xff]
      %v259 = vld [vmem:[%s175 + $0x208] sm:$0xff]
      %v260 = vld [vmem:[%s175 + $0x210] sm:$0xff]
      %v261 = vld [vmem:[%s175 + $0x218] sm:$0xff]
      %v262 = vld [vmem:[%s175 + $0x220] sm:$0xff]
      %v263 = vld [vmem:[%s175 + $0x228] sm:$0xff]
      %v264 = vld [vmem:[%s175 + $0x230] sm:$0xff]
      %v265 = vld [vmem:[%s175 + $0x238] sm:$0xff]
      %v266 = vld [vmem:[%s175 + $0x240] sm:$0xff]
      %v267 = vld [vmem:[%s175 + $0x248] sm:$0xff]
      %v268 = vld [vmem:[%s175 + $0x250] sm:$0xff]
      %v269 = vld [vmem:[%s175 + $0x258] sm:$0xff]
      %v270 = vld [vmem:[%s175 + $0x260] sm:$0xff]
      %v271 = vld [vmem:[%s175 + $0x268] sm:$0xff]
      %v272 = vld [vmem:[%s175 + $0x270] sm:$0xff]
      %v273 = vld [vmem:[%s175 + $0x278] sm:$0xff]
      %v274 = vld [vmem:[%s175 + $0x280] sm:$0xff]
      %v275 = vld [vmem:[%s175 + $0x288] sm:$0xff]
      %v276 = vld [vmem:[%s175 + $0x290] sm:$0xff]
      %v277 = vld [vmem:[%s175 + $0x298] sm:$0xff]
      %v278 = vld [vmem:[%s175 + $0x2a0] sm:$0xff]
      %v279 = vld [vmem:[%s175 + $0x2a8] sm:$0xff]
      %v280 = vld [vmem:[%s175 + $0x2b0] sm:$0xff]
      %v281 = vld [vmem:[%s175 + $0x2b8] sm:$0xff]
      %v282 = vld [vmem:[%s175 + $0x2c0] sm:$0xff]
      %v283 = vld [vmem:[%s175 + $0x2c8] sm:$0xff]
      %v284 = vld [vmem:[%s175 + $0x2d0] sm:$0xff]
      %v285 = vld [vmem:[%s175 + $0x2d8] sm:$0xff]
      %v286 = vld [vmem:[%s175 + $0x2e0] sm:$0xff]
      %v287 = vld [vmem:[%s175 + $0x2e8] sm:$0xff]
      %v288 = vld [vmem:[%s175 + $0x2f0] sm:$0xff]
      %v289 = vld [vmem:[%s175 + $0x2f8] sm:$0xff]
      %v290 = vld [vmem:[%s175 + $0x300] sm:$0xff]
      %v291 = vld [vmem:[%s175 + $0x308] sm:$0xff]
      %v292 = vld [vmem:[%s175 + $0x310] sm:$0xff]
      %v293 = vld [vmem:[%s175 + $0x318] sm:$0xff]
      %v294 = vld [vmem:[%s175 + $0x320] sm:$0xff]
      %v295 = vld [vmem:[%s175 + $0x328] sm:$0xff]
      %v296 = vld [vmem:[%s175 + $0x330] sm:$0xff]
      %v297 = vld [vmem:[%s175 + $0x338] sm:$0xff]
      %v298 = vld [vmem:[%s175 + $0x340] sm:$0xff]
      %v299 = vld [vmem:[%s175 + $0x348] sm:$0xff]
      %v300 = vld [vmem:[%s175 + $0x350] sm:$0xff]
      %v301 = vld [vmem:[%s175 + $0x358] sm:$0xff]
      %v302 = vld [vmem:[%s175 + $0x360] sm:$0xff]
      %v303 = vld [vmem:[%s175 + $0x368] sm:$0xff]
      %v304 = vld [vmem:[%s175 + $0x370] sm:$0xff]
      %v305 = vld [vmem:[%s175 + $0x378] sm:$0xff]
      %v306 = vld [vmem:[%s175 + $0x380] sm:$0xff]
      %v307 = vld [vmem:[%s175 + $0x388] sm:$0xff]
      %v308 = vld [vmem:[%s175 + $0x390] sm:$0xff]
      %v309 = vld [vmem:[%s175 + $0x398] sm:$0xff]
      %v310 = vld [vmem:[%s175 + $0x3a0] sm:$0xff]
      %v311 = vld [vmem:[%s175 + $0x3a8] sm:$0xff]
      %v312 = vld [vmem:[%s175 + $0x3b0] sm:$0xff]
      %v313 = vld [vmem:[%s175 + $0x3b8] sm:$0xff]
      %v314 = vld [vmem:[%s175 + $0x3c0] sm:$0xff]
      %v315 = vld [vmem:[%s175 + $0x3c8] sm:$0xff]
      %v316 = vld [vmem:[%s175 + $0x3d0] sm:$0xff]
      %v317 = vld [vmem:[%s175 + $0x3d8] sm:$0xff]
      %v318 = vld [vmem:[%s175 + $0x3e0] sm:$0xff]
      %v319 = vld [vmem:[%s175 + $0x3e8] sm:$0xff]
      %v320 = vld [vmem:[%s175 + $0x3f0] sm:$0xff]
      %v321 = vld [vmem:[%s175 + $0x3f8] sm:$0xff]
      %v322 = vld [vmem:[%s175 + $0x400] sm:$0xff]
      %v323 = vld [vmem:[%s175 + $0x408] sm:$0xff]
      %v324 = vld [vmem:[%s175 + $0x410] sm:$0xff]
      %v325 = vld [vmem:[%s175 + $0x418] sm:$0xff]
      %v326 = vld [vmem:[%s175 + $0x420] sm:$0xff]
      %v327 = vld [vmem:[%s175 + $0x428] sm:$0xff]
      %v328 = vld [vmem:[%s175 + $0x430] sm:$0xff]
      %v329 = vld [vmem:[%s175 + $0x438] sm:$0xff]
      %v330 = vld [vmem:[%s175 + $0x440] sm:$0xff]
      %v331 = vld [vmem:[%s175 + $0x448] sm:$0xff]
      %v332 = vld [vmem:[%s175 + $0x450] sm:$0xff]
      %v333 = vld [vmem:[%s175 + $0x458] sm:$0xff]
      %v334 = vld [vmem:[%s175 + $0x460] sm:$0xff]
      %v335 = vld [vmem:[%s175 + $0x468] sm:$0xff]
      %v336 = vld [vmem:[%s175 + $0x470] sm:$0xff]
      %v337 = vld [vmem:[%s175 + $0x478] sm:$0xff]
      %v338 = vld [vmem:[%s175 + $0x480] sm:$0xff]
      %v339 = vld [vmem:[%s175 + $0x488] sm:$0xff]
      %v340 = vld [vmem:[%s175 + $0x490] sm:$0xff]
      %v341 = vld [vmem:[%s175 + $0x498] sm:$0xff]
      %v342 = vld [vmem:[%s175 + $0x4a0] sm:$0xff]
      %v343 = vld [vmem:[%s175 + $0x4a8] sm:$0xff]
      %v344 = vld [vmem:[%s175 + $0x4b0] sm:$0xff]
      %v345 = vld [vmem:[%s175 + $0x4b8] sm:$0xff]
      %v346 = vld [vmem:[%s175 + $0x4c0] sm:$0xff]
      %v347 = vld [vmem:[%s175 + $0x4c8] sm:$0xff]
      %v348 = vld [vmem:[%s175 + $0x4d0] sm:$0xff]
      %v349 = vld [vmem:[%s175 + $0x4d8] sm:$0xff]
      %v350 = vld [vmem:[%s175 + $0x4e0] sm:$0xff]
      %v351 = vld [vmem:[%s175 + $0x4e8] sm:$0xff]
      %v352 = vld [vmem:[%s175 + $0x4f0] sm:$0xff]
      %v353 = vld [vmem:[%s175 + $0x4f8] sm:$0xff]
      %v354 = vld [vmem:[%s175 + $0x500] sm:$0xff]
      %v355 = vld [vmem:[%s175 + $0x508] sm:$0xff]
      %v356 = vld [vmem:[%s175 + $0x510] sm:$0xff]
      %v357 = vld [vmem:[%s175 + $0x518] sm:$0xff]
      %v358 = vld [vmem:[%s175 + $0x520] sm:$0xff]
      %v359 = vld [vmem:[%s175 + $0x528] sm:$0xff]
      %v360 = vld [vmem:[%s175 + $0x530] sm:$0xff]
      %v361 = vld [vmem:[%s175 + $0x538] sm:$0xff]
      %v362 = vld [vmem:[%s175 + $0x540] sm:$0xff]
      %v363 = vld [vmem:[%s175 + $0x548] sm:$0xff]
      %v364 = vld [vmem:[%s175 + $0x550] sm:$0xff]
      %v365 = vld [vmem:[%s175 + $0x558] sm:$0xff]
      %v366 = vld [vmem:[%s175 + $0x560] sm:$0xff]
      %v367 = vld [vmem:[%s175 + $0x568] sm:$0xff]
      %v368 = vld [vmem:[%s175 + $0x570] sm:$0xff]
      %v369 = vld [vmem:[%s175 + $0x578] sm:$0xff]
      %v370 = vld [vmem:[%s175 + $0x580] sm:$0xff]
      %v371 = vld [vmem:[%s175 + $0x588] sm:$0xff]
      %v372 = vld [vmem:[%s175 + $0x590] sm:$0xff]
      %v373 = vld [vmem:[%s175 + $0x598] sm:$0xff]
      %v374 = vld [vmem:[%s175 + $0x5a0] sm:$0xff]
      %v375 = vld [vmem:[%s175 + $0x5a8] sm:$0xff]
      %v376 = vld [vmem:[%s175 + $0x5b0] sm:$0xff]
      %v377 = vld [vmem:[%s175 + $0x5b8] sm:$0xff]
      %v378 = vld [vmem:[%s175 + $0x5c0] sm:$0xff]
      %v379 = vld [vmem:[%s175 + $0x5c8] sm:$0xff]
      %v380 = vld [vmem:[%s175 + $0x5d0] sm:$0xff]
      %v381 = vld [vmem:[%s175 + $0x5d8] sm:$0xff]
      %v382 = vld [vmem:[%s175 + $0x5e0] sm:$0xff]
      %v383 = vld [vmem:[%s175 + $0x5e8] sm:$0xff]
      %v384 = vld [vmem:[%s175 + $0x5f0] sm:$0xff]
      %v385 = vld [vmem:[%s175 + $0x5f8] sm:$0xff]
      %v386 = vld [vmem:[%s175 + $0x600] sm:$0xff]
      %v387 = vld [vmem:[%s175 + $0x608] sm:$0xff]
      %v388 = vld [vmem:[%s175 + $0x610] sm:$0xff]
      %v389 = vld [vmem:[%s175 + $0x618] sm:$0xff]
      %v390 = vld [vmem:[%s175 + $0x620] sm:$0xff]
      %v391 = vld [vmem:[%s175 + $0x628] sm:$0xff]
      %v392 = vld [vmem:[%s175 + $0x630] sm:$0xff]
      %v393 = vld [vmem:[%s175 + $0x638] sm:$0xff]
      %v394 = vld [vmem:[%s175 + $0x640] sm:$0xff]
      %v395 = vld [vmem:[%s175 + $0x648] sm:$0xff]
      %v396 = vld [vmem:[%s175 + $0x650] sm:$0xff]
      %v397 = vld [vmem:[%s175 + $0x658] sm:$0xff]
      %v398 = vld [vmem:[%s175 + $0x660] sm:$0xff]
      %v399 = vld [vmem:[%s175 + $0x668] sm:$0xff]
      %v400 = vld [vmem:[%s175 + $0x670] sm:$0xff]
      %v401 = vld [vmem:[%s175 + $0x678] sm:$0xff]
      %v402 = vld [vmem:[%s175 + $0x680] sm:$0xff]
      %v403 = vld [vmem:[%s175 + $0x688] sm:$0xff]
      %v404 = vld [vmem:[%s175 + $0x690] sm:$0xff]
      %v405 = vld [vmem:[%s175 + $0x698] sm:$0xff]
      %v406 = vld [vmem:[%s175 + $0x6a0] sm:$0xff]
      %v407 = vld [vmem:[%s175 + $0x6a8] sm:$0xff]
      %v408 = vld [vmem:[%s175 + $0x6b0] sm:$0xff]
      %v409 = vld [vmem:[%s175 + $0x6b8] sm:$0xff]
      %v410 = vld [vmem:[%s175 + $0x6c0] sm:$0xff]
      %v411 = vld [vmem:[%s175 + $0x6c8] sm:$0xff]
      %v412 = vld [vmem:[%s175 + $0x6d0] sm:$0xff]
      %v413 = vld [vmem:[%s175 + $0x6d8] sm:$0xff]
      %v414 = vld [vmem:[%s175 + $0x6e0] sm:$0xff]
      %v415 = vld [vmem:[%s175 + $0x6e8] sm:$0xff]
      %v416 = vld [vmem:[%s175 + $0x6f0] sm:$0xff]
      %v417 = vld [vmem:[%s175 + $0x6f8] sm:$0xff]
      %v418 = vld [vmem:[%s175 + $0x700] sm:$0xff]
      %v419 = vld [vmem:[%s175 + $0x708] sm:$0xff]
      %v420 = vld [vmem:[%s175 + $0x710] sm:$0xff]
      %v421 = vld [vmem:[%s175 + $0x718] sm:$0xff]
      %v422 = vld [vmem:[%s175 + $0x720] sm:$0xff]
      %v423 = vld [vmem:[%s175 + $0x728] sm:$0xff]
      %v424 = vld [vmem:[%s175 + $0x730] sm:$0xff]
      %v425 = vld [vmem:[%s175 + $0x738] sm:$0xff]
      %v426 = vld [vmem:[%s175 + $0x740] sm:$0xff]
      %v427 = vld [vmem:[%s175 + $0x748] sm:$0xff]
      %v428 = vld [vmem:[%s175 + $0x750] sm:$0xff]
      %v429 = vld [vmem:[%s175 + $0x758] sm:$0xff]
      %v430 = vld [vmem:[%s175 + $0x760] sm:$0xff]
      %v431 = vld [vmem:[%s175 + $0x768] sm:$0xff]
      %v432 = vld [vmem:[%s175 + $0x770] sm:$0xff]
      %v433 = vld [vmem:[%s175 + $0x778] sm:$0xff]
      %v434 = vld [vmem:[%s175 + $0x780] sm:$0xff]
      %v435 = vld [vmem:[%s175 + $0x788] sm:$0xff]
      %v436 = vld [vmem:[%s175 + $0x790] sm:$0xff]
      %v437 = vld [vmem:[%s175 + $0x798] sm:$0xff]
      %v438 = vld [vmem:[%s175 + $0x7a0] sm:$0xff]
      %v439 = vld [vmem:[%s175 + $0x7a8] sm:$0xff]
      %v440 = vld [vmem:[%s175 + $0x7b0] sm:$0xff]
      %v441 = vld [vmem:[%s175 + $0x7b8] sm:$0xff]
      %v442 = vld [vmem:[%s175 + $0x7c0] sm:$0xff]
      %v443 = vld [vmem:[%s175 + $0x7c8] sm:$0xff]
      %v444 = vld [vmem:[%s175 + $0x7d0] sm:$0xff]
      %v445 = vld [vmem:[%s175 + $0x7d8] sm:$0xff]
      %v446 = vld [vmem:[%s175 + $0x7e0] sm:$0xff]
      %v447 = vld [vmem:[%s175 + $0x7e8] sm:$0xff]
      %v448 = vld [vmem:[%s175 + $0x7f0] sm:$0xff]
      %v449 = vld [vmem:[%s175 + $0x7f8] sm:$0xff]
      %v450 = vld [vmem:[%s175 + $0x800] sm:$0xff]
      %v451 = vld [vmem:[%s175 + $0x808] sm:$0xff]
      %v452 = vld [vmem:[%s175 + $0x810] sm:$0xff]
      %v453 = vld [vmem:[%s175 + $0x818] sm:$0xff]
      %v454 = vld [vmem:[%s175 + $0x820] sm:$0xff]
      %v455 = vld [vmem:[%s175 + $0x828] sm:$0xff]
      %v456 = vld [vmem:[%s175 + $0x830] sm:$0xff]
      %v457 = vld [vmem:[%s175 + $0x838] sm:$0xff]
      %v458 = vld [vmem:[%s175 + $0x840] sm:$0xff]
      %v459 = vld [vmem:[%s175 + $0x848] sm:$0xff]
      %v460 = vld [vmem:[%s175 + $0x850] sm:$0xff]
      %v461 = vld [vmem:[%s175 + $0x858] sm:$0xff]
      %v462 = vld [vmem:[%s175 + $0x860] sm:$0xff]
      %v463 = vld [vmem:[%s175 + $0x868] sm:$0xff]
      %v464 = vld [vmem:[%s175 + $0x870] sm:$0xff]
      %v465 = vld [vmem:[%s175 + $0x878] sm:$0xff]
      %v466 = vld [vmem:[%s175 + $0x880] sm:$0xff]
      %v467 = vld [vmem:[%s175 + $0x888] sm:$0xff]
      %v468 = vld [vmem:[%s175 + $0x890] sm:$0xff]
      %v469 = vld [vmem:[%s175 + $0x898] sm:$0xff]
      %v470 = vld [vmem:[%s175 + $0x8a0] sm:$0xff]
      %v471 = vld [vmem:[%s175 + $0x8a8] sm:$0xff]
      %v472 = vld [vmem:[%s175 + $0x8b0] sm:$0xff]
      %v473 = vld [vmem:[%s175 + $0x8b8] sm:$0xff]
      %v474 = vld [vmem:[%s175 + $0x8c0] sm:$0xff]
      %v475 = vld [vmem:[%s175 + $0x8c8] sm:$0xff]
      %v476 = vld [vmem:[%s175 + $0x8d0] sm:$0xff]
      %v477 = vld [vmem:[%s175 + $0x8d8] sm:$0xff]
      %v478 = vld [vmem:[%s175 + $0x8e0] sm:$0xff]
      %v479 = vld [vmem:[%s175 + $0x8e8] sm:$0xff]
      %v480 = vld [vmem:[%s175 + $0x8f0] sm:$0xff]
      %v481 = vld [vmem:[%s175 + $0x8f8] sm:$0xff]
      %v482 = vld [vmem:[%s175 + $0x900] sm:$0xff]
      %v483 = vld [vmem:[%s175 + $0x908] sm:$0xff]
      %v484 = vld [vmem:[%s175 + $0x910] sm:$0xff]
      %v485 = vld [vmem:[%s175 + $0x918] sm:$0xff]
      %v486 = vld [vmem:[%s175 + $0x920] sm:$0xff]
      %v487 = vld [vmem:[%s175 + $0x928] sm:$0xff]
      %v488 = vld [vmem:[%s175 + $0x930] sm:$0xff]
      %v489 = vld [vmem:[%s175 + $0x938] sm:$0xff]
      %v490 = vld [vmem:[%s175 + $0x940] sm:$0xff]
      %v491 = vld [vmem:[%s175 + $0x948] sm:$0xff]
      %v492 = vld [vmem:[%s175 + $0x950] sm:$0xff]
      %v493 = vld [vmem:[%s175 + $0x958] sm:$0xff]
      %v494 = vld [vmem:[%s175 + $0x960] sm:$0xff]
      %v495 = vld [vmem:[%s175 + $0x968] sm:$0xff]
      %v496 = vld [vmem:[%s175 + $0x970] sm:$0xff]
      %v497 = vld [vmem:[%s175 + $0x978] sm:$0xff]
      %v498 = vld [vmem:[%s175 + $0x980] sm:$0xff]
      %v499 = vld [vmem:[%s175 + $0x988] sm:$0xff]
      %v500 = vld [vmem:[%s175 + $0x990] sm:$0xff]
      %v501 = vld [vmem:[%s175 + $0x998] sm:$0xff]
      %v502 = vld [vmem:[%s175 + $0x9a0] sm:$0xff]
      %v503 = vld [vmem:[%s175 + $0x9a8] sm:$0xff]
      %v504 = vld [vmem:[%s175 + $0x9b0] sm:$0xff]
      %v505 = vld [vmem:[%s175 + $0x9b8] sm:$0xff]
      %v506 = vld [vmem:[%s175 + $0x9c0] sm:$0xff]
      %v507 = vld [vmem:[%s175 + $0x9c8] sm:$0xff]
      %v508 = vld [vmem:[%s175 + $0x9d0] sm:$0xff]
      %v509 = vld [vmem:[%s175 + $0x9d8] sm:$0xff]
      %v510 = vld [vmem:[%s175 + $0x9e0] sm:$0xff]
      %v511 = vld [vmem:[%s175 + $0x9e8] sm:$0xff]
      %v512 = vld [vmem:[%s175 + $0x9f0] sm:$0xff]
      %v513 = vld [vmem:[%s175 + $0x9f8] sm:$0xff]
      %v514 = vld [vmem:[%s175 + $0xa00] sm:$0xff]
      %v515 = vld [vmem:[%s175 + $0xa08] sm:$0xff]
      %v516 = vld [vmem:[%s175 + $0xa10] sm:$0xff]
      %v517 = vld [vmem:[%s175 + $0xa18] sm:$0xff]
      %v518 = vld [vmem:[%s175 + $0xa20] sm:$0xff]
      %v519 = vld [vmem:[%s175 + $0xa28] sm:$0xff]
      %v520 = vld [vmem:[%s175 + $0xa30] sm:$0xff]
      %v521 = vld [vmem:[%s175 + $0xa38] sm:$0xff]
      %v522 = vld [vmem:[%s175 + $0xa40] sm:$0xff]
      %v523 = vld [vmem:[%s175 + $0xa48] sm:$0xff]
      %v524 = vld [vmem:[%s175 + $0xa50] sm:$0xff]
      %v525 = vld [vmem:[%s175 + $0xa58] sm:$0xff]
      %v526 = vld [vmem:[%s175 + $0xa60] sm:$0xff]
      %v527 = vld [vmem:[%s175 + $0xa68] sm:$0xff]
      %v528 = vld [vmem:[%s175 + $0xa70] sm:$0xff]
      %v529 = vld [vmem:[%s175 + $0xa78] sm:$0xff]
      %v530 = vld [vmem:[%s175 + $0xa80] sm:$0xff]
      %v531 = vld [vmem:[%s175 + $0xa88] sm:$0xff]
      %v532 = vld [vmem:[%s175 + $0xa90] sm:$0xff]
      %v533 = vld [vmem:[%s175 + $0xa98] sm:$0xff]
      %v534 = vld [vmem:[%s175 + $0xaa0] sm:$0xff]
      %v535 = vld [vmem:[%s175 + $0xaa8] sm:$0xff]
      %v536 = vld [vmem:[%s175 + $0xab0] sm:$0xff]
      %v537 = vld [vmem:[%s175 + $0xab8] sm:$0xff]
      %v538 = vld [vmem:[%s175 + $0xac0] sm:$0xff]
      %v539 = vld [vmem:[%s175 + $0xac8] sm:$0xff]
      %v540 = vld [vmem:[%s175 + $0xad0] sm:$0xff]
      %v541 = vld [vmem:[%s175 + $0xad8] sm:$0xff]
      %v542 = vld [vmem:[%s175 + $0xae0] sm:$0xff]
      %v543 = vld [vmem:[%s175 + $0xae8] sm:$0xff]
      %v544 = vld [vmem:[%s175 + $0xaf0] sm:$0xff]
      %v545 = vld [vmem:[%s175 + $0xaf8] sm:$0xff]
      %v546 = vld [vmem:[%s175 + $0xb00] sm:$0xff]
      %v547 = vld [vmem:[%s175 + $0xb08] sm:$0xff]
      %v548 = vld [vmem:[%s175 + $0xb10] sm:$0xff]
      %v549 = vld [vmem:[%s175 + $0xb18] sm:$0xff]
      %v550 = vld [vmem:[%s175 + $0xb20] sm:$0xff]
      %v551 = vld [vmem:[%s175 + $0xb28] sm:$0xff]
      %v552 = vld [vmem:[%s175 + $0xb30] sm:$0xff]
      %v553 = vld [vmem:[%s175 + $0xb38] sm:$0xff]
      %v554 = vld [vmem:[%s175 + $0xb40] sm:$0xff]
      %v555 = vld [vmem:[%s175 + $0xb48] sm:$0xff]
      %v556 = vld [vmem:[%s175 + $0xb50] sm:$0xff]
      %v557 = vld [vmem:[%s175 + $0xb58] sm:$0xff]
      %v558 = vld [vmem:[%s175 + $0xb60] sm:$0xff]
      %v559 = vld [vmem:[%s175 + $0xb68] sm:$0xff]
      %v560 = vld [vmem:[%s175 + $0xb70] sm:$0xff]
      %v561 = vld [vmem:[%s175 + $0xb78] sm:$0xff]
      %v562 = vld [vmem:[%s175 + $0xb80] sm:$0xff]
      %v563 = vld [vmem:[%s175 + $0xb88] sm:$0xff]
      %v564 = vld [vmem:[%s175 + $0xb90] sm:$0xff]
      %v565 = vld [vmem:[%s175 + $0xb98] sm:$0xff]
      %v566 = vld [vmem:[%s175 + $0xba0] sm:$0xff]
      %v567 = vld [vmem:[%s175 + $0xba8] sm:$0xff]
      %v568 = vld [vmem:[%s175 + $0xbb0] sm:$0xff]
      %v569 = vld [vmem:[%s175 + $0xbb8] sm:$0xff]
      %v570 = vld [vmem:[%s175 + $0xbc0] sm:$0xff]
      %v571 = vld [vmem:[%s175 + $0xbc8] sm:$0xff]
      %v572 = vld [vmem:[%s175 + $0xbd0] sm:$0xff]
      %v573 = vld [vmem:[%s175 + $0xbd8] sm:$0xff]
      %v574 = vld [vmem:[%s175 + $0xbe0] sm:$0xff]
      %v575 = vld [vmem:[%s175 + $0xbe8] sm:$0xff]
      %v576 = vld [vmem:[%s175 + $0xbf0] sm:$0xff]
      %v577 = vld [vmem:[%s175 + $0xbf8] sm:$0xff]
      %v578 = vld [vmem:[%s175 + $0xc00] sm:$0xff]
      %v579 = vld [vmem:[%s175 + $0xc08] sm:$0xff]
      %v580 = vld [vmem:[%s175 + $0xc10] sm:$0xff]
      %v581 = vld [vmem:[%s175 + $0xc18] sm:$0xff]
      %v582 = vld [vmem:[%s175 + $0xc20] sm:$0xff]
      %v583 = vld [vmem:[%s175 + $0xc28] sm:$0xff]
      %v584 = vld [vmem:[%s175 + $0xc30] sm:$0xff]
      %v585 = vld [vmem:[%s175 + $0xc38] sm:$0xff]
      %v586 = vld [vmem:[%s175 + $0xc40] sm:$0xff]
      %v587 = vld [vmem:[%s175 + $0xc48] sm:$0xff]
      %v588 = vld [vmem:[%s175 + $0xc50] sm:$0xff]
      %v589 = vld [vmem:[%s175 + $0xc58] sm:$0xff]
      %v590 = vld [vmem:[%s175 + $0xc60] sm:$0xff]
      %v591 = vld [vmem:[%s175 + $0xc68] sm:$0xff]
      %v592 = vld [vmem:[%s175 + $0xc70] sm:$0xff]
      %v593 = vld [vmem:[%s175 + $0xc78] sm:$0xff]
      %v594 = vld [vmem:[%s175 + $0xc80] sm:$0xff]
      %v595 = vld [vmem:[%s175 + $0xc88] sm:$0xff]
      %v596 = vld [vmem:[%s175 + $0xc90] sm:$0xff]
      %v597 = vld [vmem:[%s175 + $0xc98] sm:$0xff]
      %v598 = vld [vmem:[%s175 + $0xca0] sm:$0xff]
      %v599 = vld [vmem:[%s175 + $0xca8] sm:$0xff]
      %v600 = vld [vmem:[%s175 + $0xcb0] sm:$0xff]
      %v601 = vld [vmem:[%s175 + $0xcb8] sm:$0xff]
      %v602 = vld [vmem:[%s175 + $0xcc0] sm:$0xff]
      %v603 = vld [vmem:[%s175 + $0xcc8] sm:$0xff]
      %v604 = vld [vmem:[%s175 + $0xcd0] sm:$0xff]
      %v605 = vld [vmem:[%s175 + $0xcd8] sm:$0xff]
      %v606 = vld [vmem:[%s175 + $0xce0] sm:$0xff]
      %v607 = vld [vmem:[%s175 + $0xce8] sm:$0xff]
      %v608 = vld [vmem:[%s175 + $0xcf0] sm:$0xff]
      %v609 = vld [vmem:[%s175 + $0xcf8] sm:$0xff]
      %v610 = vld [vmem:[%s175 + $0xd00] sm:$0xff]
      %v611 = vld [vmem:[%s175 + $0xd08] sm:$0xff]
      %v612 = vld [vmem:[%s175 + $0xd10] sm:$0xff]
      %v613 = vld [vmem:[%s175 + $0xd18] sm:$0xff]
      %v614 = vld [vmem:[%s175 + $0xd20] sm:$0xff]
      %v615 = vld [vmem:[%s175 + $0xd28] sm:$0xff]
      %v616 = vld [vmem:[%s175 + $0xd30] sm:$0xff]
      %v617 = vld [vmem:[%s175 + $0xd38] sm:$0xff]
      %v618 = vld [vmem:[%s175 + $0xd40] sm:$0xff]
      %v619 = vld [vmem:[%s175 + $0xd48] sm:$0xff]
      %v620 = vld [vmem:[%s175 + $0xd50] sm:$0xff]
      %v621 = vld [vmem:[%s175 + $0xd58] sm:$0xff]
      %v622 = vld [vmem:[%s175 + $0xd60] sm:$0xff]
      %v623 = vld [vmem:[%s175 + $0xd68] sm:$0xff]
      %v624 = vld [vmem:[%s175 + $0xd70] sm:$0xff]
      %v625 = vld [vmem:[%s175 + $0xd78] sm:$0xff]
      %v626 = vld [vmem:[%s175 + $0xd80] sm:$0xff]
      %v627 = vld [vmem:[%s175 + $0xd88] sm:$0xff]
      %v628 = vld [vmem:[%s175 + $0xd90] sm:$0xff]
      %v629 = vld [vmem:[%s175 + $0xd98] sm:$0xff]
      %v630 = vld [vmem:[%s175 + $0xda0] sm:$0xff]
      %v631 = vld [vmem:[%s175 + $0xda8] sm:$0xff]
      %v632 = vld [vmem:[%s175 + $0xdb0] sm:$0xff]
      %v633 = vld [vmem:[%s175 + $0xdb8] sm:$0xff]
      %v634 = vld [vmem:[%s175 + $0xdc0] sm:$0xff]
      %v635 = vld [vmem:[%s175 + $0xdc8] sm:$0xff]
      %v636 = vld [vmem:[%s175 + $0xdd0] sm:$0xff]
      %v637 = vld [vmem:[%s175 + $0xdd8] sm:$0xff]
      %v638 = vld [vmem:[%s175 + $0xde0] sm:$0xff]
      %v639 = vld [vmem:[%s175 + $0xde8] sm:$0xff]
      %v640 = vld [vmem:[%s175 + $0xdf0] sm:$0xff]
      %v641 = vld [vmem:[%s175 + $0xdf8] sm:$0xff]
      %v642 = vld [vmem:[%s175 + $0xe00] sm:$0xff]
      %v643 = vld [vmem:[%s175 + $0xe08] sm:$0xff]
      %v644 = vld [vmem:[%s175 + $0xe10] sm:$0xff]
      %v645 = vld [vmem:[%s175 + $0xe18] sm:$0xff]
      %v646 = vld [vmem:[%s175 + $0xe20] sm:$0xff]
      %v647 = vld [vmem:[%s175 + $0xe28] sm:$0xff]
      %v648 = vld [vmem:[%s175 + $0xe30] sm:$0xff]
      %v649 = vld [vmem:[%s175 + $0xe38] sm:$0xff]
      %v650 = vld [vmem:[%s175 + $0xe40] sm:$0xff]
      %v651 = vld [vmem:[%s175 + $0xe48] sm:$0xff]
      %v652 = vld [vmem:[%s175 + $0xe50] sm:$0xff]
      %v653 = vld [vmem:[%s175 + $0xe58] sm:$0xff]
      %v654 = vld [vmem:[%s175 + $0xe60] sm:$0xff]
      %v655 = vld [vmem:[%s175 + $0xe68] sm:$0xff]
      %v656 = vld [vmem:[%s175 + $0xe70] sm:$0xff]
      %v657 = vld [vmem:[%s175 + $0xe78] sm:$0xff]
      %v658 = vld [vmem:[%s175 + $0xe80] sm:$0xff]
      %v659 = vld [vmem:[%s175 + $0xe88] sm:$0xff]
      %v660 = vld [vmem:[%s175 + $0xe90] sm:$0xff]
      %v661 = vld [vmem:[%s175 + $0xe98] sm:$0xff]
      %v662 = vld [vmem:[%s175 + $0xea0] sm:$0xff]
      %v663 = vld [vmem:[%s175 + $0xea8] sm:$0xff]
      %v664 = vld [vmem:[%s175 + $0xeb0] sm:$0xff]
      %v665 = vld [vmem:[%s175 + $0xeb8] sm:$0xff]
      %v666 = vld [vmem:[%s175 + $0xec0] sm:$0xff]
      %v667 = vld [vmem:[%s175 + $0xec8] sm:$0xff]
      %v668 = vld [vmem:[%s175 + $0xed0] sm:$0xff]
      %v669 = vld [vmem:[%s175 + $0xed8] sm:$0xff]
      %v670 = vld [vmem:[%s175 + $0xee0] sm:$0xff]
      %v671 = vld [vmem:[%s175 + $0xee8] sm:$0xff]
      %v672 = vld [vmem:[%s175 + $0xef0] sm:$0xff]
      %v673 = vld [vmem:[%s175 + $0xef8] sm:$0xff]
      %v674 = vld [vmem:[%s175 + $0xf00] sm:$0xff]
      %v675 = vld [vmem:[%s175 + $0xf08] sm:$0xff]
      %v676 = vld [vmem:[%s175 + $0xf10] sm:$0xff]
      %v677 = vld [vmem:[%s175 + $0xf18] sm:$0xff]
      %v678 = vld [vmem:[%s175 + $0xf20] sm:$0xff]
      %v679 = vld [vmem:[%s175 + $0xf28] sm:$0xff]
      %v680 = vld [vmem:[%s175 + $0xf30] sm:$0xff]
      %v681 = vld [vmem:[%s175 + $0xf38] sm:$0xff]
      %v682 = vld [vmem:[%s175 + $0xf40] sm:$0xff]
      %v683 = vld [vmem:[%s175 + $0xf48] sm:$0xff]
      %v684 = vld [vmem:[%s175 + $0xf50] sm:$0xff]
      %v685 = vld [vmem:[%s175 + $0xf58] sm:$0xff]
      %v686 = vld [vmem:[%s175 + $0xf60] sm:$0xff]
      %v687 = vld [vmem:[%s175 + $0xf68] sm:$0xff]
      %v688 = vld [vmem:[%s175 + $0xf70] sm:$0xff]
      %v689 = vld [vmem:[%s175 + $0xf78] sm:$0xff]
      %v690 = vld [vmem:[%s175 + $0xf80] sm:$0xff]
      %v691 = vld [vmem:[%s175 + $0xf88] sm:$0xff]
      %v692 = vld [vmem:[%s175 + $0xf90] sm:$0xff]
      %v693 = vld [vmem:[%s175 + $0xf98] sm:$0xff]
      %v694 = vld [vmem:[%s175 + $0xfa0] sm:$0xff]
      %v695 = vld [vmem:[%s175 + $0xfa8] sm:$0xff]
      %v696 = vld [vmem:[%s175 + $0xfb0] sm:$0xff]
      %v697 = vld [vmem:[%s175 + $0xfb8] sm:$0xff]
      %v698 = vld [vmem:[%s175 + $0xfc0] sm:$0xff]
      %v699 = vld [vmem:[%s175 + $0xfc8] sm:$0xff]
      %v700 = vld [vmem:[%s175 + $0xfd0] sm:$0xff]
      %v701 = vld [vmem:[%s175 + $0xfd8] sm:$0xff]
      %v702 = vld [vmem:[%s175 + $0xfe0] sm:$0xff]
      %v703 = vld [vmem:[%s175 + $0xfe8] sm:$0xff]
      %v704 = vld [vmem:[%s175 + $0xff0] sm:$0xff]
      %v705 = vld [vmem:[%s175 + $0xff8] sm:$0xff]
      %v706 = vld [vmem:[%s175 + $0x1000] sm:$0xff]
      %v707 = vld [vmem:[%s175 + $0x1008] sm:$0xff]
      %v708 = vld [vmem:[%s175 + $0x1010] sm:$0xff]
      %v709 = vld [vmem:[%s175 + $0x1018] sm:$0xff]
      %v710 = vld [vmem:[%s175 + $0x1020] sm:$0xff]
      %v711 = vld [vmem:[%s175 + $0x1028] sm:$0xff]
      %v712 = vld [vmem:[%s175 + $0x1030] sm:$0xff]
      %v713 = vld [vmem:[%s175 + $0x1038] sm:$0xff]
      %v714 = vld [vmem:[%s175 + $0x1040] sm:$0xff]
      %v715 = vld [vmem:[%s175 + $0x1048] sm:$0xff]
      %v716 = vld [vmem:[%s175 + $0x1050] sm:$0xff]
      %v717 = vld [vmem:[%s175 + $0x1058] sm:$0xff]
      %v718 = vld [vmem:[%s175 + $0x1060] sm:$0xff]
      %v719 = vld [vmem:[%s175 + $0x1068] sm:$0xff]
      %v720 = vld [vmem:[%s175 + $0x1070] sm:$0xff]
      %v721 = vld [vmem:[%s175 + $0x1078] sm:$0xff]
      %v722 = vld [vmem:[%s175 + $0x1080] sm:$0xff]
      %v723 = vld [vmem:[%s175 + $0x1088] sm:$0xff]
      %v724 = vld [vmem:[%s175 + $0x1090] sm:$0xff]
      %v725 = vld [vmem:[%s175 + $0x1098] sm:$0xff]
      %v726 = vld [vmem:[%s175 + $0x10a0] sm:$0xff]
      %v727 = vld [vmem:[%s175 + $0x10a8] sm:$0xff]
      %v728 = vld [vmem:[%s175 + $0x10b0] sm:$0xff]
      %v729 = vld [vmem:[%s175 + $0x10b8] sm:$0xff]
      %v730 = vld [vmem:[%s175 + $0x10c0] sm:$0xff]
      %v731 = vld [vmem:[%s175 + $0x10c8] sm:$0xff]
      %v732 = vld [vmem:[%s175 + $0x10d0] sm:$0xff]
      %v733 = vld [vmem:[%s175 + $0x10d8] sm:$0xff]
      %v734 = vld [vmem:[%s175 + $0x10e0] sm:$0xff]
      %v735 = vld [vmem:[%s175 + $0x10e8] sm:$0xff]
      %v736 = vld [vmem:[%s175 + $0x10f0] sm:$0xff]
      %v737 = vld [vmem:[%s175 + $0x10f8] sm:$0xff]
      %v738 = vld [vmem:[%s175 + $0x1100] sm:$0xff]
      %v739 = vld [vmem:[%s175 + $0x1108] sm:$0xff]
      %v740 = vld [vmem:[%s175 + $0x1110] sm:$0xff]
      %v741 = vld [vmem:[%s175 + $0x1118] sm:$0xff]
      %v742 = vld [vmem:[%s175 + $0x1120] sm:$0xff]
      %v743 = vld [vmem:[%s175 + $0x1128] sm:$0xff]
      %v744 = vld [vmem:[%s175 + $0x1130] sm:$0xff]
      %v745 = vld [vmem:[%s175 + $0x1138] sm:$0xff]
      %v746 = vld [vmem:[%s175 + $0x1140] sm:$0xff]
      %v747 = vld [vmem:[%s175 + $0x1148] sm:$0xff]
      %v748 = vld [vmem:[%s175 + $0x1150] sm:$0xff]
      %v749 = vld [vmem:[%s175 + $0x1158] sm:$0xff]
      %v750 = vld [vmem:[%s175 + $0x1160] sm:$0xff]
      %v751 = vld [vmem:[%s175 + $0x1168] sm:$0xff]
      %v752 = vld [vmem:[%s175 + $0x1170] sm:$0xff]
      %v753 = vld [vmem:[%s175 + $0x1178] sm:$0xff]
      %v754 = vld [vmem:[%s175 + $0x1180] sm:$0xff]
      %v755 = vld [vmem:[%s175 + $0x1188] sm:$0xff]
      %v756 = vld [vmem:[%s175 + $0x1190] sm:$0xff]
      %v757 = vld [vmem:[%s175 + $0x1198] sm:$0xff]
      %v758 = vld [vmem:[%s175 + $0x11a0] sm:$0xff]
      %v759 = vld [vmem:[%s175 + $0x11a8] sm:$0xff]
      %v760 = vld [vmem:[%s175 + $0x11b0] sm:$0xff]
      %v761 = vld [vmem:[%s175 + $0x11b8] sm:$0xff]
      %v762 = vld [vmem:[%s175 + $0x11c0] sm:$0xff]
      %v763 = vld [vmem:[%s175 + $0x11c8] sm:$0xff]
      %v764 = vld [vmem:[%s175 + $0x11d0] sm:$0xff]
      %v765 = vld [vmem:[%s175 + $0x11d8] sm:$0xff]
      %v766 = vld [vmem:[%s175 + $0x11e0] sm:$0xff]
      %v767 = vld [vmem:[%s175 + $0x11e8] sm:$0xff]
      %v768 = vld [vmem:[%s175 + $0x11f0] sm:$0xff]
      %v769 = vld [vmem:[%s175 + $0x11f8] sm:$0xff]
      %v770 = vld [vmem:[%s175 + $0x1200] sm:$0xff]
      %v771 = vld [vmem:[%s175 + $0x1208] sm:$0xff]
      %v772 = vld [vmem:[%s175 + $0x1210] sm:$0xff]
      %v773 = vld [vmem:[%s175 + $0x1218] sm:$0xff]
      %v774 = vld [vmem:[%s175 + $0x1220] sm:$0xff]
      %v775 = vld [vmem:[%s175 + $0x1228] sm:$0xff]
      %v776 = vld [vmem:[%s175 + $0x1230] sm:$0xff]
      %v777 = vld [vmem:[%s175 + $0x1238] sm:$0xff]
      %v778 = vld [vmem:[%s175 + $0x1240] sm:$0xff]
      %v779 = vld [vmem:[%s175 + $0x1248] sm:$0xff]
      %v780 = vld [vmem:[%s175 + $0x1250] sm:$0xff]
      %v781 = vld [vmem:[%s175 + $0x1258] sm:$0xff]
      %v782 = vmax.f32 %v194, 0.0
      %v783 = vmax.f32 %v195, 0.0
      %v784 = vmax.f32 %v196, 0.0
      %v785 = vmax.f32 %v197, 0.0
      %v786 = vmax.f32 %v198, 0.0
      %v787 = vmax.f32 %v199, 0.0
      %v788 = vmax.f32 %v200, 0.0
      %v789 = vmax.f32 %v201, 0.0
      %v790 = vmax.f32 %v202, 0.0
      %v791 = vmax.f32 %v203, 0.0
      %v792 = vmax.f32 %v204, 0.0
      %v793 = vmax.f32 %v205, 0.0
      %v794 = vmax.f32 %v206, 0.0
      %v795 = vmax.f32 %v207, 0.0
      %v796 = vmax.f32 %v208, 0.0
      %v797 = vmax.f32 %v209, 0.0
      %v798 = vmax.f32 %v210, 0.0
      %v799 = vmax.f32 %v211, 0.0
      %v800 = vmax.f32 %v212, 0.0
      %v801 = vmax.f32 %v213, 0.0
      %v802 = vmax.f32 %v214, 0.0
      %v803 = vmax.f32 %v215, 0.0
      %v804 = vmax.f32 %v216, 0.0
      %v805 = vmax.f32 %v217, 0.0
      %v806 = vmax.f32 %v218, 0.0
      %v807 = vmax.f32 %v219, 0.0
      %v808 = vmax.f32 %v220, 0.0
      %v809 = vmax.f32 %v221, 0.0
      %v810 = vmax.f32 %v222, 0.0
      %v811 = vmax.f32 %v223, 0.0
      %v812 = vmax.f32 %v224, 0.0
      %v813 = vmax.f32 %v225, 0.0
      %v814 = vmax.f32 %v226, 0.0
      %v815 = vmax.f32 %v227, 0.0
      %v816 = vmax.f32 %v228, 0.0
      %v817 = vmax.f32 %v229, 0.0
      %v818 = vmax.f32 %v230, 0.0
      %v819 = vmax.f32 %v231, 0.0
      %v820 = vmax.f32 %v232, 0.0
      %v821 = vmax.f32 %v233, 0.0
      %v822 = vmax.f32 %v234, 0.0
      %v823 = vmax.f32 %v235, 0.0
      %v824 = vmax.f32 %v236, 0.0
      %v825 = vmax.f32 %v237, 0.0
      %v826 = vmax.f32 %v238, 0.0
      %v827 = vmax.f32 %v239, 0.0
      %v828 = vmax.f32 %v240, 0.0
      %v829 = vmax.f32 %v241, 0.0
      %v830 = vmax.f32 %v242, 0.0
      %v831 = vmax.f32 %v243, 0.0
      %v832 = vmax.f32 %v244, 0.0
      %v833 = vmax.f32 %v245, 0.0
      %v834 = vmax.f32 %v246, 0.0
      %v835 = vmax.f32 %v247, 0.0
      %v836 = vmax.f32 %v248, 0.0
      %v837 = vmax.f32 %v249, 0.0
      %v838 = vmax.f32 %v250, 0.0
      %v839 = vmax.f32 %v251, 0.0
      %v840 = vmax.f32 %v252, 0.0
      %v841 = vmax.f32 %v253, 0.0
      %v842 = vmax.f32 %v254, 0.0
      %v843 = vmax.f32 %v255, 0.0
      %v844 = vmax.f32 %v256, 0.0
      %v845 = vmax.f32 %v257, 0.0
      %v846 = vmax.f32 %v258, 0.0
      %v847 = vmax.f32 %v259, 0.0
      %v848 = vmax.f32 %v260, 0.0
      %v849 = vmax.f32 %v261, 0.0
      %v850 = vmax.f32 %v262, 0.0
      %v851 = vmax.f32 %v263, 0.0
      %v852 = vmax.f32 %v264, 0.0
      %v853 = vmax.f32 %v265, 0.0
      %v854 = vmax.f32 %v266, 0.0
      %v855 = vmax.f32 %v267, 0.0
      %v856 = vmax.f32 %v268, 0.0
      %v857 = vmax.f32 %v269, 0.0
      %v858 = vmax.f32 %v270, 0.0
      %v859 = vmax.f32 %v271, 0.0
      %v860 = vmax.f32 %v272, 0.0
      %v861 = vmax.f32 %v273, 0.0
      %v862 = vmax.f32 %v274, 0.0
      %v863 = vmax.f32 %v275, 0.0
      %v864 = vmax.f32 %v276, 0.0
      %v865 = vmax.f32 %v277, 0.0
      %v866 = vmax.f32 %v278, 0.0
      %v867 = vmax.f32 %v279, 0.0
      %v868 = vmax.f32 %v280, 0.0
      %v869 = vmax.f32 %v281, 0.0
      %v870 = vmax.f32 %v282, 0.0
      %v871 = vmax.f32 %v283, 0.0
      %v872 = vmax.f32 %v284, 0.0
      %v873 = vmax.f32 %v285, 0.0
      %v874 = vmax.f32 %v286, 0.0
      %v875 = vmax.f32 %v287, 0.0
      %v876 = vmax.f32 %v288, 0.0
      %v877 = vmax.f32 %v289, 0.0
      %v878 = vmax.f32 %v290, 0.0
      %v879 = vmax.f32 %v291, 0.0
      %v880 = vmax.f32 %v292, 0.0
      %v881 = vmax.f32 %v293, 0.0
      %v882 = vmax.f32 %v294, 0.0
      %v883 = vmax.f32 %v295, 0.0
      %v884 = vmax.f32 %v296, 0.0
      %v885 = vmax.f32 %v297, 0.0
      %v886 = vmax.f32 %v298, 0.0
      %v887 = vmax.f32 %v299, 0.0
      %v888 = vmax.f32 %v300, 0.0
      %v889 = vmax.f32 %v301, 0.0
      %v890 = vmax.f32 %v302, 0.0
      %v891 = vmax.f32 %v303, 0.0
      %v892 = vmax.f32 %v304, 0.0
      %v893 = vmax.f32 %v305, 0.0
      %v894 = vmax.f32 %v306, 0.0
      %v895 = vmax.f32 %v307, 0.0
      %v896 = vmax.f32 %v308, 0.0
      %v897 = vmax.f32 %v309, 0.0
      %v898 = vmax.f32 %v310, 0.0
      %v899 = vmax.f32 %v311, 0.0
      %v900 = vmax.f32 %v312, 0.0
      %v901 = vmax.f32 %v313, 0.0
      %v902 = vmax.f32 %v314, 0.0
      %v903 = vmax.f32 %v315, 0.0
      %v904 = vmax.f32 %v316, 0.0
      %v905 = vmax.f32 %v317, 0.0
      %v906 = vmax.f32 %v318, 0.0
      %v907 = vmax.f32 %v319, 0.0
      %v908 = vmax.f32 %v320, 0.0
      %v909 = vmax.f32 %v321, 0.0
      %v910 = vmax.f32 %v322, 0.0
      %v911 = vmax.f32 %v323, 0.0
      %v912 = vmax.f32 %v324, 0.0
      %v913 = vmax.f32 %v325, 0.0
      %v914 = vmax.f32 %v326, 0.0
      %v915 = vmax.f32 %v327, 0.0
      %v916 = vmax.f32 %v328, 0.0
      %v917 = vmax.f32 %v329, 0.0
      %v918 = vmax.f32 %v330, 0.0
      %v919 = vmax.f32 %v331, 0.0
      %v920 = vmax.f32 %v332, 0.0
      %v921 = vmax.f32 %v333, 0.0
      %v922 = vmax.f32 %v334, 0.0
      %v923 = vmax.f32 %v335, 0.0
      %v924 = vmax.f32 %v336, 0.0
      %v925 = vmax.f32 %v337, 0.0
      %v926 = vmax.f32 %v338, 0.0
      %v927 = vmax.f32 %v339, 0.0
      %v928 = vmax.f32 %v340, 0.0
      %v929 = vmax.f32 %v341, 0.0
      %v930 = vmax.f32 %v342, 0.0
      %v931 = vmax.f32 %v343, 0.0
      %v932 = vmax.f32 %v344, 0.0
      %v933 = vmax.f32 %v345, 0.0
      %v934 = vmax.f32 %v346, 0.0
      %v935 = vmax.f32 %v347, 0.0
      %v936 = vmax.f32 %v348, 0.0
      %v937 = vmax.f32 %v349, 0.0
      %v938 = vmax.f32 %v350, 0.0
      %v939 = vmax.f32 %v351, 0.0
      %v940 = vmax.f32 %v352, 0.0
      %v941 = vmax.f32 %v353, 0.0
      %v942 = vmax.f32 %v354, 0.0
      %v943 = vmax.f32 %v355, 0.0
      %v944 = vmax.f32 %v356, 0.0
      %v945 = vmax.f32 %v357, 0.0
      %v946 = vmax.f32 %v358, 0.0
      %v947 = vmax.f32 %v359, 0.0
      %v948 = vmax.f32 %v360, 0.0
      %v949 = vmax.f32 %v361, 0.0
      %v950 = vmax.f32 %v362, 0.0
      %v951 = vmax.f32 %v363, 0.0
      %v952 = vmax.f32 %v364, 0.0
      %v953 = vmax.f32 %v365, 0.0
      %v954 = vmax.f32 %v366, 0.0
      %v955 = vmax.f32 %v367, 0.0
      %v956 = vmax.f32 %v368, 0.0
      %v957 = vmax.f32 %v369, 0.0
      %v958 = vmax.f32 %v370, 0.0
      %v959 = vmax.f32 %v371, 0.0
      %v960 = vmax.f32 %v372, 0.0
      %v961 = vmax.f32 %v373, 0.0
      %v962 = vmax.f32 %v374, 0.0
      %v963 = vmax.f32 %v375, 0.0
      %v964 = vmax.f32 %v376, 0.0
      %v965 = vmax.f32 %v377, 0.0
      %v966 = vmax.f32 %v378, 0.0
      %v967 = vmax.f32 %v379, 0.0
      %v968 = vmax.f32 %v380, 0.0
      %v969 = vmax.f32 %v381, 0.0
      %v970 = vmax.f32 %v382, 0.0
      %v971 = vmax.f32 %v383, 0.0
      %v972 = vmax.f32 %v384, 0.0
      %v973 = vmax.f32 %v385, 0.0
      %v974 = vmax.f32 %v386, 0.0
      %v975 = vmax.f32 %v387, 0.0
      %v976 = vmax.f32 %v388, 0.0
      %v977 = vmax.f32 %v389, 0.0
      %v978 = vmax.f32 %v390, 0.0
      %v979 = vmax.f32 %v391, 0.0
      %v980 = vmax.f32 %v392, 0.0
      %v981 = vmax.f32 %v393, 0.0
      %v982 = vmax.f32 %v394, 0.0
      %v983 = vmax.f32 %v395, 0.0
      %v984 = vmax.f32 %v396, 0.0
      %v985 = vmax.f32 %v397, 0.0
      %v986 = vmax.f32 %v398, 0.0
      %v987 = vmax.f32 %v399, 0.0
      %v988 = vmax.f32 %v400, 0.0
      %v989 = vmax.f32 %v401, 0.0
      %v990 = vmax.f32 %v402, 0.0
      %v991 = vmax.f32 %v403, 0.0
      %v992 = vmax.f32 %v404, 0.0
      %v993 = vmax.f32 %v405, 0.0
      %v994 = vmax.f32 %v406, 0.0
      %v995 = vmax.f32 %v407, 0.0
      %v996 = vmax.f32 %v408, 0.0
      %v997 = vmax.f32 %v409, 0.0
      %v998 = vmax.f32 %v410, 0.0
      %v999 = vmax.f32 %v411, 0.0
      %v1000 = vmax.f32 %v412, 0.0
      %v1001 = vmax.f32 %v413, 0.0
      %v1002 = vmax.f32 %v414, 0.0
      %v1003 = vmax.f32 %v415, 0.0
      %v1004 = vmax.f32 %v416, 0.0
      %v1005 = vmax.f32 %v417, 0.0
      %v1006 = vmax.f32 %v418, 0.0
      %v1007 = vmax.f32 %v419, 0.0
      %v1008 = vmax.f32 %v420, 0.0
      %v1009 = vmax.f32 %v421, 0.0
      %v1010 = vmax.f32 %v422, 0.0
      %v1011 = vmax.f32 %v423, 0.0
      %v1012 = vmax.f32 %v424, 0.0
      %v1013 = vmax.f32 %v425, 0.0
      %v1014 = vmax.f32 %v426, 0.0
      %v1015 = vmax.f32 %v427, 0.0
      %v1016 = vmax.f32 %v428, 0.0
      %v1017 = vmax.f32 %v429, 0.0
      %v1018 = vmax.f32 %v430, 0.0
      %v1019 = vmax.f32 %v431, 0.0
      %v1020 = vmax.f32 %v432, 0.0
      %v1021 = vmax.f32 %v433, 0.0
      %v1022 = vmax.f32 %v434, 0.0
      %v1023 = vmax.f32 %v435, 0.0
      %v1024 = vmax.f32 %v436, 0.0
      %v1025 = vmax.f32 %v437, 0.0
      %v1026 = vmax.f32 %v438, 0.0
      %v1027 = vmax.f32 %v439, 0.0
      %v1028 = vmax.f32 %v440, 0.0
      %v1029 = vmax.f32 %v441, 0.0
      %v1030 = vmax.f32 %v442, 0.0
      %v1031 = vmax.f32 %v443, 0.0
      %v1032 = vmax.f32 %v444, 0.0
      %v1033 = vmax.f32 %v445, 0.0
      %v1034 = vmax.f32 %v446, 0.0
      %v1035 = vmax.f32 %v447, 0.0
      %v1036 = vmax.f32 %v448, 0.0
      %v1037 = vmax.f32 %v449, 0.0
      %v1038 = vmax.f32 %v450, 0.0
      %v1039 = vmax.f32 %v451, 0.0
      %v1040 = vmax.f32 %v452, 0.0
      %v1041 = vmax.f32 %v453, 0.0
      %v1042 = vmax.f32 %v454, 0.0
      %v1043 = vmax.f32 %v455, 0.0
      %v1044 = vmax.f32 %v456, 0.0
      %v1045 = vmax.f32 %v457, 0.0
      %v1046 = vmax.f32 %v458, 0.0
      %v1047 = vmax.f32 %v459, 0.0
      %v1048 = vmax.f32 %v460, 0.0
      %v1049 = vmax.f32 %v461, 0.0
      %v1050 = vmax.f32 %v462, 0.0
      %v1051 = vmax.f32 %v463, 0.0
      %v1052 = vmax.f32 %v464, 0.0
      %v1053 = vmax.f32 %v465, 0.0
      %v1054 = vmax.f32 %v466, 0.0
      %v1055 = vmax.f32 %v467, 0.0
      %v1056 = vmax.f32 %v468, 0.0
      %v1057 = vmax.f32 %v469, 0.0
      %v1058 = vmax.f32 %v470, 0.0
      %v1059 = vmax.f32 %v471, 0.0
      %v1060 = vmax.f32 %v472, 0.0
      %v1061 = vmax.f32 %v473, 0.0
      %v1062 = vmax.f32 %v474, 0.0
      %v1063 = vmax.f32 %v475, 0.0
      %v1064 = vmax.f32 %v476, 0.0
      %v1065 = vmax.f32 %v477, 0.0
      %v1066 = vmax.f32 %v478, 0.0
      %v1067 = vmax.f32 %v479, 0.0
      %v1068 = vmax.f32 %v480, 0.0
      %v1069 = vmax.f32 %v481, 0.0
      %v1070 = vmax.f32 %v482, 0.0
      %v1071 = vmax.f32 %v483, 0.0
      %v1072 = vmax.f32 %v484, 0.0
      %v1073 = vmax.f32 %v485, 0.0
      %v1074 = vmax.f32 %v486, 0.0
      %v1075 = vmax.f32 %v487, 0.0
      %v1076 = vmax.f32 %v488, 0.0
      %v1077 = vmax.f32 %v489, 0.0
      %v1078 = vmax.f32 %v490, 0.0
      %v1079 = vmax.f32 %v491, 0.0
      %v1080 = vmax.f32 %v492, 0.0
      %v1081 = vmax.f32 %v493, 0.0
      %v1082 = vmax.f32 %v494, 0.0
      %v1083 = vmax.f32 %v495, 0.0
      %v1084 = vmax.f32 %v496, 0.0
      %v1085 = vmax.f32 %v497, 0.0
      %v1086 = vmax.f32 %v498, 0.0
      %v1087 = vmax.f32 %v499, 0.0
      %v1088 = vmax.f32 %v500, 0.0
      %v1089 = vmax.f32 %v501, 0.0
      %v1090 = vmax.f32 %v502, 0.0
      %v1091 = vmax.f32 %v503, 0.0
      %v1092 = vmax.f32 %v504, 0.0
      %v1093 = vmax.f32 %v505, 0.0
      %v1094 = vmax.f32 %v506, 0.0
      %v1095 = vmax.f32 %v507, 0.0
      %v1096 = vmax.f32 %v508, 0.0
      %v1097 = vmax.f32 %v509, 0.0
      %v1098 = vmax.f32 %v510, 0.0
      %v1099 = vmax.f32 %v511, 0.0
      %v1100 = vmax.f32 %v512, 0.0
      %v1101 = vmax.f32 %v513, 0.0
      %v1102 = vmax.f32 %v514, 0.0
      %v1103 = vmax.f32 %v515, 0.0
      %v1104 = vmax.f32 %v516, 0.0
      %v1105 = vmax.f32 %v517, 0.0
      %v1106 = vmax.f32 %v518, 0.0
      %v1107 = vmax.f32 %v519, 0.0
      %v1108 = vmax.f32 %v520, 0.0
      %v1109 = vmax.f32 %v521, 0.0
      %v1110 = vmax.f32 %v522, 0.0
      %v1111 = vmax.f32 %v523, 0.0
      %v1112 = vmax.f32 %v524, 0.0
      %v1113 = vmax.f32 %v525, 0.0
      %v1114 = vmax.f32 %v526, 0.0
      %v1115 = vmax.f32 %v527, 0.0
      %v1116 = vmax.f32 %v528, 0.0
      %v1117 = vmax.f32 %v529, 0.0
      %v1118 = vmax.f32 %v530, 0.0
      %v1119 = vmax.f32 %v531, 0.0
      %v1120 = vmax.f32 %v532, 0.0
      %v1121 = vmax.f32 %v533, 0.0
      %v1122 = vmax.f32 %v534, 0.0
      %v1123 = vmax.f32 %v535, 0.0
      %v1124 = vmax.f32 %v536, 0.0
      %v1125 = vmax.f32 %v537, 0.0
      %v1126 = vmax.f32 %v538, 0.0
      %v1127 = vmax.f32 %v539, 0.0
      %v1128 = vmax.f32 %v540, 0.0
      %v1129 = vmax.f32 %v541, 0.0
      %v1130 = vmax.f32 %v542, 0.0
      %v1131 = vmax.f32 %v543, 0.0
      %v1132 = vmax.f32 %v544, 0.0
      %v1133 = vmax.f32 %v545, 0.0
      %v1134 = vmax.f32 %v546, 0.0
      %v1135 = vmax.f32 %v547, 0.0
      %v1136 = vmax.f32 %v548, 0.0
      %v1137 = vmax.f32 %v549, 0.0
      %v1138 = vmax.f32 %v550, 0.0
      %v1139 = vmax.f32 %v551, 0.0
      %v1140 = vmax.f32 %v552, 0.0
      %v1141 = vmax.f32 %v553, 0.0
      %v1142 = vmax.f32 %v554, 0.0
      %v1143 = vmax.f32 %v555, 0.0
      %v1144 = vmax.f32 %v556, 0.0
      %v1145 = vmax.f32 %v557, 0.0
      %v1146 = vmax.f32 %v558, 0.0
      %v1147 = vmax.f32 %v559, 0.0
      %v1148 = vmax.f32 %v560, 0.0
      %v1149 = vmax.f32 %v561, 0.0
      %v1150 = vmax.f32 %v562, 0.0
      %v1151 = vmax.f32 %v563, 0.0
      %v1152 = vmax.f32 %v564, 0.0
      %v1153 = vmax.f32 %v565, 0.0
      %v1154 = vmax.f32 %v566, 0.0
      %v1155 = vmax.f32 %v567, 0.0
      %v1156 = vmax.f32 %v568, 0.0
      %v1157 = vmax.f32 %v569, 0.0
      %v1158 = vmax.f32 %v570, 0.0
      %v1159 = vmax.f32 %v571, 0.0
      %v1160 = vmax.f32 %v572, 0.0
      %v1161 = vmax.f32 %v573, 0.0
      %v1162 = vmax.f32 %v574, 0.0
      %v1163 = vmax.f32 %v575, 0.0
      %v1164 = vmax.f32 %v576, 0.0
      %v1165 = vmax.f32 %v577, 0.0
      %v1166 = vmax.f32 %v578, 0.0
      %v1167 = vmax.f32 %v579, 0.0
      %v1168 = vmax.f32 %v580, 0.0
      %v1169 = vmax.f32 %v581, 0.0
      %v1170 = vmax.f32 %v582, 0.0
      %v1171 = vmax.f32 %v583, 0.0
      %v1172 = vmax.f32 %v584, 0.0
      %v1173 = vmax.f32 %v585, 0.0
      %v1174 = vmax.f32 %v586, 0.0
      %v1175 = vmax.f32 %v587, 0.0
      %v1176 = vmax.f32 %v588, 0.0
      %v1177 = vmax.f32 %v589, 0.0
      %v1178 = vmax.f32 %v590, 0.0
      %v1179 = vmax.f32 %v591, 0.0
      %v1180 = vmax.f32 %v592, 0.0
      %v1181 = vmax.f32 %v593, 0.0
      %v1182 = vmax.f32 %v594, 0.0
      %v1183 = vmax.f32 %v595, 0.0
      %v1184 = vmax.f32 %v596, 0.0
      %v1185 = vmax.f32 %v597, 0.0
      %v1186 = vmax.f32 %v598, 0.0
      %v1187 = vmax.f32 %v599, 0.0
      %v1188 = vmax.f32 %v600, 0.0
      %v1189 = vmax.f32 %v601, 0.0
      %v1190 = vmax.f32 %v602, 0.0
      %v1191 = vmax.f32 %v603, 0.0
      %v1192 = vmax.f32 %v604, 0.0
      %v1193 = vmax.f32 %v605, 0.0
      %v1194 = vmax.f32 %v606, 0.0
      %v1195 = vmax.f32 %v607, 0.0
      %v1196 = vmax.f32 %v608, 0.0
      %v1197 = vmax.f32 %v609, 0.0
      %v1198 = vmax.f32 %v610, 0.0
      %v1199 = vmax.f32 %v611, 0.0
      %v1200 = vmax.f32 %v612, 0.0
      %v1201 = vmax.f32 %v613, 0.0
      %v1202 = vmax.f32 %v614, 0.0
      %v1203 = vmax.f32 %v615, 0.0
      %v1204 = vmax.f32 %v616, 0.0
      %v1205 = vmax.f32 %v617, 0.0
      %v1206 = vmax.f32 %v618, 0.0
      %v1207 = vmax.f32 %v619, 0.0
      %v1208 = vmax.f32 %v620, 0.0
      %v1209 = vmax.f32 %v621, 0.0
      %v1210 = vmax.f32 %v622, 0.0
      %v1211 = vmax.f32 %v623, 0.0
      %v1212 = vmax.f32 %v624, 0.0
      %v1213 = vmax.f32 %v625, 0.0
      %v1214 = vmax.f32 %v626, 0.0
      %v1215 = vmax.f32 %v627, 0.0
      %v1216 = vmax.f32 %v628, 0.0
      %v1217 = vmax.f32 %v629, 0.0
      %v1218 = vmax.f32 %v630, 0.0
      %v1219 = vmax.f32 %v631, 0.0
      %v1220 = vmax.f32 %v632, 0.0
      %v1221 = vmax.f32 %v633, 0.0
      %v1222 = vmax.f32 %v634, 0.0
      %v1223 = vmax.f32 %v635, 0.0
      %v1224 = vmax.f32 %v636, 0.0
      %v1225 = vmax.f32 %v637, 0.0
      %v1226 = vmax.f32 %v638, 0.0
      %v1227 = vmax.f32 %v639, 0.0
      %v1228 = vmax.f32 %v640, 0.0
      %v1229 = vmax.f32 %v641, 0.0
      %v1230 = vmax.f32 %v642, 0.0
      %v1231 = vmax.f32 %v643, 0.0
      %v1232 = vmax.f32 %v644, 0.0
      %v1233 = vmax.f32 %v645, 0.0
      %v1234 = vmax.f32 %v646, 0.0
      %v1235 = vmax.f32 %v647, 0.0
      %v1236 = vmax.f32 %v648, 0.0
      %v1237 = vmax.f32 %v649, 0.0
      %v1238 = vmax.f32 %v650, 0.0
      %v1239 = vmax.f32 %v651, 0.0
      %v1240 = vmax.f32 %v652, 0.0
      %v1241 = vmax.f32 %v653, 0.0
      %v1242 = vmax.f32 %v654, 0.0
      %v1243 = vmax.f32 %v655, 0.0
      %v1244 = vmax.f32 %v656, 0.0
      %v1245 = vmax.f32 %v657, 0.0
      %v1246 = vmax.f32 %v658, 0.0
      %v1247 = vmax.f32 %v659, 0.0
      %v1248 = vmax.f32 %v660, 0.0
      %v1249 = vmax.f32 %v661, 0.0
      %v1250 = vmax.f32 %v662, 0.0
      %v1251 = vmax.f32 %v663, 0.0
      %v1252 = vmax.f32 %v664, 0.0
      %v1253 = vmax.f32 %v665, 0.0
      %v1254 = vmax.f32 %v666, 0.0
      %v1255 = vmax.f32 %v667, 0.0
      %v1256 = vmax.f32 %v668, 0.0
      %v1257 = vmax.f32 %v669, 0.0
      %v1258 = vmax.f32 %v670, 0.0
      %v1259 = vmax.f32 %v671, 0.0
      %v1260 = vmax.f32 %v672, 0.0
      %v1261 = vmax.f32 %v673, 0.0
      %v1262 = vmax.f32 %v674, 0.0
      %v1263 = vmax.f32 %v675, 0.0
      %v1264 = vmax.f32 %v676, 0.0
      %v1265 = vmax.f32 %v677, 0.0
      %v1266 = vmax.f32 %v678, 0.0
      %v1267 = vmax.f32 %v679, 0.0
      %v1268 = vmax.f32 %v680, 0.0
      %v1269 = vmax.f32 %v681, 0.0
      %v1270 = vmax.f32 %v682, 0.0
      %v1271 = vmax.f32 %v683, 0.0
      %v1272 = vmax.f32 %v684, 0.0
      %v1273 = vmax.f32 %v685, 0.0
      %v1274 = vmax.f32 %v686, 0.0
      %v1275 = vmax.f32 %v687, 0.0
      %v1276 = vmax.f32 %v688, 0.0
      %v1277 = vmax.f32 %v689, 0.0
      %v1278 = vmax.f32 %v690, 0.0
      %v1279 = vmax.f32 %v691, 0.0
      %v1280 = vmax.f32 %v692, 0.0
      %v1281 = vmax.f32 %v693, 0.0
      %v1282 = vmax.f32 %v694, 0.0
      %v1283 = vmax.f32 %v695, 0.0
      %v1284 = vmax.f32 %v696, 0.0
      %v1285 = vmax.f32 %v697, 0.0
      %v1286 = vmax.f32 %v698, 0.0
      %v1287 = vmax.f32 %v699, 0.0
      %v1288 = vmax.f32 %v700, 0.0
      %v1289 = vmax.f32 %v701, 0.0
      %v1290 = vmax.f32 %v702, 0.0
      %v1291 = vmax.f32 %v703, 0.0
      %v1292 = vmax.f32 %v704, 0.0
      %v1293 = vmax.f32 %v705, 0.0
      %v1294 = vmax.f32 %v706, 0.0
      %v1295 = vmax.f32 %v707, 0.0
      %v1296 = vmax.f32 %v708, 0.0
      %v1297 = vmax.f32 %v709, 0.0
      %v1298 = vmax.f32 %v710, 0.0
      %v1299 = vmax.f32 %v711, 0.0
      %v1300 = vmax.f32 %v712, 0.0
      %v1301 = vmax.f32 %v713, 0.0
      %v1302 = vmax.f32 %v714, 0.0
      %v1303 = vmax.f32 %v715, 0.0
      %v1304 = vmax.f32 %v716, 0.0
      %v1305 = vmax.f32 %v717, 0.0
      %v1306 = vmax.f32 %v718, 0.0
      %v1307 = vmax.f32 %v719, 0.0
      %v1308 = vmax.f32 %v720, 0.0
      %v1309 = vmax.f32 %v721, 0.0
      %v1310 = vmax.f32 %v722, 0.0
      %v1311 = vmax.f32 %v723, 0.0
      %v1312 = vmax.f32 %v724, 0.0
      %v1313 = vmax.f32 %v725, 0.0
      %v1314 = vmax.f32 %v726, 0.0
      %v1315 = vmax.f32 %v727, 0.0
      %v1316 = vmax.f32 %v728, 0.0
      %v1317 = vmax.f32 %v729, 0.0
      %v1318 = vmax.f32 %v730, 0.0
      %v1319 = vmax.f32 %v731, 0.0
      %v1320 = vmax.f32 %v732, 0.0
      %v1321 = vmax.f32 %v733, 0.0
      %v1322 = vmax.f32 %v734, 0.0
      %v1323 = vmax.f32 %v735, 0.0
      %v1324 = vmax.f32 %v736, 0.0
      %v1325 = vmax.f32 %v737, 0.0
      %v1326 = vmax.f32 %v738, 0.0
      %v1327 = vmax.f32 %v739, 0.0
      %v1328 = vmax.f32 %v740, 0.0
      %v1329 = vmax.f32 %v741, 0.0
      %v1330 = vmax.f32 %v742, 0.0
      %v1331 = vmax.f32 %v743, 0.0
      %v1332 = vmax.f32 %v744, 0.0
      %v1333 = vmax.f32 %v745, 0.0
      %v1334 = vmax.f32 %v746, 0.0
      %v1335 = vmax.f32 %v747, 0.0
      %v1336 = vmax.f32 %v748, 0.0
      %v1337 = vmax.f32 %v749, 0.0
      %v1338 = vmax.f32 %v750, 0.0
      %v1339 = vmax.f32 %v751, 0.0
      %v1340 = vmax.f32 %v752, 0.0
      %v1341 = vmax.f32 %v753, 0.0
      %v1342 = vmax.f32 %v754, 0.0
      %v1343 = vmax.f32 %v755, 0.0
      %v1344 = vmax.f32 %v756, 0.0
      %v1345 = vmax.f32 %v757, 0.0
      %v1346 = vmax.f32 %v758, 0.0
      %v1347 = vmax.f32 %v759, 0.0
      %v1348 = vmax.f32 %v760, 0.0
      %v1349 = vmax.f32 %v761, 0.0
      %v1350 = vmax.f32 %v762, 0.0
      %v1351 = vmax.f32 %v763, 0.0
      %v1352 = vmax.f32 %v764, 0.0
      %v1353 = vmax.f32 %v765, 0.0
      %v1354 = vmax.f32 %v766, 0.0
      %v1355 = vmax.f32 %v767, 0.0
      %v1356 = vmax.f32 %v768, 0.0
      %v1357 = vmax.f32 %v769, 0.0
      %v1358 = vmax.f32 %v770, 0.0
      %v1359 = vmax.f32 %v771, 0.0
      %v1360 = vmax.f32 %v772, 0.0
      %v1361 = vmax.f32 %v773, 0.0
      %v1362 = vmax.f32 %v774, 0.0
      %v1363 = vmax.f32 %v775, 0.0
      %v1364 = vmax.f32 %v776, 0.0
      %v1365 = vmax.f32 %v777, 0.0
      %v1366 = vmax.f32 %v778, 0.0
      %v1367 = vmax.f32 %v779, 0.0
      %v1368 = vmax.f32 %v780, 0.0
      %v1369 = vmax.f32 %v781, 0.0
      %v1370 = vld [vmem:[%s181] sm:$0xff]
      %v1371 = vld [vmem:[%s181 + $0x8] sm:$0xff]
      %v1372 = vld [vmem:[%s181 + $0x10] sm:$0xff]
      %v1373 = vld [vmem:[%s181 + $0x18] sm:$0xff]
      %v1374 = vld [vmem:[%s181 + $0x20] sm:$0xff]
      %v1375 = vld [vmem:[%s181 + $0x28] sm:$0xff]
      %v1376 = vld [vmem:[%s181 + $0x30] sm:$0xff]
      %v1377 = vld [vmem:[%s181 + $0x38] sm:$0xff]
      %v1378 = vld [vmem:[%s181 + $0x40] sm:$0xff]
      %v1379 = vld [vmem:[%s181 + $0x48] sm:$0xff]
      %v1380 = vld [vmem:[%s181 + $0x50] sm:$0xff]
      %v1381 = vld [vmem:[%s181 + $0x58] sm:$0xff]
      %v1382 = vld [vmem:[%s181 + $0x60] sm:$0xff]
      %v1383 = vld [vmem:[%s181 + $0x68] sm:$0xff]
      %v1384 = vld [vmem:[%s181 + $0x70] sm:$0xff]
      %v1385 = vld [vmem:[%s181 + $0x78] sm:$0xff]
      %v1386 = vld [vmem:[%s181 + $0x80] sm:$0xff]
      %v1387 = vld [vmem:[%s181 + $0x88] sm:$0xff]
      %v1388 = vld [vmem:[%s181 + $0x90] sm:$0xff]
      %v1389 = vld [vmem:[%s181 + $0x98] sm:$0xff]
      %v1390 = vld [vmem:[%s181 + $0xa0] sm:$0xff]
      %v1391 = vld [vmem:[%s181 + $0xa8] sm:$0xff]
      %v1392 = vld [vmem:[%s181 + $0xb0] sm:$0xff]
      %v1393 = vld [vmem:[%s181 + $0xb8] sm:$0xff]
      %v1394 = vld [vmem:[%s181 + $0xc0] sm:$0xff]
      %v1395 = vld [vmem:[%s181 + $0xc8] sm:$0xff]
      %v1396 = vld [vmem:[%s181 + $0xd0] sm:$0xff]
      %v1397 = vld [vmem:[%s181 + $0xd8] sm:$0xff]
      %v1398 = vld [vmem:[%s181 + $0xe0] sm:$0xff]
      %v1399 = vld [vmem:[%s181 + $0xe8] sm:$0xff]
      %v1400 = vld [vmem:[%s181 + $0xf0] sm:$0xff]
      %v1401 = vld [vmem:[%s181 + $0xf8] sm:$0xff]
      %v1402 = vld [vmem:[%s181 + $0x100] sm:$0xff]
      %v1403 = vld [vmem:[%s181 + $0x108] sm:$0xff]
      %v1404 = vld [vmem:[%s181 + $0x110] sm:$0xff]
      %v1405 = vld [vmem:[%s181 + $0x118] sm:$0xff]
      %v1406 = vld [vmem:[%s181 + $0x120] sm:$0xff]
      %v1407 = vld [vmem:[%s181 + $0x128] sm:$0xff]
      %v1408 = vld [vmem:[%s181 + $0x130] sm:$0xff]
      %v1409 = vld [vmem:[%s181 + $0x138] sm:$0xff]
      %v1410 = vld [vmem:[%s181 + $0x140] sm:$0xff]
      %v1411 = vld [vmem:[%s181 + $0x148] sm:$0xff]
      %v1412 = vld [vmem:[%s181 + $0x150] sm:$0xff]
      %v1413 = vld [vmem:[%s181 + $0x158] sm:$0xff]
      %v1414 = vld [vmem:[%s181 + $0x160] sm:$0xff]
      %v1415 = vld [vmem:[%s181 + $0x168] sm:$0xff]
      %v1416 = vld [vmem:[%s181 + $0x170] sm:$0xff]
      %v1417 = vld [vmem:[%s181 + $0x178] sm:$0xff]
      %v1418 = vld [vmem:[%s181 + $0x180] sm:$0xff]
      %v1419 = vld [vmem:[%s181 + $0x188] sm:$0xff]
      %v1420 = vld [vmem:[%s181 + $0x190] sm:$0xff]
      %v1421 = vld [vmem:[%s181 + $0x198] sm:$0xff]
      %v1422 = vld [vmem:[%s181 + $0x1a0] sm:$0xff]
      %v1423 = vld [vmem:[%s181 + $0x1a8] sm:$0xff]
      %v1424 = vld [vmem:[%s181 + $0x1b0] sm:$0xff]
      %v1425 = vld [vmem:[%s181 + $0x1b8] sm:$0xff]
      %v1426 = vld [vmem:[%s181 + $0x1c0] sm:$0xff]
      %v1427 = vld [vmem:[%s181 + $0x1c8] sm:$0xff]
      %v1428 = vld [vmem:[%s181 + $0x1d0] sm:$0xff]
      %v1429 = vld [vmem:[%s181 + $0x1d8] sm:$0xff]
      %v1430 = vld [vmem:[%s181 + $0x1e0] sm:$0xff]
      %v1431 = vld [vmem:[%s181 + $0x1e8] sm:$0xff]
      %v1432 = vld [vmem:[%s181 + $0x1f0] sm:$0xff]
      %v1433 = vld [vmem:[%s181 + $0x1f8] sm:$0xff]
      %v1434 = vld [vmem:[%s181 + $0x200] sm:$0xff]
      %v1435 = vld [vmem:[%s181 + $0x208] sm:$0xff]
      %v1436 = vld [vmem:[%s181 + $0x210] sm:$0xff]
      %v1437 = vld [vmem:[%s181 + $0x218] sm:$0xff]
      %v1438 = vld [vmem:[%s181 + $0x220] sm:$0xff]
      %v1439 = vld [vmem:[%s181 + $0x228] sm:$0xff]
      %v1440 = vld [vmem:[%s181 + $0x230] sm:$0xff]
      %v1441 = vld [vmem:[%s181 + $0x238] sm:$0xff]
      %v1442 = vld [vmem:[%s181 + $0x240] sm:$0xff]
      %v1443 = vld [vmem:[%s181 + $0x248] sm:$0xff]
      %v1444 = vld [vmem:[%s181 + $0x250] sm:$0xff]
      %v1445 = vld [vmem:[%s181 + $0x258] sm:$0xff]
      %v1446 = vld [vmem:[%s181 + $0x260] sm:$0xff]
      %v1447 = vld [vmem:[%s181 + $0x268] sm:$0xff]
      %v1448 = vld [vmem:[%s181 + $0x270] sm:$0xff]
      %v1449 = vld [vmem:[%s181 + $0x278] sm:$0xff]
      %v1450 = vld [vmem:[%s181 + $0x280] sm:$0xff]
      %v1451 = vld [vmem:[%s181 + $0x288] sm:$0xff]
      %v1452 = vld [vmem:[%s181 + $0x290] sm:$0xff]
      %v1453 = vld [vmem:[%s181 + $0x298] sm:$0xff]
      %v1454 = vld [vmem:[%s181 + $0x2a0] sm:$0xff]
      %v1455 = vld [vmem:[%s181 + $0x2a8] sm:$0xff]
      %v1456 = vld [vmem:[%s181 + $0x2b0] sm:$0xff]
      %v1457 = vld [vmem:[%s181 + $0x2b8] sm:$0xff]
      %v1458 = vld [vmem:[%s181 + $0x2c0] sm:$0xff]
      %v1459 = vld [vmem:[%s181 + $0x2c8] sm:$0xff]
      %v1460 = vld [vmem:[%s181 + $0x2d0] sm:$0xff]
      %v1461 = vld [vmem:[%s181 + $0x2d8] sm:$0xff]
      %v1462 = vld [vmem:[%s181 + $0x2e0] sm:$0xff]
      %v1463 = vld [vmem:[%s181 + $0x2e8] sm:$0xff]
      %v1464 = vld [vmem:[%s181 + $0x2f0] sm:$0xff]
      %v1465 = vld [vmem:[%s181 + $0x2f8] sm:$0xff]
      %v1466 = vld [vmem:[%s181 + $0x300] sm:$0xff]
      %v1467 = vld [vmem:[%s181 + $0x308] sm:$0xff]
      %v1468 = vld [vmem:[%s181 + $0x310] sm:$0xff]
      %v1469 = vld [vmem:[%s181 + $0x318] sm:$0xff]
      %v1470 = vld [vmem:[%s181 + $0x320] sm:$0xff]
      %v1471 = vld [vmem:[%s181 + $0x328] sm:$0xff]
      %v1472 = vld [vmem:[%s181 + $0x330] sm:$0xff]
      %v1473 = vld [vmem:[%s181 + $0x338] sm:$0xff]
      %v1474 = vld [vmem:[%s181 + $0x340] sm:$0xff]
      %v1475 = vld [vmem:[%s181 + $0x348] sm:$0xff]
      %v1476 = vld [vmem:[%s181 + $0x350] sm:$0xff]
      %v1477 = vld [vmem:[%s181 + $0x358] sm:$0xff]
      %v1478 = vld [vmem:[%s181 + $0x360] sm:$0xff]
      %v1479 = vld [vmem:[%s181 + $0x368] sm:$0xff]
      %v1480 = vld [vmem:[%s181 + $0x370] sm:$0xff]
      %v1481 = vld [vmem:[%s181 + $0x378] sm:$0xff]
      %v1482 = vld [vmem:[%s181 + $0x380] sm:$0xff]
      %v1483 = vld [vmem:[%s181 + $0x388] sm:$0xff]
      %v1484 = vld [vmem:[%s181 + $0x390] sm:$0xff]
      %v1485 = vld [vmem:[%s181 + $0x398] sm:$0xff]
      %v1486 = vld [vmem:[%s181 + $0x3a0] sm:$0xff]
      %v1487 = vld [vmem:[%s181 + $0x3a8] sm:$0xff]
      %v1488 = vld [vmem:[%s181 + $0x3b0] sm:$0xff]
      %v1489 = vld [vmem:[%s181 + $0x3b8] sm:$0xff]
      %v1490 = vld [vmem:[%s181 + $0x3c0] sm:$0xff]
      %v1491 = vld [vmem:[%s181 + $0x3c8] sm:$0xff]
      %v1492 = vld [vmem:[%s181 + $0x3d0] sm:$0xff]
      %v1493 = vld [vmem:[%s181 + $0x3d8] sm:$0xff]
      %v1494 = vld [vmem:[%s181 + $0x3e0] sm:$0xff]
      %v1495 = vld [vmem:[%s181 + $0x3e8] sm:$0xff]
      %v1496 = vld [vmem:[%s181 + $0x3f0] sm:$0xff]
      %v1497 = vld [vmem:[%s181 + $0x3f8] sm:$0xff]
      %v1498 = vld [vmem:[%s181 + $0x400] sm:$0xff]
      %v1499 = vld [vmem:[%s181 + $0x408] sm:$0xff]
      %v1500 = vld [vmem:[%s181 + $0x410] sm:$0xff]
      %v1501 = vld [vmem:[%s181 + $0x418] sm:$0xff]
      %v1502 = vld [vmem:[%s181 + $0x420] sm:$0xff]
      %v1503 = vld [vmem:[%s181 + $0x428] sm:$0xff]
      %v1504 = vld [vmem:[%s181 + $0x430] sm:$0xff]
      %v1505 = vld [vmem:[%s181 + $0x438] sm:$0xff]
      %v1506 = vld [vmem:[%s181 + $0x440] sm:$0xff]
      %v1507 = vld [vmem:[%s181 + $0x448] sm:$0xff]
      %v1508 = vld [vmem:[%s181 + $0x450] sm:$0xff]
      %v1509 = vld [vmem:[%s181 + $0x458] sm:$0xff]
      %v1510 = vld [vmem:[%s181 + $0x460] sm:$0xff]
      %v1511 = vld [vmem:[%s181 + $0x468] sm:$0xff]
      %v1512 = vld [vmem:[%s181 + $0x470] sm:$0xff]
      %v1513 = vld [vmem:[%s181 + $0x478] sm:$0xff]
      %v1514 = vld [vmem:[%s181 + $0x480] sm:$0xff]
      %v1515 = vld [vmem:[%s181 + $0x488] sm:$0xff]
      %v1516 = vld [vmem:[%s181 + $0x490] sm:$0xff]
      %v1517 = vld [vmem:[%s181 + $0x498] sm:$0xff]
      %v1518 = vld [vmem:[%s181 + $0x4a0] sm:$0xff]
      %v1519 = vld [vmem:[%s181 + $0x4a8] sm:$0xff]
      %v1520 = vld [vmem:[%s181 + $0x4b0] sm:$0xff]
      %v1521 = vld [vmem:[%s181 + $0x4b8] sm:$0xff]
      %v1522 = vld [vmem:[%s181 + $0x4c0] sm:$0xff]
      %v1523 = vld [vmem:[%s181 + $0x4c8] sm:$0xff]
      %v1524 = vld [vmem:[%s181 + $0x4d0] sm:$0xff]
      %v1525 = vld [vmem:[%s181 + $0x4d8] sm:$0xff]
      %v1526 = vld [vmem:[%s181 + $0x4e0] sm:$0xff]
      %v1527 = vld [vmem:[%s181 + $0x4e8] sm:$0xff]
      %v1528 = vld [vmem:[%s181 + $0x4f0] sm:$0xff]
      %v1529 = vld [vmem:[%s181 + $0x4f8] sm:$0xff]
      %v1530 = vld [vmem:[%s181 + $0x500] sm:$0xff]
      %v1531 = vld [vmem:[%s181 + $0x508] sm:$0xff]
      %v1532 = vld [vmem:[%s181 + $0x510] sm:$0xff]
      %v1533 = vld [vmem:[%s181 + $0x518] sm:$0xff]
      %v1534 = vld [vmem:[%s181 + $0x520] sm:$0xff]
      %v1535 = vld [vmem:[%s181 + $0x528] sm:$0xff]
      %v1536 = vld [vmem:[%s181 + $0x530] sm:$0xff]
      %v1537 = vld [vmem:[%s181 + $0x538] sm:$0xff]
      %v1538 = vld [vmem:[%s181 + $0x540] sm:$0xff]
      %v1539 = vld [vmem:[%s181 + $0x548] sm:$0xff]
      %v1540 = vld [vmem:[%s181 + $0x550] sm:$0xff]
      %v1541 = vld [vmem:[%s181 + $0x558] sm:$0xff]
      %v1542 = vld [vmem:[%s181 + $0x560] sm:$0xff]
      %v1543 = vld [vmem:[%s181 + $0x568] sm:$0xff]
      %v1544 = vld [vmem:[%s181 + $0x570] sm:$0xff]
      %v1545 = vld [vmem:[%s181 + $0x578] sm:$0xff]
      %v1546 = vld [vmem:[%s181 + $0x580] sm:$0xff]
      %v1547 = vld [vmem:[%s181 + $0x588] sm:$0xff]
      %v1548 = vld [vmem:[%s181 + $0x590] sm:$0xff]
      %v1549 = vld [vmem:[%s181 + $0x598] sm:$0xff]
      %v1550 = vld [vmem:[%s181 + $0x5a0] sm:$0xff]
      %v1551 = vld [vmem:[%s181 + $0x5a8] sm:$0xff]
      %v1552 = vld [vmem:[%s181 + $0x5b0] sm:$0xff]
      %v1553 = vld [vmem:[%s181 + $0x5b8] sm:$0xff]
      %v1554 = vld [vmem:[%s181 + $0x5c0] sm:$0xff]
      %v1555 = vld [vmem:[%s181 + $0x5c8] sm:$0xff]
      %v1556 = vld [vmem:[%s181 + $0x5d0] sm:$0xff]
      %v1557 = vld [vmem:[%s181 + $0x5d8] sm:$0xff]
      %v1558 = vld [vmem:[%s181 + $0x5e0] sm:$0xff]
      %v1559 = vld [vmem:[%s181 + $0x5e8] sm:$0xff]
      %v1560 = vld [vmem:[%s181 + $0x5f0] sm:$0xff]
      %v1561 = vld [vmem:[%s181 + $0x5f8] sm:$0xff]
      %v1562 = vld [vmem:[%s181 + $0x600] sm:$0xff]
      %v1563 = vld [vmem:[%s181 + $0x608] sm:$0xff]
      %v1564 = vld [vmem:[%s181 + $0x610] sm:$0xff]
      %v1565 = vld [vmem:[%s181 + $0x618] sm:$0xff]
      %v1566 = vld [vmem:[%s181 + $0x620] sm:$0xff]
      %v1567 = vld [vmem:[%s181 + $0x628] sm:$0xff]
      %v1568 = vld [vmem:[%s181 + $0x630] sm:$0xff]
      %v1569 = vld [vmem:[%s181 + $0x638] sm:$0xff]
      %v1570 = vld [vmem:[%s181 + $0x640] sm:$0xff]
      %v1571 = vld [vmem:[%s181 + $0x648] sm:$0xff]
      %v1572 = vld [vmem:[%s181 + $0x650] sm:$0xff]
      %v1573 = vld [vmem:[%s181 + $0x658] sm:$0xff]
      %v1574 = vld [vmem:[%s181 + $0x660] sm:$0xff]
      %v1575 = vld [vmem:[%s181 + $0x668] sm:$0xff]
      %v1576 = vld [vmem:[%s181 + $0x670] sm:$0xff]
      %v1577 = vld [vmem:[%s181 + $0x678] sm:$0xff]
      %v1578 = vld [vmem:[%s181 + $0x680] sm:$0xff]
      %v1579 = vld [vmem:[%s181 + $0x688] sm:$0xff]
      %v1580 = vld [vmem:[%s181 + $0x690] sm:$0xff]
      %v1581 = vld [vmem:[%s181 + $0x698] sm:$0xff]
      %v1582 = vld [vmem:[%s181 + $0x6a0] sm:$0xff]
      %v1583 = vld [vmem:[%s181 + $0x6a8] sm:$0xff]
      %v1584 = vld [vmem:[%s181 + $0x6b0] sm:$0xff]
      %v1585 = vld [vmem:[%s181 + $0x6b8] sm:$0xff]
      %v1586 = vld [vmem:[%s181 + $0x6c0] sm:$0xff]
      %v1587 = vld [vmem:[%s181 + $0x6c8] sm:$0xff]
      %v1588 = vld [vmem:[%s181 + $0x6d0] sm:$0xff]
      %v1589 = vld [vmem:[%s181 + $0x6d8] sm:$0xff]
      %v1590 = vld [vmem:[%s181 + $0x6e0] sm:$0xff]
      %v1591 = vld [vmem:[%s181 + $0x6e8] sm:$0xff]
      %v1592 = vld [vmem:[%s181 + $0x6f0] sm:$0xff]
      %v1593 = vld [vmem:[%s181 + $0x6f8] sm:$0xff]
      %v1594 = vld [vmem:[%s181 + $0x700] sm:$0xff]
      %v1595 = vld [vmem:[%s181 + $0x708] sm:$0xff]
      %v1596 = vld [vmem:[%s181 + $0x710] sm:$0xff]
      %v1597 = vld [vmem:[%s181 + $0x718] sm:$0xff]
      %v1598 = vld [vmem:[%s181 + $0x720] sm:$0xff]
      %v1599 = vld [vmem:[%s181 + $0x728] sm:$0xff]
      %v1600 = vld [vmem:[%s181 + $0x730] sm:$0xff]
      %v1601 = vld [vmem:[%s181 + $0x738] sm:$0xff]
      %v1602 = vld [vmem:[%s181 + $0x740] sm:$0xff]
      %v1603 = vld [vmem:[%s181 + $0x748] sm:$0xff]
      %v1604 = vld [vmem:[%s181 + $0x750] sm:$0xff]
      %v1605 = vld [vmem:[%s181 + $0x758] sm:$0xff]
      %v1606 = vld [vmem:[%s181 + $0x760] sm:$0xff]
      %v1607 = vld [vmem:[%s181 + $0x768] sm:$0xff]
      %v1608 = vld [vmem:[%s181 + $0x770] sm:$0xff]
      %v1609 = vld [vmem:[%s181 + $0x778] sm:$0xff]
      %v1610 = vld [vmem:[%s181 + $0x780] sm:$0xff]
      %v1611 = vld [vmem:[%s181 + $0x788] sm:$0xff]
      %v1612 = vld [vmem:[%s181 + $0x790] sm:$0xff]
      %v1613 = vld [vmem:[%s181 + $0x798] sm:$0xff]
      %v1614 = vld [vmem:[%s181 + $0x7a0] sm:$0xff]
      %v1615 = vld [vmem:[%s181 + $0x7a8] sm:$0xff]
      %v1616 = vld [vmem:[%s181 + $0x7b0] sm:$0xff]
      %v1617 = vld [vmem:[%s181 + $0x7b8] sm:$0xff]
      %v1618 = vld [vmem:[%s181 + $0x7c0] sm:$0xff]
      %v1619 = vld [vmem:[%s181 + $0x7c8] sm:$0xff]
      %v1620 = vld [vmem:[%s181 + $0x7d0] sm:$0xff]
      %v1621 = vld [vmem:[%s181 + $0x7d8] sm:$0xff]
      %vm1622 = vcmask 261120
      %v1624 = vsel %vm1622, %v1375, 0
      %v1627 = vsel %vm1622, %v1381, 0
      %v1630 = vsel %vm1622, %v1387, 0
      %v1633 = vsel %vm1622, %v1393, 0
      %v1636 = vsel %vm1622, %v1399, 0
      %v1639 = vsel %vm1622, %v1405, 0
      %v1642 = vsel %vm1622, %v1411, 0
      %v1645 = vsel %vm1622, %v1417, 0
      %v1648 = vsel %vm1622, %v1423, 0
      %v1651 = vsel %vm1622, %v1429, 0
      %v1654 = vsel %vm1622, %v1435, 0
      %v1657 = vsel %vm1622, %v1441, 0
      %v1660 = vsel %vm1622, %v1447, 0
      %v1663 = vsel %vm1622, %v1453, 0
      %v1666 = vsel %vm1622, %v1459, 0
      %v1669 = vsel %vm1622, %v1465, 0
      %v1672 = vsel %vm1622, %v1471, 0
      %v1675 = vsel %vm1622, %v1477, 0
      %v1678 = vsel %vm1622, %v1483, 0
      %v1681 = vsel %vm1622, %v1489, 0
      %v1684 = vsel %vm1622, %v1495, 0
      %v1687 = vsel %vm1622, %v1501, 0
      %v1690 = vsel %vm1622, %v1507, 0
      %v1693 = vsel %vm1622, %v1513, 0
      %v1696 = vsel %vm1622, %v1519, 0
      %v1699 = vsel %vm1622, %v1525, 0
      %v1702 = vsel %vm1622, %v1531, 0
      %v1705 = vsel %vm1622, %v1537, 0
      %v1708 = vsel %vm1622, %v1543, 0
      %v1711 = vsel %vm1622, %v1549, 0
      %v1714 = vsel %vm1622, %v1555, 0
      %v1717 = vsel %vm1622, %v1561, 0
      %v1720 = vsel %vm1622, %v1567, 0
      %v1723 = vsel %vm1622, %v1573, 0
      %v1726 = vsel %vm1622, %v1579, 0
      %v1729 = vsel %vm1622, %v1585, 0
      %v1732 = vsel %vm1622, %v1591, 0
      %v1735 = vsel %vm1622, %v1597, 0
      %v1738 = vsel %vm1622, %v1603, 0
      %v1741 = vsel %vm1622, %v1609, 0
      %v1744 = vsel %vm1622, %v1615, 0
      %v1747 = vsel %vm1622, %v1621, 0
      %1749 = vmatprep.subr.mxu0 %v888
      %1750 = vmatpush1.msra.mxu0 %v887
      %1751 = vmatprep.subr.mxu0 %v881
      %1752 = vmatpush1.msra.mxu0 %v880
      %1753 = vmatprep.subr.mxu0 %v874
      %1754 = vmatpush1.msra.mxu0 %v873
      %1755 = vmatprep.subr.mxu0 %v867
      %1756 = vmatpush1.msra.mxu0 %v866
      %1757 = vmatprep.subr.mxu0 %v860
      %1758 = vmatpush1.msra.mxu0 %v859
      %1759 = vmatprep.subr.mxu0 %v853
      %1760 = vmatpush1.msra.mxu0 %v852
      %1761 = vmatprep.subr.mxu0 %v846
      %1762 = vmatpush1.msra.mxu0 %v845
      %1763 = vmatprep.subr.mxu0 %v839
      %1764 = vmatpush1.msra.mxu0 %v838
      %1765 = vmatprep.subr.mxu0 %v832
      %1766 = vmatpush1.msra.mxu0 %v831
      %1767 = vmatprep.subr.mxu0 %v825
      %1768 = vmatpush1.msra.mxu0 %v824
      %1769 = vmatprep.subr.mxu0 %v818
      %1770 = vmatpush1.msra.mxu0 %v817
      %1771 = vmatprep.subr.mxu0 %v811
      %1772 = vmatpush1.msra.mxu0 %v810
      %1773 = vmatprep.subr.mxu0 %v804
      %1774 = vmatpush1.msra.mxu0 %v803
      %1775 = vmatprep.subr.mxu0 %v797
      %1776 = vmatpush1.msra.mxu0 %v796
      %1777 = vmatprep.subr.mxu0 %v790
      %1778 = vmatpush1.msra.mxu0 %v789
      %1779 = vmatprep.subr.mxu0 %v783
      %1780 = vmatpush1.msra.mxu0 %v782
      %1781 = vmatprep.subr.mxu0 %v1000
      %1782 = vmatpush2.msra.mxu0 %v999
      %1783 = vmatprep.subr.mxu0 %v993
      %1784 = vmatpush2.msra.mxu0 %v992
      %1785 = vmatprep.subr.mxu0 %v986
      %1786 = vmatpush2.msra.mxu0 %v985
      %1787 = vmatprep.subr.mxu0 %v979
      %1788 = vmatpush2.msra.mxu0 %v978
      %1789 = vmatprep.subr.mxu0 %v972
      %1790 = vmatpush2.msra.mxu0 %v971
      %1791 = vmatprep.subr.mxu0 %v965
      %1792 = vmatpush2.msra.mxu0 %v964
      %1793 = vmatprep.subr.mxu0 %v958
      %1794 = vmatpush2.msra.mxu0 %v957
      %1795 = vmatprep.subr.mxu0 %v951
      %1796 = vmatpush2.msra.mxu0 %v950
      %1797 = vmatprep.subr.mxu0 %v944
      %1798 = vmatpush2.msra.mxu0 %v943
      %1799 = vmatprep.subr.mxu0 %v937
      %1800 = vmatpush2.msra.mxu0 %v936
      %1801 = vmatprep.subr.mxu0 %v930
      %1802 = vmatpush2.msra.mxu0 %v929
      %1803 = vmatprep.subr.mxu0 %v923
      %1804 = vmatpush2.msra.mxu0 %v922
      %1805 = vmatprep.subr.mxu0 %v916
      %1806 = vmatpush2.msra.mxu0 %v915
      %1807 = vmatprep.subr.mxu0 %v909
      %1808 = vmatpush2.msra.mxu0 %v908
      %1809 = vmatprep.subr.mxu0 %v902
      %1810 = vmatpush2.msra.mxu0 %v901
      %1811 = vmatprep.subr.mxu0 %v895
      %1812 = vmatpush2.msra.mxu0 %v894
      %1813 = vmatprep.mubr.f32.mxu0 %v1371
      %1814 = vmatmul.mubr.f32.gmra.mxu0 %v1370
      %v1815 = vpop.f32.mrf.mxu0
      %v1816 = vadd.f32 0.0, %v1815
      %v1817 = vpop.f32.mrf.mxu0
      %v1818 = vadd.f32 0.0, %v1817
      %1819 = vmatprep.mubr.f32.mxu0 %v1377
      %1820 = vmatmul.mubr.f32.gmra.mxu0 %v1376
      %v1821 = vpop.f32.mrf.mxu0
      %v1822 = vadd.f32 0.0, %v1821
      %v1823 = vpop.f32.mrf.mxu0
      %v1824 = vadd.f32 0.0, %v1823
      %1825 = vmatprep.mubr.f32.mxu0 %v1383
      %1826 = vmatmul.mubr.f32.gmra.mxu0 %v1382
      %v1827 = vpop.f32.mrf.mxu0
      %v1828 = vadd.f32 0.0, %v1827
      %v1829 = vpop.f32.mrf.mxu0
      %v1830 = vadd.f32 0.0, %v1829
      %1831 = vmatprep.mubr.f32.mxu0 %v1389
      %1832 = vmatmul.mubr.f32.gmra.mxu0 %v1388
      %v1833 = vpop.f32.mrf.mxu0
      %v1834 = vadd.f32 0.0, %v1833
      %v1835 = vpop.f32.mrf.mxu0
      %v1836 = vadd.f32 0.0, %v1835
      %1837 = vmatprep.mubr.f32.mxu0 %v1395
      %1838 = vmatmul.mubr.f32.gmra.mxu0 %v1394
      %v1839 = vpop.f32.mrf.mxu0
      %v1840 = vadd.f32 0.0, %v1839
      %v1841 = vpop.f32.mrf.mxu0
      %v1842 = vadd.f32 0.0, %v1841
      %1843 = vmatprep.mubr.f32.mxu0 %v1401
      %1844 = vmatmul.mubr.f32.gmra.mxu0 %v1400
      %v1845 = vpop.f32.mrf.mxu0
      %v1846 = vadd.f32 0.0, %v1845
      %v1847 = vpop.f32.mrf.mxu0
      %v1848 = vadd.f32 0.0, %v1847
      %1849 = vmatprep.mubr.f32.mxu0 %v1407
      %1850 = vmatmul.mubr.f32.gmra.mxu0 %v1406
      %v1851 = vpop.f32.mrf.mxu0
      %v1852 = vadd.f32 0.0, %v1851
      %v1853 = vpop.f32.mrf.mxu0
      %v1854 = vadd.f32 0.0, %v1853
      %1855 = vmatprep.mubr.f32.mxu0 %v1413
      %1856 = vmatmul.mubr.f32.gmra.mxu0 %v1412
      %v1857 = vpop.f32.mrf.mxu0
      %v1858 = vadd.f32 0.0, %v1857
      %v1859 = vpop.f32.mrf.mxu0
      %v1860 = vadd.f32 0.0, %v1859
      %1861 = vmatprep.mubr.f32.mxu0 %v1419
      %1862 = vmatmul.mubr.f32.gmra.mxu0 %v1418
      %v1863 = vpop.f32.mrf.mxu0
      %v1864 = vadd.f32 0.0, %v1863
      %v1865 = vpop.f32.mrf.mxu0
      %v1866 = vadd.f32 0.0, %v1865
      %1867 = vmatprep.mubr.f32.mxu0 %v1425
      %1868 = vmatmul.mubr.f32.gmra.mxu0 %v1424
      %v1869 = vpop.f32.mrf.mxu0
      %v1870 = vadd.f32 0.0, %v1869
      %v1871 = vpop.f32.mrf.mxu0
      %v1872 = vadd.f32 0.0, %v1871
      %1873 = vmatprep.mubr.f32.mxu0 %v1431
      %1874 = vmatmul.mubr.f32.gmra.mxu0 %v1430
      %v1875 = vpop.f32.mrf.mxu0
      %v1876 = vadd.f32 0.0, %v1875
      %v1877 = vpop.f32.mrf.mxu0
      %v1878 = vadd.f32 0.0, %v1877
      %1879 = vmatprep.mubr.f32.mxu0 %v1437
      %1880 = vmatmul.mubr.f32.gmra.mxu0 %v1436
      %v1881 = vpop.f32.mrf.mxu0
      %v1882 = vadd.f32 0.0, %v1881
      %v1883 = vpop.f32.mrf.mxu0
      %v1884 = vadd.f32 0.0, %v1883
      %1885 = vmatprep.mubr.f32.mxu0 %v1443
      %1886 = vmatmul.mubr.f32.gmra.mxu0 %v1442
      %v1887 = vpop.f32.mrf.mxu0
      %v1888 = vadd.f32 0.0, %v1887
      %v1889 = vpop.f32.mrf.mxu0
      %v1890 = vadd.f32 0.0, %v1889
      %1891 = vmatprep.mubr.f32.mxu0 %v1449
      %1892 = vmatmul.mubr.f32.gmra.mxu0 %v1448
      %v1893 = vpop.f32.mrf.mxu0
      %v1894 = vadd.f32 0.0, %v1893
      %v1895 = vpop.f32.mrf.mxu0
      %v1896 = vadd.f32 0.0, %v1895
      %1897 = vmatprep.mubr.f32.mxu0 %v1455
      %1898 = vmatmul.mubr.f32.gmra.mxu0 %v1454
      %v1899 = vpop.f32.mrf.mxu0
      %v1900 = vadd.f32 0.0, %v1899
      %v1901 = vpop.f32.mrf.mxu0
      %v1902 = vadd.f32 0.0, %v1901
      %1903 = vmatprep.mubr.f32.mxu0 %v1461
      %1904 = vmatmul.mubr.f32.gmra.mxu0 %v1460
      %v1905 = vpop.f32.mrf.mxu0
      %v1906 = vadd.f32 0.0, %v1905
      %v1907 = vpop.f32.mrf.mxu0
      %v1908 = vadd.f32 0.0, %v1907
      %1909 = vmatprep.mubr.f32.mxu0 %v1467
      %1910 = vmatmul.mubr.f32.gmra.mxu0 %v1466
      %v1911 = vpop.f32.mrf.mxu0
      %v1912 = vadd.f32 0.0, %v1911
      %v1913 = vpop.f32.mrf.mxu0
      %v1914 = vadd.f32 0.0, %v1913
      %1915 = vmatprep.mubr.f32.mxu0 %v1473
      %1916 = vmatmul.mubr.f32.gmra.mxu0 %v1472
      %v1917 = vpop.f32.mrf.mxu0
      %v1918 = vadd.f32 0.0, %v1917
      %v1919 = vpop.f32.mrf.mxu0
      %v1920 = vadd.f32 0.0, %v1919
      %1921 = vmatprep.mubr.f32.mxu0 %v1479
      %1922 = vmatmul.mubr.f32.gmra.mxu0 %v1478
      %v1923 = vpop.f32.mrf.mxu0
      %v1924 = vadd.f32 0.0, %v1923
      %v1925 = vpop.f32.mrf.mxu0
      %v1926 = vadd.f32 0.0, %v1925
      %1927 = vmatprep.mubr.f32.mxu0 %v1485
      %1928 = vmatmul.mubr.f32.gmra.mxu0 %v1484
      %v1929 = vpop.f32.mrf.mxu0
      %v1930 = vadd.f32 0.0, %v1929
      %v1931 = vpop.f32.mrf.mxu0
      %v1932 = vadd.f32 0.0, %v1931
      %1933 = vmatprep.mubr.f32.mxu0 %v1491
      %1934 = vmatmul.mubr.f32.gmra.mxu0 %v1490
      %v1935 = vpop.f32.mrf.mxu0
      %v1936 = vadd.f32 0.0, %v1935
      %v1937 = vpop.f32.mrf.mxu0
      %v1938 = vadd.f32 0.0, %v1937
      %1939 = vmatprep.mubr.f32.mxu0 %v1497
      %1940 = vmatmul.mubr.f32.gmra.mxu0 %v1496
      %v1941 = vpop.f32.mrf.mxu0
      %v1942 = vadd.f32 0.0, %v1941
      %v1943 = vpop.f32.mrf.mxu0
      %v1944 = vadd.f32 0.0, %v1943
      %1945 = vmatprep.mubr.f32.mxu0 %v1503
      %1946 = vmatmul.mubr.f32.gmra.mxu0 %v1502
      %v1947 = vpop.f32.mrf.mxu0
      %v1948 = vadd.f32 0.0, %v1947
      %v1949 = vpop.f32.mrf.mxu0
      %v1950 = vadd.f32 0.0, %v1949
      %1951 = vmatprep.mubr.f32.mxu0 %v1509
      %1952 = vmatmul.mubr.f32.gmra.mxu0 %v1508
      %v1953 = vpop.f32.mrf.mxu0
      %v1954 = vadd.f32 0.0, %v1953
      %v1955 = vpop.f32.mrf.mxu0
      %v1956 = vadd.f32 0.0, %v1955
      %1957 = vmatprep.mubr.f32.mxu0 %v1515
      %1958 = vmatmul.mubr.f32.gmra.mxu0 %v1514
      %v1959 = vpop.f32.mrf.mxu0
      %v1960 = vadd.f32 0.0, %v1959
      %v1961 = vpop.f32.mrf.mxu0
      %v1962 = vadd.f32 0.0, %v1961
      %1963 = vmatprep.mubr.f32.mxu0 %v1521
      %1964 = vmatmul.mubr.f32.gmra.mxu0 %v1520
      %v1965 = vpop.f32.mrf.mxu0
      %v1966 = vadd.f32 0.0, %v1965
      %v1967 = vpop.f32.mrf.mxu0
      %v1968 = vadd.f32 0.0, %v1967
      %1969 = vmatprep.mubr.f32.mxu0 %v1527
      %1970 = vmatmul.mubr.f32.gmra.mxu0 %v1526
      %v1971 = vpop.f32.mrf.mxu0
      %v1972 = vadd.f32 0.0, %v1971
      %v1973 = vpop.f32.mrf.mxu0
      %v1974 = vadd.f32 0.0, %v1973
      %1975 = vmatprep.mubr.f32.mxu0 %v1533
      %1976 = vmatmul.mubr.f32.gmra.mxu0 %v1532
      %v1977 = vpop.f32.mrf.mxu0
      %v1978 = vadd.f32 0.0, %v1977
      %v1979 = vpop.f32.mrf.mxu0
      %v1980 = vadd.f32 0.0, %v1979
      %1981 = vmatprep.mubr.f32.mxu0 %v1539
      %1982 = vmatmul.mubr.f32.gmra.mxu0 %v1538
      %v1983 = vpop.f32.mrf.mxu0
      %v1984 = vadd.f32 0.0, %v1983
      %v1985 = vpop.f32.mrf.mxu0
      %v1986 = vadd.f32 0.0, %v1985
      %1987 = vmatprep.mubr.f32.mxu0 %v1545
      %1988 = vmatmul.mubr.f32.gmra.mxu0 %v1544
      %v1989 = vpop.f32.mrf.mxu0
      %v1990 = vadd.f32 0.0, %v1989
      %v1991 = vpop.f32.mrf.mxu0
      %v1992 = vadd.f32 0.0, %v1991
      %1993 = vmatprep.mubr.f32.mxu0 %v1551
      %1994 = vmatmul.mubr.f32.gmra.mxu0 %v1550
      %v1995 = vpop.f32.mrf.mxu0
      %v1996 = vadd.f32 0.0, %v1995
      %v1997 = vpop.f32.mrf.mxu0
      %v1998 = vadd.f32 0.0, %v1997
      %1999 = vmatprep.mubr.f32.mxu0 %v1557
      %2000 = vmatmul.mubr.f32.gmra.mxu0 %v1556
      %v2001 = vpop.f32.mrf.mxu0
      %v2002 = vadd.f32 0.0, %v2001
      %v2003 = vpop.f32.mrf.mxu0
      %v2004 = vadd.f32 0.0, %v2003
      %2005 = vmatprep.mubr.f32.mxu0 %v1563
      %2006 = vmatmul.mubr.f32.gmra.mxu0 %v1562
      %v2007 = vpop.f32.mrf.mxu0
      %v2008 = vadd.f32 0.0, %v2007
      %v2009 = vpop.f32.mrf.mxu0
      %v2010 = vadd.f32 0.0, %v2009
      %2011 = vmatprep.mubr.f32.mxu0 %v1569
      %2012 = vmatmul.mubr.f32.gmra.mxu0 %v1568
      %v2013 = vpop.f32.mrf.mxu0
      %v2014 = vadd.f32 0.0, %v2013
      %v2015 = vpop.f32.mrf.mxu0
      %v2016 = vadd.f32 0.0, %v2015
      %2017 = vmatprep.mubr.f32.mxu0 %v1575
      %2018 = vmatmul.mubr.f32.gmra.mxu0 %v1574
      %v2019 = vpop.f32.mrf.mxu0
      %v2020 = vadd.f32 0.0, %v2019
      %v2021 = vpop.f32.mrf.mxu0
      %v2022 = vadd.f32 0.0, %v2021
      %2023 = vmatprep.mubr.f32.mxu0 %v1581
      %2024 = vmatmul.mubr.f32.gmra.mxu0 %v1580
      %v2025 = vpop.f32.mrf.mxu0
      %v2026 = vadd.f32 0.0, %v2025
      %v2027 = vpop.f32.mrf.mxu0
      %v2028 = vadd.f32 0.0, %v2027
      %2029 = vmatprep.mubr.f32.mxu0 %v1587
      %2030 = vmatmul.mubr.f32.gmra.mxu0 %v1586
      %v2031 = vpop.f32.mrf.mxu0
      %v2032 = vadd.f32 0.0, %v2031
      %v2033 = vpop.f32.mrf.mxu0
      %v2034 = vadd.f32 0.0, %v2033
      %2035 = vmatprep.mubr.f32.mxu0 %v1593
      %2036 = vmatmul.mubr.f32.gmra.mxu0 %v1592
      %v2037 = vpop.f32.mrf.mxu0
      %v2038 = vadd.f32 0.0, %v2037
      %v2039 = vpop.f32.mrf.mxu0
      %v2040 = vadd.f32 0.0, %v2039
      %2041 = vmatprep.mubr.f32.mxu0 %v1599
      %2042 = vmatmul.mubr.f32.gmra.mxu0 %v1598
      %v2043 = vpop.f32.mrf.mxu0
      %v2044 = vadd.f32 0.0, %v2043
      %v2045 = vpop.f32.mrf.mxu0
      %v2046 = vadd.f32 0.0, %v2045
      %2047 = vmatprep.mubr.f32.mxu0 %v1605
      %2048 = vmatmul.mubr.f32.gmra.mxu0 %v1604
      %v2049 = vpop.f32.mrf.mxu0
      %v2050 = vadd.f32 0.0, %v2049
      %v2051 = vpop.f32.mrf.mxu0
      %v2052 = vadd.f32 0.0, %v2051
      %2053 = vmatprep.mubr.f32.mxu0 %v1611
      %2054 = vmatmul.mubr.f32.gmra.mxu0 %v1610
      %v2055 = vpop.f32.mrf.mxu0
      %v2056 = vadd.f32 0.0, %v2055
      %v2057 = vpop.f32.mrf.mxu0
      %v2058 = vadd.f32 0.0, %v2057
      %2059 = vmatprep.mubr.f32.mxu0 %v1617
      %2060 = vmatmul.mubr.f32.gmra.mxu0 %v1616
      %v2061 = vpop.f32.mrf.mxu0
      %v2062 = vadd.f32 0.0, %v2061
      %v2063 = vpop.f32.mrf.mxu0
      %v2064 = vadd.f32 0.0, %v2063
      %2065 = vdwg.mxu0
      %2066 = vmatprep.subr.mxu0 %v1112
      %2067 = vmatpush1.msra.mxu0 %v1111
      %2068 = vmatprep.subr.mxu0 %v1105
      %2069 = vmatpush1.msra.mxu0 %v1104
      %2070 = vmatprep.subr.mxu0 %v1098
      %2071 = vmatpush1.msra.mxu0 %v1097
      %2072 = vmatprep.subr.mxu0 %v1091
      %2073 = vmatpush1.msra.mxu0 %v1090
      %2074 = vmatprep.subr.mxu0 %v1084
      %2075 = vmatpush1.msra.mxu0 %v1083
      %2076 = vmatprep.subr.mxu0 %v1077
      %2077 = vmatpush1.msra.mxu0 %v1076
      %2078 = vmatprep.subr.mxu0 %v1070
      %2079 = vmatpush1.msra.mxu0 %v1069
      %2080 = vmatprep.subr.mxu0 %v1063
      %2081 = vmatpush1.msra.mxu0 %v1062
      %2082 = vmatprep.subr.mxu0 %v1056
      %2083 = vmatpush1.msra.mxu0 %v1055
      %2084 = vmatprep.subr.mxu0 %v1049
      %2085 = vmatpush1.msra.mxu0 %v1048
      %2086 = vmatprep.subr.mxu0 %v1042
      %2087 = vmatpush1.msra.mxu0 %v1041
      %2088 = vmatprep.subr.mxu0 %v1035
      %2089 = vmatpush1.msra.mxu0 %v1034
      %2090 = vmatprep.subr.mxu0 %v1028
      %2091 = vmatpush1.msra.mxu0 %v1027
      %2092 = vmatprep.subr.mxu0 %v1021
      %2093 = vmatpush1.msra.mxu0 %v1020
      %2094 = vmatprep.subr.mxu0 %v1014
      %2095 = vmatpush1.msra.mxu0 %v1013
      %2096 = vmatprep.subr.mxu0 %v1007
      %2097 = vmatpush1.msra.mxu0 %v1006
      %2098 = vmatprep.subr.mxu0 %v1224
      %2099 = vmatpush2.msra.mxu0 %v1223
      %2100 = vmatprep.subr.mxu0 %v1217
      %2101 = vmatpush2.msra.mxu0 %v1216
      %2102 = vmatprep.subr.mxu0 %v1210
      %2103 = vmatpush2.msra.mxu0 %v1209
      %2104 = vmatprep.subr.mxu0 %v1203
      %2105 = vmatpush2.msra.mxu0 %v1202
      %2106 = vmatprep.subr.mxu0 %v1196
      %2107 = vmatpush2.msra.mxu0 %v1195
      %2108 = vmatprep.subr.mxu0 %v1189
      %2109 = vmatpush2.msra.mxu0 %v1188
      %2110 = vmatprep.subr.mxu0 %v1182
      %2111 = vmatpush2.msra.mxu0 %v1181
      %2112 = vmatprep.subr.mxu0 %v1175
      %2113 = vmatpush2.msra.mxu0 %v1174
      %2114 = vmatprep.subr.mxu0 %v1168
      %2115 = vmatpush2.msra.mxu0 %v1167
      %2116 = vmatprep.subr.mxu0 %v1161
      %2117 = vmatpush2.msra.mxu0 %v1160
      %2118 = vmatprep.subr.mxu0 %v1154
      %2119 = vmatpush2.msra.mxu0 %v1153
      %2120 = vmatprep.subr.mxu0 %v1147
      %2121 = vmatpush2.msra.mxu0 %v1146
      %2122 = vmatprep.subr.mxu0 %v1140
      %2123 = vmatpush2.msra.mxu0 %v1139
      %2124 = vmatprep.subr.mxu0 %v1133
      %2125 = vmatpush2.msra.mxu0 %v1132
      %2126 = vmatprep.subr.mxu0 %v1126
      %2127 = vmatpush2.msra.mxu0 %v1125
      %2128 = vmatprep.subr.mxu0 %v1119
      %2129 = vmatpush2.msra.mxu0 %v1118
      %2130 = vmatprep.mubr.f32.mxu0 %v1373
      %2131 = vmatmul.mubr.f32.gmra.mxu0 %v1372
      %v2132 = vpop.f32.mrf.mxu0
      %v2133 = vadd.f32 %v1816, %v2132
      %v2134 = vpop.f32.mrf.mxu0
      %v2135 = vadd.f32 %v1818, %v2134
      %2136 = vmatprep.mubr.f32.mxu0 %v1379
      %2137 = vmatmul.mubr.f32.gmra.mxu0 %v1378
      %v2138 = vpop.f32.mrf.mxu0
      %v2139 = vadd.f32 %v1822, %v2138
      %v2140 = vpop.f32.mrf.mxu0
      %v2141 = vadd.f32 %v1824, %v2140
      %2142 = vmatprep.mubr.f32.mxu0 %v1385
      %2143 = vmatmul.mubr.f32.gmra.mxu0 %v1384
      %v2144 = vpop.f32.mrf.mxu0
      %v2145 = vadd.f32 %v1828, %v2144
      %v2146 = vpop.f32.mrf.mxu0
      %v2147 = vadd.f32 %v1830, %v2146
      %2148 = vmatprep.mubr.f32.mxu0 %v1391
      %2149 = vmatmul.mubr.f32.gmra.mxu0 %v1390
      %v2150 = vpop.f32.mrf.mxu0
      %v2151 = vadd.f32 %v1834, %v2150
      %v2152 = vpop.f32.mrf.mxu0
      %v2153 = vadd.f32 %v1836, %v2152
      %2154 = vmatprep.mubr.f32.mxu0 %v1397
      %2155 = vmatmul.mubr.f32.gmra.mxu0 %v1396
      %v2156 = vpop.f32.mrf.mxu0
      %v2157 = vadd.f32 %v1840, %v2156
      %v2158 = vpop.f32.mrf.mxu0
      %v2159 = vadd.f32 %v1842, %v2158
      %2160 = vmatprep.mubr.f32.mxu0 %v1403
      %2161 = vmatmul.mubr.f32.gmra.mxu0 %v1402
      %v2162 = vpop.f32.mrf.mxu0
      %v2163 = vadd.f32 %v1846, %v2162
      %v2164 = vpop.f32.mrf.mxu0
      %v2165 = vadd.f32 %v1848, %v2164
      %2166 = vmatprep.mubr.f32.mxu0 %v1409
      %2167 = vmatmul.mubr.f32.gmra.mxu0 %v1408
      %v2168 = vpop.f32.mrf.mxu0
      %v2169 = vadd.f32 %v1852, %v2168
      %v2170 = vpop.f32.mrf.mxu0
      %v2171 = vadd.f32 %v1854, %v2170
      %2172 = vmatprep.mubr.f32.mxu0 %v1415
      %2173 = vmatmul.mubr.f32.gmra.mxu0 %v1414
      %v2174 = vpop.f32.mrf.mxu0
      %v2175 = vadd.f32 %v1858, %v2174
      %v2176 = vpop.f32.mrf.mxu0
      %v2177 = vadd.f32 %v1860, %v2176
      %2178 = vmatprep.mubr.f32.mxu0 %v1421
      %2179 = vmatmul.mubr.f32.gmra.mxu0 %v1420
      %v2180 = vpop.f32.mrf.mxu0
      %v2181 = vadd.f32 %v1864, %v2180
      %v2182 = vpop.f32.mrf.mxu0
      %v2183 = vadd.f32 %v1866, %v2182
      %2184 = vmatprep.mubr.f32.mxu0 %v1427
      %2185 = vmatmul.mubr.f32.gmra.mxu0 %v1426
      %v2186 = vpop.f32.mrf.mxu0
      %v2187 = vadd.f32 %v1870, %v2186
      %v2188 = vpop.f32.mrf.mxu0
      %v2189 = vadd.f32 %v1872, %v2188
      %2190 = vmatprep.mubr.f32.mxu0 %v1433
      %2191 = vmatmul.mubr.f32.gmra.mxu0 %v1432
      %v2192 = vpop.f32.mrf.mxu0
      %v2193 = vadd.f32 %v1876, %v2192
      %v2194 = vpop.f32.mrf.mxu0
      %v2195 = vadd.f32 %v1878, %v2194
      %2196 = vmatprep.mubr.f32.mxu0 %v1439
      %2197 = vmatmul.mubr.f32.gmra.mxu0 %v1438
      %v2198 = vpop.f32.mrf.mxu0
      %v2199 = vadd.f32 %v1882, %v2198
      %v2200 = vpop.f32.mrf.mxu0
      %v2201 = vadd.f32 %v1884, %v2200
      %2202 = vmatprep.mubr.f32.mxu0 %v1445
      %2203 = vmatmul.mubr.f32.gmra.mxu0 %v1444
      %v2204 = vpop.f32.mrf.mxu0
      %v2205 = vadd.f32 %v1888, %v2204
      %v2206 = vpop.f32.mrf.mxu0
      %v2207 = vadd.f32 %v1890, %v2206
      %2208 = vmatprep.mubr.f32.mxu0 %v1451
      %2209 = vmatmul.mubr.f32.gmra.mxu0 %v1450
      %v2210 = vpop.f32.mrf.mxu0
      %v2211 = vadd.f32 %v1894, %v2210
      %v2212 = vpop.f32.mrf.mxu0
      %v2213 = vadd.f32 %v1896, %v2212
      %2214 = vmatprep.mubr.f32.mxu0 %v1457
      %2215 = vmatmul.mubr.f32.gmra.mxu0 %v1456
      %v2216 = vpop.f32.mrf.mxu0
      %v2217 = vadd.f32 %v1900, %v2216
      %v2218 = vpop.f32.mrf.mxu0
      %v2219 = vadd.f32 %v1902, %v2218
      %2220 = vmatprep.mubr.f32.mxu0 %v1463
      %2221 = vmatmul.mubr.f32.gmra.mxu0 %v1462
      %v2222 = vpop.f32.mrf.mxu0
      %v2223 = vadd.f32 %v1906, %v2222
      %v2224 = vpop.f32.mrf.mxu0
      %v2225 = vadd.f32 %v1908, %v2224
      %2226 = vmatprep.mubr.f32.mxu0 %v1469
      %2227 = vmatmul.mubr.f32.gmra.mxu0 %v1468
      %v2228 = vpop.f32.mrf.mxu0
      %v2229 = vadd.f32 %v1912, %v2228
      %v2230 = vpop.f32.mrf.mxu0
      %v2231 = vadd.f32 %v1914, %v2230
      %2232 = vmatprep.mubr.f32.mxu0 %v1475
      %2233 = vmatmul.mubr.f32.gmra.mxu0 %v1474
      %v2234 = vpop.f32.mrf.mxu0
      %v2235 = vadd.f32 %v1918, %v2234
      %v2236 = vpop.f32.mrf.mxu0
      %v2237 = vadd.f32 %v1920, %v2236
      %2238 = vmatprep.mubr.f32.mxu0 %v1481
      %2239 = vmatmul.mubr.f32.gmra.mxu0 %v1480
      %v2240 = vpop.f32.mrf.mxu0
      %v2241 = vadd.f32 %v1924, %v2240
      %v2242 = vpop.f32.mrf.mxu0
      %v2243 = vadd.f32 %v1926, %v2242
      %2244 = vmatprep.mubr.f32.mxu0 %v1487
      %2245 = vmatmul.mubr.f32.gmra.mxu0 %v1486
      %v2246 = vpop.f32.mrf.mxu0
      %v2247 = vadd.f32 %v1930, %v2246
      %v2248 = vpop.f32.mrf.mxu0
      %v2249 = vadd.f32 %v1932, %v2248
      %2250 = vmatprep.mubr.f32.mxu0 %v1493
      %2251 = vmatmul.mubr.f32.gmra.mxu0 %v1492
      %v2252 = vpop.f32.mrf.mxu0
      %v2253 = vadd.f32 %v1936, %v2252
      %v2254 = vpop.f32.mrf.mxu0
      %v2255 = vadd.f32 %v1938, %v2254
      %2256 = vmatprep.mubr.f32.mxu0 %v1499
      %2257 = vmatmul.mubr.f32.gmra.mxu0 %v1498
      %v2258 = vpop.f32.mrf.mxu0
      %v2259 = vadd.f32 %v1942, %v2258
      %v2260 = vpop.f32.mrf.mxu0
      %v2261 = vadd.f32 %v1944, %v2260
      %2262 = vmatprep.mubr.f32.mxu0 %v1505
      %2263 = vmatmul.mubr.f32.gmra.mxu0 %v1504
      %v2264 = vpop.f32.mrf.mxu0
      %v2265 = vadd.f32 %v1948, %v2264
      %v2266 = vpop.f32.mrf.mxu0
      %v2267 = vadd.f32 %v1950, %v2266
      %2268 = vmatprep.mubr.f32.mxu0 %v1511
      %2269 = vmatmul.mubr.f32.gmra.mxu0 %v1510
      %v2270 = vpop.f32.mrf.mxu0
      %v2271 = vadd.f32 %v1954, %v2270
      %v2272 = vpop.f32.mrf.mxu0
      %v2273 = vadd.f32 %v1956, %v2272
      %2274 = vmatprep.mubr.f32.mxu0 %v1517
      %2275 = vmatmul.mubr.f32.gmra.mxu0 %v1516
      %v2276 = vpop.f32.mrf.mxu0
      %v2277 = vadd.f32 %v1960, %v2276
      %v2278 = vpop.f32.mrf.mxu0
      %v2279 = vadd.f32 %v1962, %v2278
      %2280 = vmatprep.mubr.f32.mxu0 %v1523
      %2281 = vmatmul.mubr.f32.gmra.mxu0 %v1522
      %v2282 = vpop.f32.mrf.mxu0
      %v2283 = vadd.f32 %v1966, %v2282
      %v2284 = vpop.f32.mrf.mxu0
      %v2285 = vadd.f32 %v1968, %v2284
      %2286 = vmatprep.mubr.f32.mxu0 %v1529
      %2287 = vmatmul.mubr.f32.gmra.mxu0 %v1528
      %v2288 = vpop.f32.mrf.mxu0
      %v2289 = vadd.f32 %v1972, %v2288
      %v2290 = vpop.f32.mrf.mxu0
      %v2291 = vadd.f32 %v1974, %v2290
      %2292 = vmatprep.mubr.f32.mxu0 %v1535
      %2293 = vmatmul.mubr.f32.gmra.mxu0 %v1534
      %v2294 = vpop.f32.mrf.mxu0
      %v2295 = vadd.f32 %v1978, %v2294
      %v2296 = vpop.f32.mrf.mxu0
      %v2297 = vadd.f32 %v1980, %v2296
      %2298 = vmatprep.mubr.f32.mxu0 %v1541
      %2299 = vmatmul.mubr.f32.gmra.mxu0 %v1540
      %v2300 = vpop.f32.mrf.mxu0
      %v2301 = vadd.f32 %v1984, %v2300
      %v2302 = vpop.f32.mrf.mxu0
      %v2303 = vadd.f32 %v1986, %v2302
      %2304 = vmatprep.mubr.f32.mxu0 %v1547
      %2305 = vmatmul.mubr.f32.gmra.mxu0 %v1546
      %v2306 = vpop.f32.mrf.mxu0
      %v2307 = vadd.f32 %v1990, %v2306
      %v2308 = vpop.f32.mrf.mxu0
      %v2309 = vadd.f32 %v1992, %v2308
      %2310 = vmatprep.mubr.f32.mxu0 %v1553
      %2311 = vmatmul.mubr.f32.gmra.mxu0 %v1552
      %v2312 = vpop.f32.mrf.mxu0
      %v2313 = vadd.f32 %v1996, %v2312
      %v2314 = vpop.f32.mrf.mxu0
      %v2315 = vadd.f32 %v1998, %v2314
      %2316 = vmatprep.mubr.f32.mxu0 %v1559
      %2317 = vmatmul.mubr.f32.gmra.mxu0 %v1558
      %v2318 = vpop.f32.mrf.mxu0
      %v2319 = vadd.f32 %v2002, %v2318
      %v2320 = vpop.f32.mrf.mxu0
      %v2321 = vadd.f32 %v2004, %v2320
      %2322 = vmatprep.mubr.f32.mxu0 %v1565
      %2323 = vmatmul.mubr.f32.gmra.mxu0 %v1564
      %v2324 = vpop.f32.mrf.mxu0
      %v2325 = vadd.f32 %v2008, %v2324
      %v2326 = vpop.f32.mrf.mxu0
      %v2327 = vadd.f32 %v2010, %v2326
      %2328 = vmatprep.mubr.f32.mxu0 %v1571
      %2329 = vmatmul.mubr.f32.gmra.mxu0 %v1570
      %v2330 = vpop.f32.mrf.mxu0
      %v2331 = vadd.f32 %v2014, %v2330
      %v2332 = vpop.f32.mrf.mxu0
      %v2333 = vadd.f32 %v2016, %v2332
      %2334 = vmatprep.mubr.f32.mxu0 %v1577
      %2335 = vmatmul.mubr.f32.gmra.mxu0 %v1576
      %v2336 = vpop.f32.mrf.mxu0
      %v2337 = vadd.f32 %v2020, %v2336
      %v2338 = vpop.f32.mrf.mxu0
      %v2339 = vadd.f32 %v2022, %v2338
      %2340 = vmatprep.mubr.f32.mxu0 %v1583
      %2341 = vmatmul.mubr.f32.gmra.mxu0 %v1582
      %v2342 = vpop.f32.mrf.mxu0
      %v2343 = vadd.f32 %v2026, %v2342
      %v2344 = vpop.f32.mrf.mxu0
      %v2345 = vadd.f32 %v2028, %v2344
      %2346 = vmatprep.mubr.f32.mxu0 %v1589
      %2347 = vmatmul.mubr.f32.gmra.mxu0 %v1588
      %v2348 = vpop.f32.mrf.mxu0
      %v2349 = vadd.f32 %v2032, %v2348
      %v2350 = vpop.f32.mrf.mxu0
      %v2351 = vadd.f32 %v2034, %v2350
      %2352 = vmatprep.mubr.f32.mxu0 %v1595
      %2353 = vmatmul.mubr.f32.gmra.mxu0 %v1594
      %v2354 = vpop.f32.mrf.mxu0
      %v2355 = vadd.f32 %v2038, %v2354
      %v2356 = vpop.f32.mrf.mxu0
      %v2357 = vadd.f32 %v2040, %v2356
      %2358 = vmatprep.mubr.f32.mxu0 %v1601
      %2359 = vmatmul.mubr.f32.gmra.mxu0 %v1600
      %v2360 = vpop.f32.mrf.mxu0
      %v2361 = vadd.f32 %v2044, %v2360
      %v2362 = vpop.f32.mrf.mxu0
      %v2363 = vadd.f32 %v2046, %v2362
      %2364 = vmatprep.mubr.f32.mxu0 %v1607
      %2365 = vmatmul.mubr.f32.gmra.mxu0 %v1606
      %v2366 = vpop.f32.mrf.mxu0
      %v2367 = vadd.f32 %v2050, %v2366
      %v2368 = vpop.f32.mrf.mxu0
      %v2369 = vadd.f32 %v2052, %v2368
      %2370 = vmatprep.mubr.f32.mxu0 %v1613
      %2371 = vmatmul.mubr.f32.gmra.mxu0 %v1612
      %v2372 = vpop.f32.mrf.mxu0
      %v2373 = vadd.f32 %v2056, %v2372
      %v2374 = vpop.f32.mrf.mxu0
      %v2375 = vadd.f32 %v2058, %v2374
      %2376 = vmatprep.mubr.f32.mxu0 %v1619
      %2377 = vmatmul.mubr.f32.gmra.mxu0 %v1618
      %v2378 = vpop.f32.mrf.mxu0
      %v2379 = vadd.f32 %v2062, %v2378
      %v2380 = vpop.f32.mrf.mxu0
      %v2381 = vadd.f32 %v2064, %v2380
      %2382 = vdwg.mxu0
      %2383 = vmatprep.subr.mxu0 %v1336
      %2384 = vmatpush1.msra.mxu0 %v1335
      %2385 = vmatprep.subr.mxu0 %v1329
      %2386 = vmatpush1.msra.mxu0 %v1328
      %2387 = vmatprep.subr.mxu0 %v1322
      %2388 = vmatpush1.msra.mxu0 %v1321
      %2389 = vmatprep.subr.mxu0 %v1315
      %2390 = vmatpush1.msra.mxu0 %v1314
      %2391 = vmatprep.subr.mxu0 %v1308
      %2392 = vmatpush1.msra.mxu0 %v1307
      %2393 = vmatprep.subr.mxu0 %v1301
      %2394 = vmatpush1.msra.mxu0 %v1300
      %2395 = vmatprep.subr.mxu0 %v1294
      %2396 = vmatpush1.msra.mxu0 %v1293
      %2397 = vmatprep.subr.mxu0 %v1287
      %2398 = vmatpush1.msra.mxu0 %v1286
      %2399 = vmatprep.subr.mxu0 %v1280
      %2400 = vmatpush1.msra.mxu0 %v1279
      %2401 = vmatprep.subr.mxu0 %v1273
      %2402 = vmatpush1.msra.mxu0 %v1272
      %2403 = vmatprep.subr.mxu0 %v1266
      %2404 = vmatpush1.msra.mxu0 %v1265
      %2405 = vmatprep.subr.mxu0 %v1259
      %2406 = vmatpush1.msra.mxu0 %v1258
      %2407 = vmatprep.subr.mxu0 %v1252
      %2408 = vmatpush1.msra.mxu0 %v1251
      %2409 = vmatprep.subr.mxu0 %v1245
      %2410 = vmatpush1.msra.mxu0 %v1244
      %2411 = vmatprep.subr.mxu0 %v1238
      %2412 = vmatpush1.msra.mxu0 %v1237
      %2413 = vmatprep.subr.mxu0 %v1231
      %2414 = vmatpush1.msra.mxu0 %v1230
      %2415 = vmatprep.subr.mxu0 0.0
      %2416 = vmatpush2.msra.mxu0 0.0
      %2417 = vmatprep.subr.mxu0 0.0
      %2418 = vmatpush2.msra.mxu0 0.0
      %2419 = vmatprep.subr.mxu0 0.0
      %2420 = vmatpush2.msra.mxu0 0.0
      %2421 = vmatprep.subr.mxu0 0.0
      %2422 = vmatpush2.msra.mxu0 0.0
      %2423 = vmatprep.subr.mxu0 0.0
      %2424 = vmatpush2.msra.mxu0 0.0
      %2425 = vmatprep.subr.mxu0 0.0
      %2426 = vmatpush2.msra.mxu0 0.0
      %2427 = vmatprep.subr.mxu0 0.0
      %2428 = vmatpush2.msra.mxu0 0.0
      %2429 = vmatprep.subr.mxu0 0.0
      %2430 = vmatpush2.msra.mxu0 0.0
      %2431 = vmatprep.subr.mxu0 0.0
      %2432 = vmatpush2.msra.mxu0 0.0
      %2433 = vmatprep.subr.mxu0 0.0
      %2434 = vmatpush2.msra.mxu0 0.0
      %2435 = vmatprep.subr.mxu0 0.0
      %2436 = vmatpush2.msra.mxu0 0.0
      %2437 = vmatprep.subr.mxu0 0.0
      %2438 = vmatpush2.msra.mxu0 0.0
      %2439 = vmatprep.subr.mxu0 %v1364
      %2440 = vmatpush2.msra.mxu0 %v1363
      %2441 = vmatprep.subr.mxu0 %v1357
      %2442 = vmatpush2.msra.mxu0 %v1356
      %2443 = vmatprep.subr.mxu0 %v1350
      %2444 = vmatpush2.msra.mxu0 %v1349
      %2445 = vmatprep.subr.mxu0 %v1343
      %2446 = vmatpush2.msra.mxu0 %v1342
      %2447 = vmatprep.mubr.f32.mxu0 %v1624
      %2448 = vmatmul.mubr.f32.gmra.mxu0 %v1374
      %v2449 = vpop.f32.mrf.mxu0
      %v2450 = vadd.f32 %v2133, %v2449
      %v2451 = vpop.f32.mrf.mxu0
      %v2452 = vadd.f32 %v2135, %v2451
      %2453 = vmatprep.mubr.f32.mxu0 %v1627
      %2454 = vmatmul.mubr.f32.gmra.mxu0 %v1380
      %v2455 = vpop.f32.mrf.mxu0
      %v2456 = vadd.f32 %v2139, %v2455
      %v2457 = vpop.f32.mrf.mxu0
      %v2458 = vadd.f32 %v2141, %v2457
      %2459 = vmatprep.mubr.f32.mxu0 %v1630
      %2460 = vmatmul.mubr.f32.gmra.mxu0 %v1386
      %v2461 = vpop.f32.mrf.mxu0
      %v2462 = vadd.f32 %v2145, %v2461
      %v2463 = vpop.f32.mrf.mxu0
      %v2464 = vadd.f32 %v2147, %v2463
      %2465 = vmatprep.mubr.f32.mxu0 %v1633
      %2466 = vmatmul.mubr.f32.gmra.mxu0 %v1392
      %v2467 = vpop.f32.mrf.mxu0
      %v2468 = vadd.f32 %v2151, %v2467
      %v2469 = vpop.f32.mrf.mxu0
      %v2470 = vadd.f32 %v2153, %v2469
      %2471 = vmatprep.mubr.f32.mxu0 %v1636
      %2472 = vmatmul.mubr.f32.gmra.mxu0 %v1398
      %v2473 = vpop.f32.mrf.mxu0
      %v2474 = vadd.f32 %v2157, %v2473
      %v2475 = vpop.f32.mrf.mxu0
      %v2476 = vadd.f32 %v2159, %v2475
      %2477 = vmatprep.mubr.f32.mxu0 %v1639
      %2478 = vmatmul.mubr.f32.gmra.mxu0 %v1404
      %v2479 = vpop.f32.mrf.mxu0
      %v2480 = vadd.f32 %v2163, %v2479
      %v2481 = vpop.f32.mrf.mxu0
      %v2482 = vadd.f32 %v2165, %v2481
      %2483 = vmatprep.mubr.f32.mxu0 %v1642
      %2484 = vmatmul.mubr.f32.gmra.mxu0 %v1410
      %v2485 = vpop.f32.mrf.mxu0
      %v2486 = vadd.f32 %v2169, %v2485
      %v2487 = vpop.f32.mrf.mxu0
      %v2488 = vadd.f32 %v2171, %v2487
      %2489 = vmatprep.mubr.f32.mxu0 %v1645
      %2490 = vmatmul.mubr.f32.gmra.mxu0 %v1416
      %v2491 = vpop.f32.mrf.mxu0
      %v2492 = vadd.f32 %v2175, %v2491
      %v2493 = vpop.f32.mrf.mxu0
      %v2494 = vadd.f32 %v2177, %v2493
      %2495 = vmatprep.mubr.f32.mxu0 %v1648
      %2496 = vmatmul.mubr.f32.gmra.mxu0 %v1422
      %v2497 = vpop.f32.mrf.mxu0
      %v2498 = vadd.f32 %v2181, %v2497
      %v2499 = vpop.f32.mrf.mxu0
      %v2500 = vadd.f32 %v2183, %v2499
      %2501 = vmatprep.mubr.f32.mxu0 %v1651
      %2502 = vmatmul.mubr.f32.gmra.mxu0 %v1428
      %v2503 = vpop.f32.mrf.mxu0
      %v2504 = vadd.f32 %v2187, %v2503
      %v2505 = vpop.f32.mrf.mxu0
      %v2506 = vadd.f32 %v2189, %v2505
      %2507 = vmatprep.mubr.f32.mxu0 %v1654
      %2508 = vmatmul.mubr.f32.gmra.mxu0 %v1434
      %v2509 = vpop.f32.mrf.mxu0
      %v2510 = vadd.f32 %v2193, %v2509
      %v2511 = vpop.f32.mrf.mxu0
      %v2512 = vadd.f32 %v2195, %v2511
      %2513 = vmatprep.mubr.f32.mxu0 %v1657
      %2514 = vmatmul.mubr.f32.gmra.mxu0 %v1440
      %v2515 = vpop.f32.mrf.mxu0
      %v2516 = vadd.f32 %v2199, %v2515
      %v2517 = vpop.f32.mrf.mxu0
      %v2518 = vadd.f32 %v2201, %v2517
      %2519 = vmatprep.mubr.f32.mxu0 %v1660
      %2520 = vmatmul.mubr.f32.gmra.mxu0 %v1446
      %v2521 = vpop.f32.mrf.mxu0
      %v2522 = vadd.f32 %v2205, %v2521
      %v2523 = vpop.f32.mrf.mxu0
      %v2524 = vadd.f32 %v2207, %v2523
      %2525 = vmatprep.mubr.f32.mxu0 %v1663
      %2526 = vmatmul.mubr.f32.gmra.mxu0 %v1452
      %v2527 = vpop.f32.mrf.mxu0
      %v2528 = vadd.f32 %v2211, %v2527
      %v2529 = vpop.f32.mrf.mxu0
      %v2530 = vadd.f32 %v2213, %v2529
      %2531 = vmatprep.mubr.f32.mxu0 %v1666
      %2532 = vmatmul.mubr.f32.gmra.mxu0 %v1458
      %v2533 = vpop.f32.mrf.mxu0
      %v2534 = vadd.f32 %v2217, %v2533
      %v2535 = vpop.f32.mrf.mxu0
      %v2536 = vadd.f32 %v2219, %v2535
      %2537 = vmatprep.mubr.f32.mxu0 %v1669
      %2538 = vmatmul.mubr.f32.gmra.mxu0 %v1464
      %v2539 = vpop.f32.mrf.mxu0
      %v2540 = vadd.f32 %v2223, %v2539
      %v2541 = vpop.f32.mrf.mxu0
      %v2542 = vadd.f32 %v2225, %v2541
      %2543 = vmatprep.mubr.f32.mxu0 %v1672
      %2544 = vmatmul.mubr.f32.gmra.mxu0 %v1470
      %v2545 = vpop.f32.mrf.mxu0
      %v2546 = vadd.f32 %v2229, %v2545
      %v2547 = vpop.f32.mrf.mxu0
      %v2548 = vadd.f32 %v2231, %v2547
      %2549 = vmatprep.mubr.f32.mxu0 %v1675
      %2550 = vmatmul.mubr.f32.gmra.mxu0 %v1476
      %v2551 = vpop.f32.mrf.mxu0
      %v2552 = vadd.f32 %v2235, %v2551
      %v2553 = vpop.f32.mrf.mxu0
      %v2554 = vadd.f32 %v2237, %v2553
      %2555 = vmatprep.mubr.f32.mxu0 %v1678
      %2556 = vmatmul.mubr.f32.gmra.mxu0 %v1482
      %v2557 = vpop.f32.mrf.mxu0
      %v2558 = vadd.f32 %v2241, %v2557
      %v2559 = vpop.f32.mrf.mxu0
      %v2560 = vadd.f32 %v2243, %v2559
      %2561 = vmatprep.mubr.f32.mxu0 %v1681
      %2562 = vmatmul.mubr.f32.gmra.mxu0 %v1488
      %v2563 = vpop.f32.mrf.mxu0
      %v2564 = vadd.f32 %v2247, %v2563
      %v2565 = vpop.f32.mrf.mxu0
      %v2566 = vadd.f32 %v2249, %v2565
      %2567 = vmatprep.mubr.f32.mxu0 %v1684
      %2568 = vmatmul.mubr.f32.gmra.mxu0 %v1494
      %v2569 = vpop.f32.mrf.mxu0
      %v2570 = vadd.f32 %v2253, %v2569
      %v2571 = vpop.f32.mrf.mxu0
      %v2572 = vadd.f32 %v2255, %v2571
      %2573 = vmatprep.mubr.f32.mxu0 %v1687
      %2574 = vmatmul.mubr.f32.gmra.mxu0 %v1500
      %v2575 = vpop.f32.mrf.mxu0
      %v2576 = vadd.f32 %v2259, %v2575
      %v2577 = vpop.f32.mrf.mxu0
      %v2578 = vadd.f32 %v2261, %v2577
      %2579 = vmatprep.mubr.f32.mxu0 %v1690
      %2580 = vmatmul.mubr.f32.gmra.mxu0 %v1506
      %v2581 = vpop.f32.mrf.mxu0
      %v2582 = vadd.f32 %v2265, %v2581
      %v2583 = vpop.f32.mrf.mxu0
      %v2584 = vadd.f32 %v2267, %v2583
      %2585 = vmatprep.mubr.f32.mxu0 %v1693
      %2586 = vmatmul.mubr.f32.gmra.mxu0 %v1512
      %v2587 = vpop.f32.mrf.mxu0
      %v2588 = vadd.f32 %v2271, %v2587
      %v2589 = vpop.f32.mrf.mxu0
      %v2590 = vadd.f32 %v2273, %v2589
      %2591 = vmatprep.mubr.f32.mxu0 %v1696
      %2592 = vmatmul.mubr.f32.gmra.mxu0 %v1518
      %v2593 = vpop.f32.mrf.mxu0
      %v2594 = vadd.f32 %v2277, %v2593
      %v2595 = vpop.f32.mrf.mxu0
      %v2596 = vadd.f32 %v2279, %v2595
      %2597 = vmatprep.mubr.f32.mxu0 %v1699
      %2598 = vmatmul.mubr.f32.gmra.mxu0 %v1524
      %v2599 = vpop.f32.mrf.mxu0
      %v2600 = vadd.f32 %v2283, %v2599
      %v2601 = vpop.f32.mrf.mxu0
      %v2602 = vadd.f32 %v2285, %v2601
      %2603 = vmatprep.mubr.f32.mxu0 %v1702
      %2604 = vmatmul.mubr.f32.gmra.mxu0 %v1530
      %v2605 = vpop.f32.mrf.mxu0
      %v2606 = vadd.f32 %v2289, %v2605
      %v2607 = vpop.f32.mrf.mxu0
      %v2608 = vadd.f32 %v2291, %v2607
      %2609 = vmatprep.mubr.f32.mxu0 %v1705
      %2610 = vmatmul.mubr.f32.gmra.mxu0 %v1536
      %v2611 = vpop.f32.mrf.mxu0
      %v2612 = vadd.f32 %v2295, %v2611
      %v2613 = vpop.f32.mrf.mxu0
      %v2614 = vadd.f32 %v2297, %v2613
      %2615 = vmatprep.mubr.f32.mxu0 %v1708
      %2616 = vmatmul.mubr.f32.gmra.mxu0 %v1542
      %v2617 = vpop.f32.mrf.mxu0
      %v2618 = vadd.f32 %v2301, %v2617
      %v2619 = vpop.f32.mrf.mxu0
      %v2620 = vadd.f32 %v2303, %v2619
      %2621 = vmatprep.mubr.f32.mxu0 %v1711
      %2622 = vmatmul.mubr.f32.gmra.mxu0 %v1548
      %v2623 = vpop.f32.mrf.mxu0
      %v2624 = vadd.f32 %v2307, %v2623
      %v2625 = vpop.f32.mrf.mxu0
      %v2626 = vadd.f32 %v2309, %v2625
      %2627 = vmatprep.mubr.f32.mxu0 %v1714
      %2628 = vmatmul.mubr.f32.gmra.mxu0 %v1554
      %v2629 = vpop.f32.mrf.mxu0
      %v2630 = vadd.f32 %v2313, %v2629
      %v2631 = vpop.f32.mrf.mxu0
      %v2632 = vadd.f32 %v2315, %v2631
      %2633 = vmatprep.mubr.f32.mxu0 %v1717
      %2634 = vmatmul.mubr.f32.gmra.mxu0 %v1560
      %v2635 = vpop.f32.mrf.mxu0
      %v2636 = vadd.f32 %v2319, %v2635
      %v2637 = vpop.f32.mrf.mxu0
      %v2638 = vadd.f32 %v2321, %v2637
      %2639 = vmatprep.mubr.f32.mxu0 %v1720
      %2640 = vmatmul.mubr.f32.gmra.mxu0 %v1566
      %v2641 = vpop.f32.mrf.mxu0
      %v2642 = vadd.f32 %v2325, %v2641
      %v2643 = vpop.f32.mrf.mxu0
      %v2644 = vadd.f32 %v2327, %v2643
      %2645 = vmatprep.mubr.f32.mxu0 %v1723
      %2646 = vmatmul.mubr.f32.gmra.mxu0 %v1572
      %v2647 = vpop.f32.mrf.mxu0
      %v2648 = vadd.f32 %v2331, %v2647
      %v2649 = vpop.f32.mrf.mxu0
      %v2650 = vadd.f32 %v2333, %v2649
      %2651 = vmatprep.mubr.f32.mxu0 %v1726
      %2652 = vmatmul.mubr.f32.gmra.mxu0 %v1578
      %v2653 = vpop.f32.mrf.mxu0
      %v2654 = vadd.f32 %v2337, %v2653
      %v2655 = vpop.f32.mrf.mxu0
      %v2656 = vadd.f32 %v2339, %v2655
      %2657 = vmatprep.mubr.f32.mxu0 %v1729
      %2658 = vmatmul.mubr.f32.gmra.mxu0 %v1584
      %v2659 = vpop.f32.mrf.mxu0
      %v2660 = vadd.f32 %v2343, %v2659
      %v2661 = vpop.f32.mrf.mxu0
      %v2662 = vadd.f32 %v2345, %v2661
      %2663 = vmatprep.mubr.f32.mxu0 %v1732
      %2664 = vmatmul.mubr.f32.gmra.mxu0 %v1590
      %v2665 = vpop.f32.mrf.mxu0
      %v2666 = vadd.f32 %v2349, %v2665
      %v2667 = vpop.f32.mrf.mxu0
      %v2668 = vadd.f32 %v2351, %v2667
      %2669 = vmatprep.mubr.f32.mxu0 %v1735
      %2670 = vmatmul.mubr.f32.gmra.mxu0 %v1596
      %v2671 = vpop.f32.mrf.mxu0
      %v2672 = vadd.f32 %v2355, %v2671
      %v2673 = vpop.f32.mrf.mxu0
      %v2674 = vadd.f32 %v2357, %v2673
      %2675 = vmatprep.mubr.f32.mxu0 %v1738
      %2676 = vmatmul.mubr.f32.gmra.mxu0 %v1602
      %v2677 = vpop.f32.mrf.mxu0
      %v2678 = vadd.f32 %v2361, %v2677
      %v2679 = vpop.f32.mrf.mxu0
      %v2680 = vadd.f32 %v2363, %v2679
      %2681 = vmatprep.mubr.f32.mxu0 %v1741
      %2682 = vmatmul.mubr.f32.gmra.mxu0 %v1608
      %v2683 = vpop.f32.mrf.mxu0
      %v2684 = vadd.f32 %v2367, %v2683
      %v2685 = vpop.f32.mrf.mxu0
      %v2686 = vadd.f32 %v2369, %v2685
      %2687 = vmatprep.mubr.f32.mxu0 %v1744
      %2688 = vmatmul.mubr.f32.gmra.mxu0 %v1614
      %v2689 = vpop.f32.mrf.mxu0
      %v2690 = vadd.f32 %v2373, %v2689
      %v2691 = vpop.f32.mrf.mxu0
      %v2692 = vadd.f32 %v2375, %v2691
      %2693 = vmatprep.mubr.f32.mxu0 %v1747
      %2694 = vmatmul.mubr.f32.gmra.mxu0 %v1620
      %v2695 = vpop.f32.mrf.mxu0
      %v2696 = vadd.f32 %v2379, %v2695
      %v2697 = vpop.f32.mrf.mxu0
      %v2698 = vadd.f32 %v2381, %v2697
      %2699 = vdwg.mxu0
      %2700 = vmatprep.subr.mxu0 %v890
      %2701 = vmatpush1.msra.mxu0 %v889
      %2702 = vmatprep.subr.mxu0 %v883
      %2703 = vmatpush1.msra.mxu0 %v882
      %2704 = vmatprep.subr.mxu0 %v876
      %2705 = vmatpush1.msra.mxu0 %v875
      %2706 = vmatprep.subr.mxu0 %v869
      %2707 = vmatpush1.msra.mxu0 %v868
      %2708 = vmatprep.subr.mxu0 %v862
      %2709 = vmatpush1.msra.mxu0 %v861
      %2710 = vmatprep.subr.mxu0 %v855
      %2711 = vmatpush1.msra.mxu0 %v854
      %2712 = vmatprep.subr.mxu0 %v848
      %2713 = vmatpush1.msra.mxu0 %v847
      %2714 = vmatprep.subr.mxu0 %v841
      %2715 = vmatpush1.msra.mxu0 %v840
      %2716 = vmatprep.subr.mxu0 %v834
      %2717 = vmatpush1.msra.mxu0 %v833
      %2718 = vmatprep.subr.mxu0 %v827
      %2719 = vmatpush1.msra.mxu0 %v826
      %2720 = vmatprep.subr.mxu0 %v820
      %2721 = vmatpush1.msra.mxu0 %v819
      %2722 = vmatprep.subr.mxu0 %v813
      %2723 = vmatpush1.msra.mxu0 %v812
      %2724 = vmatprep.subr.mxu0 %v806
      %2725 = vmatpush1.msra.mxu0 %v805
      %2726 = vmatprep.subr.mxu0 %v799
      %2727 = vmatpush1.msra.mxu0 %v798
      %2728 = vmatprep.subr.mxu0 %v792
      %2729 = vmatpush1.msra.mxu0 %v791
      %2730 = vmatprep.subr.mxu0 %v785
      %2731 = vmatpush1.msra.mxu0 %v784
      %2732 = vmatprep.subr.mxu0 %v1002
      %2733 = vmatpush2.msra.mxu0 %v1001
      %2734 = vmatprep.subr.mxu0 %v995
      %2735 = vmatpush2.msra.mxu0 %v994
      %2736 = vmatprep.subr.mxu0 %v988
      %2737 = vmatpush2.msra.mxu0 %v987
      %2738 = vmatprep.subr.mxu0 %v981
      %2739 = vmatpush2.msra.mxu0 %v980
      %2740 = vmatprep.subr.mxu0 %v974
      %2741 = vmatpush2.msra.mxu0 %v973
      %2742 = vmatprep.subr.mxu0 %v967
      %2743 = vmatpush2.msra.mxu0 %v966
      %2744 = vmatprep.subr.mxu0 %v960
      %2745 = vmatpush2.msra.mxu0 %v959
      %2746 = vmatprep.subr.mxu0 %v953
      %2747 = vmatpush2.msra.mxu0 %v952
      %2748 = vmatprep.subr.mxu0 %v946
      %2749 = vmatpush2.msra.mxu0 %v945
      %2750 = vmatprep.subr.mxu0 %v939
      %2751 = vmatpush2.msra.mxu0 %v938
      %2752 = vmatprep.subr.mxu0 %v932
      %2753 = vmatpush2.msra.mxu0 %v931
      %2754 = vmatprep.subr.mxu0 %v925
      %2755 = vmatpush2.msra.mxu0 %v924
      %2756 = vmatprep.subr.mxu0 %v918
      %2757 = vmatpush2.msra.mxu0 %v917
      %2758 = vmatprep.subr.mxu0 %v911
      %2759 = vmatpush2.msra.mxu0 %v910
      %2760 = vmatprep.subr.mxu0 %v904
      %2761 = vmatpush2.msra.mxu0 %v903
      %2762 = vmatprep.subr.mxu0 %v897
      %2763 = vmatpush2.msra.mxu0 %v896
      %2764 = vmatprep.mubr.f32.mxu0 %v1371
      %2765 = vmatmul.mubr.f32.gmra.mxu0 %v1370
      %v2766 = vpop.f32.mrf.mxu0
      %v2767 = vadd.f32 0.0, %v2766
      %v2768 = vpop.f32.mrf.mxu0
      %v2769 = vadd.f32 0.0, %v2768
      %2770 = vmatprep.mubr.f32.mxu0 %v1377
      %2771 = vmatmul.mubr.f32.gmra.mxu0 %v1376
      %v2772 = vpop.f32.mrf.mxu0
      %v2773 = vadd.f32 0.0, %v2772
      %v2774 = vpop.f32.mrf.mxu0
      %v2775 = vadd.f32 0.0, %v2774
      %2776 = vmatprep.mubr.f32.mxu0 %v1383
      %2777 = vmatmul.mubr.f32.gmra.mxu0 %v1382
      %v2778 = vpop.f32.mrf.mxu0
      %v2779 = vadd.f32 0.0, %v2778
      %v2780 = vpop.f32.mrf.mxu0
      %v2781 = vadd.f32 0.0, %v2780
      %2782 = vmatprep.mubr.f32.mxu0 %v1389
      %2783 = vmatmul.mubr.f32.gmra.mxu0 %v1388
      %v2784 = vpop.f32.mrf.mxu0
      %v2785 = vadd.f32 0.0, %v2784
      %v2786 = vpop.f32.mrf.mxu0
      %v2787 = vadd.f32 0.0, %v2786
      %2788 = vmatprep.mubr.f32.mxu0 %v1395
      %2789 = vmatmul.mubr.f32.gmra.mxu0 %v1394
      %v2790 = vpop.f32.mrf.mxu0
      %v2791 = vadd.f32 0.0, %v2790
      %v2792 = vpop.f32.mrf.mxu0
      %v2793 = vadd.f32 0.0, %v2792
      %2794 = vmatprep.mubr.f32.mxu0 %v1401
      %2795 = vmatmul.mubr.f32.gmra.mxu0 %v1400
      %v2796 = vpop.f32.mrf.mxu0
      %v2797 = vadd.f32 0.0, %v2796
      %v2798 = vpop.f32.mrf.mxu0
      %v2799 = vadd.f32 0.0, %v2798
      %2800 = vmatprep.mubr.f32.mxu0 %v1407
      %2801 = vmatmul.mubr.f32.gmra.mxu0 %v1406
      %v2802 = vpop.f32.mrf.mxu0
      %v2803 = vadd.f32 0.0, %v2802
      %v2804 = vpop.f32.mrf.mxu0
      %v2805 = vadd.f32 0.0, %v2804
      %2806 = vmatprep.mubr.f32.mxu0 %v1413
      %2807 = vmatmul.mubr.f32.gmra.mxu0 %v1412
      %v2808 = vpop.f32.mrf.mxu0
      %v2809 = vadd.f32 0.0, %v2808
      %v2810 = vpop.f32.mrf.mxu0
      %v2811 = vadd.f32 0.0, %v2810
      %2812 = vmatprep.mubr.f32.mxu0 %v1419
      %2813 = vmatmul.mubr.f32.gmra.mxu0 %v1418
      %v2814 = vpop.f32.mrf.mxu0
      %v2815 = vadd.f32 0.0, %v2814
      %v2816 = vpop.f32.mrf.mxu0
      %v2817 = vadd.f32 0.0, %v2816
      %2818 = vmatprep.mubr.f32.mxu0 %v1425
      %2819 = vmatmul.mubr.f32.gmra.mxu0 %v1424
      %v2820 = vpop.f32.mrf.mxu0
      %v2821 = vadd.f32 0.0, %v2820
      %v2822 = vpop.f32.mrf.mxu0
      %v2823 = vadd.f32 0.0, %v2822
      %2824 = vmatprep.mubr.f32.mxu0 %v1431
      %2825 = vmatmul.mubr.f32.gmra.mxu0 %v1430
      %v2826 = vpop.f32.mrf.mxu0
      %v2827 = vadd.f32 0.0, %v2826
      %v2828 = vpop.f32.mrf.mxu0
      %v2829 = vadd.f32 0.0, %v2828
      %2830 = vmatprep.mubr.f32.mxu0 %v1437
      %2831 = vmatmul.mubr.f32.gmra.mxu0 %v1436
      %v2832 = vpop.f32.mrf.mxu0
      %v2833 = vadd.f32 0.0, %v2832
      %v2834 = vpop.f32.mrf.mxu0
      %v2835 = vadd.f32 0.0, %v2834
      %2836 = vmatprep.mubr.f32.mxu0 %v1443
      %2837 = vmatmul.mubr.f32.gmra.mxu0 %v1442
      %v2838 = vpop.f32.mrf.mxu0
      %v2839 = vadd.f32 0.0, %v2838
      %v2840 = vpop.f32.mrf.mxu0
      %v2841 = vadd.f32 0.0, %v2840
      %2842 = vmatprep.mubr.f32.mxu0 %v1449
      %2843 = vmatmul.mubr.f32.gmra.mxu0 %v1448
      %v2844 = vpop.f32.mrf.mxu0
      %v2845 = vadd.f32 0.0, %v2844
      %v2846 = vpop.f32.mrf.mxu0
      %v2847 = vadd.f32 0.0, %v2846
      %2848 = vmatprep.mubr.f32.mxu0 %v1455
      %2849 = vmatmul.mubr.f32.gmra.mxu0 %v1454
      %v2850 = vpop.f32.mrf.mxu0
      %v2851 = vadd.f32 0.0, %v2850
      %v2852 = vpop.f32.mrf.mxu0
      %v2853 = vadd.f32 0.0, %v2852
      %2854 = vmatprep.mubr.f32.mxu0 %v1461
      %2855 = vmatmul.mubr.f32.gmra.mxu0 %v1460
      %v2856 = vpop.f32.mrf.mxu0
      %v2857 = vadd.f32 0.0, %v2856
      %v2858 = vpop.f32.mrf.mxu0
      %v2859 = vadd.f32 0.0, %v2858
      %2860 = vmatprep.mubr.f32.mxu0 %v1467
      %2861 = vmatmul.mubr.f32.gmra.mxu0 %v1466
      %v2862 = vpop.f32.mrf.mxu0
      %v2863 = vadd.f32 0.0, %v2862
      %v2864 = vpop.f32.mrf.mxu0
      %v2865 = vadd.f32 0.0, %v2864
      %2866 = vmatprep.mubr.f32.mxu0 %v1473
      %2867 = vmatmul.mubr.f32.gmra.mxu0 %v1472
      %v2868 = vpop.f32.mrf.mxu0
      %v2869 = vadd.f32 0.0, %v2868
      %v2870 = vpop.f32.mrf.mxu0
      %v2871 = vadd.f32 0.0, %v2870
      %2872 = vmatprep.mubr.f32.mxu0 %v1479
      %2873 = vmatmul.mubr.f32.gmra.mxu0 %v1478
      %v2874 = vpop.f32.mrf.mxu0
      %v2875 = vadd.f32 0.0, %v2874
      %v2876 = vpop.f32.mrf.mxu0
      %v2877 = vadd.f32 0.0, %v2876
      %2878 = vmatprep.mubr.f32.mxu0 %v1485
      %2879 = vmatmul.mubr.f32.gmra.mxu0 %v1484
      %v2880 = vpop.f32.mrf.mxu0
      %v2881 = vadd.f32 0.0, %v2880
      %v2882 = vpop.f32.mrf.mxu0
      %v2883 = vadd.f32 0.0, %v2882
      %2884 = vmatprep.mubr.f32.mxu0 %v1491
      %2885 = vmatmul.mubr.f32.gmra.mxu0 %v1490
      %v2886 = vpop.f32.mrf.mxu0
      %v2887 = vadd.f32 0.0, %v2886
      %v2888 = vpop.f32.mrf.mxu0
      %v2889 = vadd.f32 0.0, %v2888
      %2890 = vmatprep.mubr.f32.mxu0 %v1497
      %2891 = vmatmul.mubr.f32.gmra.mxu0 %v1496
      %v2892 = vpop.f32.mrf.mxu0
      %v2893 = vadd.f32 0.0, %v2892
      %v2894 = vpop.f32.mrf.mxu0
      %v2895 = vadd.f32 0.0, %v2894
      %2896 = vmatprep.mubr.f32.mxu0 %v1503
      %2897 = vmatmul.mubr.f32.gmra.mxu0 %v1502
      %v2898 = vpop.f32.mrf.mxu0
      %v2899 = vadd.f32 0.0, %v2898
      %v2900 = vpop.f32.mrf.mxu0
      %v2901 = vadd.f32 0.0, %v2900
      %2902 = vmatprep.mubr.f32.mxu0 %v1509
      %2903 = vmatmul.mubr.f32.gmra.mxu0 %v1508
      %v2904 = vpop.f32.mrf.mxu0
      %v2905 = vadd.f32 0.0, %v2904
      %v2906 = vpop.f32.mrf.mxu0
      %v2907 = vadd.f32 0.0, %v2906
      %2908 = vmatprep.mubr.f32.mxu0 %v1515
      %2909 = vmatmul.mubr.f32.gmra.mxu0 %v1514
      %v2910 = vpop.f32.mrf.mxu0
      %v2911 = vadd.f32 0.0, %v2910
      %v2912 = vpop.f32.mrf.mxu0
      %v2913 = vadd.f32 0.0, %v2912
      %2914 = vmatprep.mubr.f32.mxu0 %v1521
      %2915 = vmatmul.mubr.f32.gmra.mxu0 %v1520
      %v2916 = vpop.f32.mrf.mxu0
      %v2917 = vadd.f32 0.0, %v2916
      %v2918 = vpop.f32.mrf.mxu0
      %v2919 = vadd.f32 0.0, %v2918
      %2920 = vmatprep.mubr.f32.mxu0 %v1527
      %2921 = vmatmul.mubr.f32.gmra.mxu0 %v1526
      %v2922 = vpop.f32.mrf.mxu0
      %v2923 = vadd.f32 0.0, %v2922
      %v2924 = vpop.f32.mrf.mxu0
      %v2925 = vadd.f32 0.0, %v2924
      %2926 = vmatprep.mubr.f32.mxu0 %v1533
      %2927 = vmatmul.mubr.f32.gmra.mxu0 %v1532
      %v2928 = vpop.f32.mrf.mxu0
      %v2929 = vadd.f32 0.0, %v2928
      %v2930 = vpop.f32.mrf.mxu0
      %v2931 = vadd.f32 0.0, %v2930
      %2932 = vmatprep.mubr.f32.mxu0 %v1539
      %2933 = vmatmul.mubr.f32.gmra.mxu0 %v1538
      %v2934 = vpop.f32.mrf.mxu0
      %v2935 = vadd.f32 0.0, %v2934
      %v2936 = vpop.f32.mrf.mxu0
      %v2937 = vadd.f32 0.0, %v2936
      %2938 = vmatprep.mubr.f32.mxu0 %v1545
      %2939 = vmatmul.mubr.f32.gmra.mxu0 %v1544
      %v2940 = vpop.f32.mrf.mxu0
      %v2941 = vadd.f32 0.0, %v2940
      %v2942 = vpop.f32.mrf.mxu0
      %v2943 = vadd.f32 0.0, %v2942
      %2944 = vmatprep.mubr.f32.mxu0 %v1551
      %2945 = vmatmul.mubr.f32.gmra.mxu0 %v1550
      %v2946 = vpop.f32.mrf.mxu0
      %v2947 = vadd.f32 0.0, %v2946
      %v2948 = vpop.f32.mrf.mxu0
      %v2949 = vadd.f32 0.0, %v2948
      %2950 = vmatprep.mubr.f32.mxu0 %v1557
      %2951 = vmatmul.mubr.f32.gmra.mxu0 %v1556
      %v2952 = vpop.f32.mrf.mxu0
      %v2953 = vadd.f32 0.0, %v2952
      %v2954 = vpop.f32.mrf.mxu0
      %v2955 = vadd.f32 0.0, %v2954
      %2956 = vmatprep.mubr.f32.mxu0 %v1563
      %2957 = vmatmul.mubr.f32.gmra.mxu0 %v1562
      %v2958 = vpop.f32.mrf.mxu0
      %v2959 = vadd.f32 0.0, %v2958
      %v2960 = vpop.f32.mrf.mxu0
      %v2961 = vadd.f32 0.0, %v2960
      %2962 = vmatprep.mubr.f32.mxu0 %v1569
      %2963 = vmatmul.mubr.f32.gmra.mxu0 %v1568
      %v2964 = vpop.f32.mrf.mxu0
      %v2965 = vadd.f32 0.0, %v2964
      %v2966 = vpop.f32.mrf.mxu0
      %v2967 = vadd.f32 0.0, %v2966
      %2968 = vmatprep.mubr.f32.mxu0 %v1575
      %2969 = vmatmul.mubr.f32.gmra.mxu0 %v1574
      %v2970 = vpop.f32.mrf.mxu0
      %v2971 = vadd.f32 0.0, %v2970
      %v2972 = vpop.f32.mrf.mxu0
      %v2973 = vadd.f32 0.0, %v2972
      %2974 = vmatprep.mubr.f32.mxu0 %v1581
      %2975 = vmatmul.mubr.f32.gmra.mxu0 %v1580
      %v2976 = vpop.f32.mrf.mxu0
      %v2977 = vadd.f32 0.0, %v2976
      %v2978 = vpop.f32.mrf.mxu0
      %v2979 = vadd.f32 0.0, %v2978
      %2980 = vmatprep.mubr.f32.mxu0 %v1587
      %2981 = vmatmul.mubr.f32.gmra.mxu0 %v1586
      %v2982 = vpop.f32.mrf.mxu0
      %v2983 = vadd.f32 0.0, %v2982
      %v2984 = vpop.f32.mrf.mxu0
      %v2985 = vadd.f32 0.0, %v2984
      %2986 = vmatprep.mubr.f32.mxu0 %v1593
      %2987 = vmatmul.mubr.f32.gmra.mxu0 %v1592
      %v2988 = vpop.f32.mrf.mxu0
      %v2989 = vadd.f32 0.0, %v2988
      %v2990 = vpop.f32.mrf.mxu0
      %v2991 = vadd.f32 0.0, %v2990
      %2992 = vmatprep.mubr.f32.mxu0 %v1599
      %2993 = vmatmul.mubr.f32.gmra.mxu0 %v1598
      %v2994 = vpop.f32.mrf.mxu0
      %v2995 = vadd.f32 0.0, %v2994
      %v2996 = vpop.f32.mrf.mxu0
      %v2997 = vadd.f32 0.0, %v2996
      %2998 = vmatprep.mubr.f32.mxu0 %v1605
      %2999 = vmatmul.mubr.f32.gmra.mxu0 %v1604
      %v3000 = vpop.f32.mrf.mxu0
      %v3001 = vadd.f32 0.0, %v3000
      %v3002 = vpop.f32.mrf.mxu0
      %v3003 = vadd.f32 0.0, %v3002
      %3004 = vmatprep.mubr.f32.mxu0 %v1611
      %3005 = vmatmul.mubr.f32.gmra.mxu0 %v1610
      %v3006 = vpop.f32.mrf.mxu0
      %v3007 = vadd.f32 0.0, %v3006
      %v3008 = vpop.f32.mrf.mxu0
      %v3009 = vadd.f32 0.0, %v3008
      %3010 = vmatprep.mubr.f32.mxu0 %v1617
      %3011 = vmatmul.mubr.f32.gmra.mxu0 %v1616
      %v3012 = vpop.f32.mrf.mxu0
      %v3013 = vadd.f32 0.0, %v3012
      %v3014 = vpop.f32.mrf.mxu0
      %v3015 = vadd.f32 0.0, %v3014
      %3016 = vdwg.mxu0
      %3017 = vmatprep.subr.mxu0 %v1114
      %3018 = vmatpush1.msra.mxu0 %v1113
      %3019 = vmatprep.subr.mxu0 %v1107
      %3020 = vmatpush1.msra.mxu0 %v1106
      %3021 = vmatprep.subr.mxu0 %v1100
      %3022 = vmatpush1.msra.mxu0 %v1099
      %3023 = vmatprep.subr.mxu0 %v1093
      %3024 = vmatpush1.msra.mxu0 %v1092
      %3025 = vmatprep.subr.mxu0 %v1086
      %3026 = vmatpush1.msra.mxu0 %v1085
      %3027 = vmatprep.subr.mxu0 %v1079
      %3028 = vmatpush1.msra.mxu0 %v1078
      %3029 = vmatprep.subr.mxu0 %v1072
      %3030 = vmatpush1.msra.mxu0 %v1071
      %3031 = vmatprep.subr.mxu0 %v1065
      %3032 = vmatpush1.msra.mxu0 %v1064
      %3033 = vmatprep.subr.mxu0 %v1058
      %3034 = vmatpush1.msra.mxu0 %v1057
      %3035 = vmatprep.subr.mxu0 %v1051
      %3036 = vmatpush1.msra.mxu0 %v1050
      %3037 = vmatprep.subr.mxu0 %v1044
      %3038 = vmatpush1.msra.mxu0 %v1043
      %3039 = vmatprep.subr.mxu0 %v1037
      %3040 = vmatpush1.msra.mxu0 %v1036
      %3041 = vmatprep.subr.mxu0 %v1030
      %3042 = vmatpush1.msra.mxu0 %v1029
      %3043 = vmatprep.subr.mxu0 %v1023
      %3044 = vmatpush1.msra.mxu0 %v1022
      %3045 = vmatprep.subr.mxu0 %v1016
      %3046 = vmatpush1.msra.mxu0 %v1015
      %3047 = vmatprep.subr.mxu0 %v1009
      %3048 = vmatpush1.msra.mxu0 %v1008
      %3049 = vmatprep.subr.mxu0 %v1226
      %3050 = vmatpush2.msra.mxu0 %v1225
      %3051 = vmatprep.subr.mxu0 %v1219
      %3052 = vmatpush2.msra.mxu0 %v1218
      %3053 = vmatprep.subr.mxu0 %v1212
      %3054 = vmatpush2.msra.mxu0 %v1211
      %3055 = vmatprep.subr.mxu0 %v1205
      %3056 = vmatpush2.msra.mxu0 %v1204
      %3057 = vmatprep.subr.mxu0 %v1198
      %3058 = vmatpush2.msra.mxu0 %v1197
      %3059 = vmatprep.subr.mxu0 %v1191
      %3060 = vmatpush2.msra.mxu0 %v1190
      %3061 = vmatprep.subr.mxu0 %v1184
      %3062 = vmatpush2.msra.mxu0 %v1183
      %3063 = vmatprep.subr.mxu0 %v1177
      %3064 = vmatpush2.msra.mxu0 %v1176
      %3065 = vmatprep.subr.mxu0 %v1170
      %3066 = vmatpush2.msra.mxu0 %v1169
      %3067 = vmatprep.subr.mxu0 %v1163
      %3068 = vmatpush2.msra.mxu0 %v1162
      %3069 = vmatprep.subr.mxu0 %v1156
      %3070 = vmatpush2.msra.mxu0 %v1155
      %3071 = vmatprep.subr.mxu0 %v1149
      %3072 = vmatpush2.msra.mxu0 %v1148
      %3073 = vmatprep.subr.mxu0 %v1142
      %3074 = vmatpush2.msra.mxu0 %v1141
      %3075 = vmatprep.subr.mxu0 %v1135
      %3076 = vmatpush2.msra.mxu0 %v1134
      %3077 = vmatprep.subr.mxu0 %v1128
      %3078 = vmatpush2.msra.mxu0 %v1127
      %3079 = vmatprep.subr.mxu0 %v1121
      %3080 = vmatpush2.msra.mxu0 %v1120
      %3081 = vmatprep.mubr.f32.mxu0 %v1373
      %3082 = vmatmul.mubr.f32.gmra.mxu0 %v1372
      %v3083 = vpop.f32.mrf.mxu0
      %v3084 = vadd.f32 %v2767, %v3083
      %v3085 = vpop.f32.mrf.mxu0
      %v3086 = vadd.f32 %v2769, %v3085
      %3087 = vmatprep.mubr.f32.mxu0 %v1379
      %3088 = vmatmul.mubr.f32.gmra.mxu0 %v1378
      %v3089 = vpop.f32.mrf.mxu0
      %v3090 = vadd.f32 %v2773, %v3089
      %v3091 = vpop.f32.mrf.mxu0
      %v3092 = vadd.f32 %v2775, %v3091
      %3093 = vmatprep.mubr.f32.mxu0 %v1385
      %3094 = vmatmul.mubr.f32.gmra.mxu0 %v1384
      %v3095 = vpop.f32.mrf.mxu0
      %v3096 = vadd.f32 %v2779, %v3095
      %v3097 = vpop.f32.mrf.mxu0
      %v3098 = vadd.f32 %v2781, %v3097
      %3099 = vmatprep.mubr.f32.mxu0 %v1391
      %3100 = vmatmul.mubr.f32.gmra.mxu0 %v1390
      %v3101 = vpop.f32.mrf.mxu0
      %v3102 = vadd.f32 %v2785, %v3101
      %v3103 = vpop.f32.mrf.mxu0
      %v3104 = vadd.f32 %v2787, %v3103
      %3105 = vmatprep.mubr.f32.mxu0 %v1397
      %3106 = vmatmul.mubr.f32.gmra.mxu0 %v1396
      %v3107 = vpop.f32.mrf.mxu0
      %v3108 = vadd.f32 %v2791, %v3107
      %v3109 = vpop.f32.mrf.mxu0
      %v3110 = vadd.f32 %v2793, %v3109
      %3111 = vmatprep.mubr.f32.mxu0 %v1403
      %3112 = vmatmul.mubr.f32.gmra.mxu0 %v1402
      %v3113 = vpop.f32.mrf.mxu0
      %v3114 = vadd.f32 %v2797, %v3113
      %v3115 = vpop.f32.mrf.mxu0
      %v3116 = vadd.f32 %v2799, %v3115
      %3117 = vmatprep.mubr.f32.mxu0 %v1409
      %3118 = vmatmul.mubr.f32.gmra.mxu0 %v1408
      %v3119 = vpop.f32.mrf.mxu0
      %v3120 = vadd.f32 %v2803, %v3119
      %v3121 = vpop.f32.mrf.mxu0
      %v3122 = vadd.f32 %v2805, %v3121
      %3123 = vmatprep.mubr.f32.mxu0 %v1415
      %3124 = vmatmul.mubr.f32.gmra.mxu0 %v1414
      %v3125 = vpop.f32.mrf.mxu0
      %v3126 = vadd.f32 %v2809, %v3125
      %v3127 = vpop.f32.mrf.mxu0
      %v3128 = vadd.f32 %v2811, %v3127
      %3129 = vmatprep.mubr.f32.mxu0 %v1421
      %3130 = vmatmul.mubr.f32.gmra.mxu0 %v1420
      %v3131 = vpop.f32.mrf.mxu0
      %v3132 = vadd.f32 %v2815, %v3131
      %v3133 = vpop.f32.mrf.mxu0
      %v3134 = vadd.f32 %v2817, %v3133
      %3135 = vmatprep.mubr.f32.mxu0 %v1427
      %3136 = vmatmul.mubr.f32.gmra.mxu0 %v1426
      %v3137 = vpop.f32.mrf.mxu0
      %v3138 = vadd.f32 %v2821, %v3137
      %v3139 = vpop.f32.mrf.mxu0
      %v3140 = vadd.f32 %v2823, %v3139
      %3141 = vmatprep.mubr.f32.mxu0 %v1433
      %3142 = vmatmul.mubr.f32.gmra.mxu0 %v1432
      %v3143 = vpop.f32.mrf.mxu0
      %v3144 = vadd.f32 %v2827, %v3143
      %v3145 = vpop.f32.mrf.mxu0
      %v3146 = vadd.f32 %v2829, %v3145
      %3147 = vmatprep.mubr.f32.mxu0 %v1439
      %3148 = vmatmul.mubr.f32.gmra.mxu0 %v1438
      %v3149 = vpop.f32.mrf.mxu0
      %v3150 = vadd.f32 %v2833, %v3149
      %v3151 = vpop.f32.mrf.mxu0
      %v3152 = vadd.f32 %v2835, %v3151
      %3153 = vmatprep.mubr.f32.mxu0 %v1445
      %3154 = vmatmul.mubr.f32.gmra.mxu0 %v1444
      %v3155 = vpop.f32.mrf.mxu0
      %v3156 = vadd.f32 %v2839, %v3155
      %v3157 = vpop.f32.mrf.mxu0
      %v3158 = vadd.f32 %v2841, %v3157
      %3159 = vmatprep.mubr.f32.mxu0 %v1451
      %3160 = vmatmul.mubr.f32.gmra.mxu0 %v1450
      %v3161 = vpop.f32.mrf.mxu0
      %v3162 = vadd.f32 %v2845, %v3161
      %v3163 = vpop.f32.mrf.mxu0
      %v3164 = vadd.f32 %v2847, %v3163
      %3165 = vmatprep.mubr.f32.mxu0 %v1457
      %3166 = vmatmul.mubr.f32.gmra.mxu0 %v1456
      %v3167 = vpop.f32.mrf.mxu0
      %v3168 = vadd.f32 %v2851, %v3167
      %v3169 = vpop.f32.mrf.mxu0
      %v3170 = vadd.f32 %v2853, %v3169
      %3171 = vmatprep.mubr.f32.mxu0 %v1463
      %3172 = vmatmul.mubr.f32.gmra.mxu0 %v1462
      %v3173 = vpop.f32.mrf.mxu0
      %v3174 = vadd.f32 %v2857, %v3173
      %v3175 = vpop.f32.mrf.mxu0
      %v3176 = vadd.f32 %v2859, %v3175
      %3177 = vmatprep.mubr.f32.mxu0 %v1469
      %3178 = vmatmul.mubr.f32.gmra.mxu0 %v1468
      %v3179 = vpop.f32.mrf.mxu0
      %v3180 = vadd.f32 %v2863, %v3179
      %v3181 = vpop.f32.mrf.mxu0
      %v3182 = vadd.f32 %v2865, %v3181
      %3183 = vmatprep.mubr.f32.mxu0 %v1475
      %3184 = vmatmul.mubr.f32.gmra.mxu0 %v1474
      %v3185 = vpop.f32.mrf.mxu0
      %v3186 = vadd.f32 %v2869, %v3185
      %v3187 = vpop.f32.mrf.mxu0
      %v3188 = vadd.f32 %v2871, %v3187
      %3189 = vmatprep.mubr.f32.mxu0 %v1481
      %3190 = vmatmul.mubr.f32.gmra.mxu0 %v1480
      %v3191 = vpop.f32.mrf.mxu0
      %v3192 = vadd.f32 %v2875, %v3191
      %v3193 = vpop.f32.mrf.mxu0
      %v3194 = vadd.f32 %v2877, %v3193
      %3195 = vmatprep.mubr.f32.mxu0 %v1487
      %3196 = vmatmul.mubr.f32.gmra.mxu0 %v1486
      %v3197 = vpop.f32.mrf.mxu0
      %v3198 = vadd.f32 %v2881, %v3197
      %v3199 = vpop.f32.mrf.mxu0
      %v3200 = vadd.f32 %v2883, %v3199
      %3201 = vmatprep.mubr.f32.mxu0 %v1493
      %3202 = vmatmul.mubr.f32.gmra.mxu0 %v1492
      %v3203 = vpop.f32.mrf.mxu0
      %v3204 = vadd.f32 %v2887, %v3203
      %v3205 = vpop.f32.mrf.mxu0
      %v3206 = vadd.f32 %v2889, %v3205
      %3207 = vmatprep.mubr.f32.mxu0 %v1499
      %3208 = vmatmul.mubr.f32.gmra.mxu0 %v1498
      %v3209 = vpop.f32.mrf.mxu0
      %v3210 = vadd.f32 %v2893, %v3209
      %v3211 = vpop.f32.mrf.mxu0
      %v3212 = vadd.f32 %v2895, %v3211
      %3213 = vmatprep.mubr.f32.mxu0 %v1505
      %3214 = vmatmul.mubr.f32.gmra.mxu0 %v1504
      %v3215 = vpop.f32.mrf.mxu0
      %v3216 = vadd.f32 %v2899, %v3215
      %v3217 = vpop.f32.mrf.mxu0
      %v3218 = vadd.f32 %v2901, %v3217
      %3219 = vmatprep.mubr.f32.mxu0 %v1511
      %3220 = vmatmul.mubr.f32.gmra.mxu0 %v1510
      %v3221 = vpop.f32.mrf.mxu0
      %v3222 = vadd.f32 %v2905, %v3221
      %v3223 = vpop.f32.mrf.mxu0
      %v3224 = vadd.f32 %v2907, %v3223
      %3225 = vmatprep.mubr.f32.mxu0 %v1517
      %3226 = vmatmul.mubr.f32.gmra.mxu0 %v1516
      %v3227 = vpop.f32.mrf.mxu0
      %v3228 = vadd.f32 %v2911, %v3227
      %v3229 = vpop.f32.mrf.mxu0
      %v3230 = vadd.f32 %v2913, %v3229
      %3231 = vmatprep.mubr.f32.mxu0 %v1523
      %3232 = vmatmul.mubr.f32.gmra.mxu0 %v1522
      %v3233 = vpop.f32.mrf.mxu0
      %v3234 = vadd.f32 %v2917, %v3233
      %v3235 = vpop.f32.mrf.mxu0
      %v3236 = vadd.f32 %v2919, %v3235
      %3237 = vmatprep.mubr.f32.mxu0 %v1529
      %3238 = vmatmul.mubr.f32.gmra.mxu0 %v1528
      %v3239 = vpop.f32.mrf.mxu0
      %v3240 = vadd.f32 %v2923, %v3239
      %v3241 = vpop.f32.mrf.mxu0
      %v3242 = vadd.f32 %v2925, %v3241
      %3243 = vmatprep.mubr.f32.mxu0 %v1535
      %3244 = vmatmul.mubr.f32.gmra.mxu0 %v1534
      %v3245 = vpop.f32.mrf.mxu0
      %v3246 = vadd.f32 %v2929, %v3245
      %v3247 = vpop.f32.mrf.mxu0
      %v3248 = vadd.f32 %v2931, %v3247
      %3249 = vmatprep.mubr.f32.mxu0 %v1541
      %3250 = vmatmul.mubr.f32.gmra.mxu0 %v1540
      %v3251 = vpop.f32.mrf.mxu0
      %v3252 = vadd.f32 %v2935, %v3251
      %v3253 = vpop.f32.mrf.mxu0
      %v3254 = vadd.f32 %v2937, %v3253
      %3255 = vmatprep.mubr.f32.mxu0 %v1547
      %3256 = vmatmul.mubr.f32.gmra.mxu0 %v1546
      %v3257 = vpop.f32.mrf.mxu0
      %v3258 = vadd.f32 %v2941, %v3257
      %v3259 = vpop.f32.mrf.mxu0
      %v3260 = vadd.f32 %v2943, %v3259
      %3261 = vmatprep.mubr.f32.mxu0 %v1553
      %3262 = vmatmul.mubr.f32.gmra.mxu0 %v1552
      %v3263 = vpop.f32.mrf.mxu0
      %v3264 = vadd.f32 %v2947, %v3263
      %v3265 = vpop.f32.mrf.mxu0
      %v3266 = vadd.f32 %v2949, %v3265
      %3267 = vmatprep.mubr.f32.mxu0 %v1559
      %3268 = vmatmul.mubr.f32.gmra.mxu0 %v1558
      %v3269 = vpop.f32.mrf.mxu0
      %v3270 = vadd.f32 %v2953, %v3269
      %v3271 = vpop.f32.mrf.mxu0
      %v3272 = vadd.f32 %v2955, %v3271
      %3273 = vmatprep.mubr.f32.mxu0 %v1565
      %3274 = vmatmul.mubr.f32.gmra.mxu0 %v1564
      %v3275 = vpop.f32.mrf.mxu0
      %v3276 = vadd.f32 %v2959, %v3275
      %v3277 = vpop.f32.mrf.mxu0
      %v3278 = vadd.f32 %v2961, %v3277
      %3279 = vmatprep.mubr.f32.mxu0 %v1571
      %3280 = vmatmul.mubr.f32.gmra.mxu0 %v1570
      %v3281 = vpop.f32.mrf.mxu0
      %v3282 = vadd.f32 %v2965, %v3281
      %v3283 = vpop.f32.mrf.mxu0
      %v3284 = vadd.f32 %v2967, %v3283
      %3285 = vmatprep.mubr.f32.mxu0 %v1577
      %3286 = vmatmul.mubr.f32.gmra.mxu0 %v1576
      %v3287 = vpop.f32.mrf.mxu0
      %v3288 = vadd.f32 %v2971, %v3287
      %v3289 = vpop.f32.mrf.mxu0
      %v3290 = vadd.f32 %v2973, %v3289
      %3291 = vmatprep.mubr.f32.mxu0 %v1583
      %3292 = vmatmul.mubr.f32.gmra.mxu0 %v1582
      %v3293 = vpop.f32.mrf.mxu0
      %v3294 = vadd.f32 %v2977, %v3293
      %v3295 = vpop.f32.mrf.mxu0
      %v3296 = vadd.f32 %v2979, %v3295
      %3297 = vmatprep.mubr.f32.mxu0 %v1589
      %3298 = vmatmul.mubr.f32.gmra.mxu0 %v1588
      %v3299 = vpop.f32.mrf.mxu0
      %v3300 = vadd.f32 %v2983, %v3299
      %v3301 = vpop.f32.mrf.mxu0
      %v3302 = vadd.f32 %v2985, %v3301
      %3303 = vmatprep.mubr.f32.mxu0 %v1595
      %3304 = vmatmul.mubr.f32.gmra.mxu0 %v1594
      %v3305 = vpop.f32.mrf.mxu0
      %v3306 = vadd.f32 %v2989, %v3305
      %v3307 = vpop.f32.mrf.mxu0
      %v3308 = vadd.f32 %v2991, %v3307
      %3309 = vmatprep.mubr.f32.mxu0 %v1601
      %3310 = vmatmul.mubr.f32.gmra.mxu0 %v1600
      %v3311 = vpop.f32.mrf.mxu0
      %v3312 = vadd.f32 %v2995, %v3311
      %v3313 = vpop.f32.mrf.mxu0
      %v3314 = vadd.f32 %v2997, %v3313
      %3315 = vmatprep.mubr.f32.mxu0 %v1607
      %3316 = vmatmul.mubr.f32.gmra.mxu0 %v1606
      %v3317 = vpop.f32.mrf.mxu0
      %v3318 = vadd.f32 %v3001, %v3317
      %v3319 = vpop.f32.mrf.mxu0
      %v3320 = vadd.f32 %v3003, %v3319
      %3321 = vmatprep.mubr.f32.mxu0 %v1613
      %3322 = vmatmul.mubr.f32.gmra.mxu0 %v1612
      %v3323 = vpop.f32.mrf.mxu0
      %v3324 = vadd.f32 %v3007, %v3323
      %v3325 = vpop.f32.mrf.mxu0
      %v3326 = vadd.f32 %v3009, %v3325
      %3327 = vmatprep.mubr.f32.mxu0 %v1619
      %3328 = vmatmul.mubr.f32.gmra.mxu0 %v1618
      %v3329 = vpop.f32.mrf.mxu0
      %v3330 = vadd.f32 %v3013, %v3329
      %v3331 = vpop.f32.mrf.mxu0
      %v3332 = vadd.f32 %v3015, %v3331
      %3333 = vdwg.mxu0
      %3334 = vmatprep.subr.mxu0 %v1338
      %3335 = vmatpush1.msra.mxu0 %v1337
      %3336 = vmatprep.subr.mxu0 %v1331
      %3337 = vmatpush1.msra.mxu0 %v1330
      %3338 = vmatprep.subr.mxu0 %v1324
      %3339 = vmatpush1.msra.mxu0 %v1323
      %3340 = vmatprep.subr.mxu0 %v1317
      %3341 = vmatpush1.msra.mxu0 %v1316
      %3342 = vmatprep.subr.mxu0 %v1310
      %3343 = vmatpush1.msra.mxu0 %v1309
      %3344 = vmatprep.subr.mxu0 %v1303
      %3345 = vmatpush1.msra.mxu0 %v1302
      %3346 = vmatprep.subr.mxu0 %v1296
      %3347 = vmatpush1.msra.mxu0 %v1295
      %3348 = vmatprep.subr.mxu0 %v1289
      %3349 = vmatpush1.msra.mxu0 %v1288
      %3350 = vmatprep.subr.mxu0 %v1282
      %3351 = vmatpush1.msra.mxu0 %v1281
      %3352 = vmatprep.subr.mxu0 %v1275
      %3353 = vmatpush1.msra.mxu0 %v1274
      %3354 = vmatprep.subr.mxu0 %v1268
      %3355 = vmatpush1.msra.mxu0 %v1267
      %3356 = vmatprep.subr.mxu0 %v1261
      %3357 = vmatpush1.msra.mxu0 %v1260
      %3358 = vmatprep.subr.mxu0 %v1254
      %3359 = vmatpush1.msra.mxu0 %v1253
      %3360 = vmatprep.subr.mxu0 %v1247
      %3361 = vmatpush1.msra.mxu0 %v1246
      %3362 = vmatprep.subr.mxu0 %v1240
      %3363 = vmatpush1.msra.mxu0 %v1239
      %3364 = vmatprep.subr.mxu0 %v1233
      %3365 = vmatpush1.msra.mxu0 %v1232
      %3366 = vmatprep.subr.mxu0 0.0
      %3367 = vmatpush2.msra.mxu0 0.0
      %3368 = vmatprep.subr.mxu0 0.0
      %3369 = vmatpush2.msra.mxu0 0.0
      %3370 = vmatprep.subr.mxu0 0.0
      %3371 = vmatpush2.msra.mxu0 0.0
      %3372 = vmatprep.subr.mxu0 0.0
      %3373 = vmatpush2.msra.mxu0 0.0
      %3374 = vmatprep.subr.mxu0 0.0
      %3375 = vmatpush2.msra.mxu0 0.0
      %3376 = vmatprep.subr.mxu0 0.0
      %3377 = vmatpush2.msra.mxu0 0.0
      %3378 = vmatprep.subr.mxu0 0.0
      %3379 = vmatpush2.msra.mxu0 0.0
      %3380 = vmatprep.subr.mxu0 0.0
      %3381 = vmatpush2.msra.mxu0 0.0
      %3382 = vmatprep.subr.mxu0 0.0
      %3383 = vmatpush2.msra.mxu0 0.0
      %3384 = vmatprep.subr.mxu0 0.0
      %3385 = vmatpush2.msra.mxu0 0.0
      %3386 = vmatprep.subr.mxu0 0.0
      %3387 = vmatpush2.msra.mxu0 0.0
      %3388 = vmatprep.subr.mxu0 0.0
      %3389 = vmatpush2.msra.mxu0 0.0
      %3390 = vmatprep.subr.mxu0 %v1366
      %3391 = vmatpush2.msra.mxu0 %v1365
      %3392 = vmatprep.subr.mxu0 %v1359
      %3393 = vmatpush2.msra.mxu0 %v1358
      %3394 = vmatprep.subr.mxu0 %v1352
      %3395 = vmatpush2.msra.mxu0 %v1351
      %3396 = vmatprep.subr.mxu0 %v1345
      %3397 = vmatpush2.msra.mxu0 %v1344
      %3398 = vmatprep.mubr.f32.mxu0 %v1624
      %3399 = vmatmul.mubr.f32.gmra.mxu0 %v1374
      %v3400 = vpop.f32.mrf.mxu0
      %v3401 = vadd.f32 %v3084, %v3400
      %v3402 = vpop.f32.mrf.mxu0
      %v3403 = vadd.f32 %v3086, %v3402
      %3404 = vmatprep.mubr.f32.mxu0 %v1627
      %3405 = vmatmul.mubr.f32.gmra.mxu0 %v1380
      %v3406 = vpop.f32.mrf.mxu0
      %v3407 = vadd.f32 %v3090, %v3406
      %v3408 = vpop.f32.mrf.mxu0
      %v3409 = vadd.f32 %v3092, %v3408
      %3410 = vmatprep.mubr.f32.mxu0 %v1630
      %3411 = vmatmul.mubr.f32.gmra.mxu0 %v1386
      %v3412 = vpop.f32.mrf.mxu0
      %v3413 = vadd.f32 %v3096, %v3412
      %v3414 = vpop.f32.mrf.mxu0
      %v3415 = vadd.f32 %v3098, %v3414
      %3416 = vmatprep.mubr.f32.mxu0 %v1633
      %3417 = vmatmul.mubr.f32.gmra.mxu0 %v1392
      %v3418 = vpop.f32.mrf.mxu0
      %v3419 = vadd.f32 %v3102, %v3418
      %v3420 = vpop.f32.mrf.mxu0
      %v3421 = vadd.f32 %v3104, %v3420
      %3422 = vmatprep.mubr.f32.mxu0 %v1636
      %3423 = vmatmul.mubr.f32.gmra.mxu0 %v1398
      %v3424 = vpop.f32.mrf.mxu0
      %v3425 = vadd.f32 %v3108, %v3424
      %v3426 = vpop.f32.mrf.mxu0
      %v3427 = vadd.f32 %v3110, %v3426
      %3428 = vmatprep.mubr.f32.mxu0 %v1639
      %3429 = vmatmul.mubr.f32.gmra.mxu0 %v1404
      %v3430 = vpop.f32.mrf.mxu0
      %v3431 = vadd.f32 %v3114, %v3430
      %v3432 = vpop.f32.mrf.mxu0
      %v3433 = vadd.f32 %v3116, %v3432
      %3434 = vmatprep.mubr.f32.mxu0 %v1642
      %3435 = vmatmul.mubr.f32.gmra.mxu0 %v1410
      %v3436 = vpop.f32.mrf.mxu0
      %v3437 = vadd.f32 %v3120, %v3436
      %v3438 = vpop.f32.mrf.mxu0
      %v3439 = vadd.f32 %v3122, %v3438
      %3440 = vmatprep.mubr.f32.mxu0 %v1645
      %3441 = vmatmul.mubr.f32.gmra.mxu0 %v1416
      %v3442 = vpop.f32.mrf.mxu0
      %v3443 = vadd.f32 %v3126, %v3442
      %v3444 = vpop.f32.mrf.mxu0
      %v3445 = vadd.f32 %v3128, %v3444
      %3446 = vmatprep.mubr.f32.mxu0 %v1648
      %3447 = vmatmul.mubr.f32.gmra.mxu0 %v1422
      %v3448 = vpop.f32.mrf.mxu0
      %v3449 = vadd.f32 %v3132, %v3448
      %v3450 = vpop.f32.mrf.mxu0
      %v3451 = vadd.f32 %v3134, %v3450
      %3452 = vmatprep.mubr.f32.mxu0 %v1651
      %3453 = vmatmul.mubr.f32.gmra.mxu0 %v1428
      %v3454 = vpop.f32.mrf.mxu0
      %v3455 = vadd.f32 %v3138, %v3454
      %v3456 = vpop.f32.mrf.mxu0
      %v3457 = vadd.f32 %v3140, %v3456
      %3458 = vmatprep.mubr.f32.mxu0 %v1654
      %3459 = vmatmul.mubr.f32.gmra.mxu0 %v1434
      %v3460 = vpop.f32.mrf.mxu0
      %v3461 = vadd.f32 %v3144, %v3460
      %v3462 = vpop.f32.mrf.mxu0
      %v3463 = vadd.f32 %v3146, %v3462
      %3464 = vmatprep.mubr.f32.mxu0 %v1657
      %3465 = vmatmul.mubr.f32.gmra.mxu0 %v1440
      %v3466 = vpop.f32.mrf.mxu0
      %v3467 = vadd.f32 %v3150, %v3466
      %v3468 = vpop.f32.mrf.mxu0
      %v3469 = vadd.f32 %v3152, %v3468
      %3470 = vmatprep.mubr.f32.mxu0 %v1660
      %3471 = vmatmul.mubr.f32.gmra.mxu0 %v1446
      %v3472 = vpop.f32.mrf.mxu0
      %v3473 = vadd.f32 %v3156, %v3472
      %v3474 = vpop.f32.mrf.mxu0
      %v3475 = vadd.f32 %v3158, %v3474
      %3476 = vmatprep.mubr.f32.mxu0 %v1663
      %3477 = vmatmul.mubr.f32.gmra.mxu0 %v1452
      %v3478 = vpop.f32.mrf.mxu0
      %v3479 = vadd.f32 %v3162, %v3478
      %v3480 = vpop.f32.mrf.mxu0
      %v3481 = vadd.f32 %v3164, %v3480
      %3482 = vmatprep.mubr.f32.mxu0 %v1666
      %3483 = vmatmul.mubr.f32.gmra.mxu0 %v1458
      %v3484 = vpop.f32.mrf.mxu0
      %v3485 = vadd.f32 %v3168, %v3484
      %v3486 = vpop.f32.mrf.mxu0
      %v3487 = vadd.f32 %v3170, %v3486
      %3488 = vmatprep.mubr.f32.mxu0 %v1669
      %3489 = vmatmul.mubr.f32.gmra.mxu0 %v1464
      %v3490 = vpop.f32.mrf.mxu0
      %v3491 = vadd.f32 %v3174, %v3490
      %v3492 = vpop.f32.mrf.mxu0
      %v3493 = vadd.f32 %v3176, %v3492
      %3494 = vmatprep.mubr.f32.mxu0 %v1672
      %3495 = vmatmul.mubr.f32.gmra.mxu0 %v1470
      %v3496 = vpop.f32.mrf.mxu0
      %v3497 = vadd.f32 %v3180, %v3496
      %v3498 = vpop.f32.mrf.mxu0
      %v3499 = vadd.f32 %v3182, %v3498
      %3500 = vmatprep.mubr.f32.mxu0 %v1675
      %3501 = vmatmul.mubr.f32.gmra.mxu0 %v1476
      %v3502 = vpop.f32.mrf.mxu0
      %v3503 = vadd.f32 %v3186, %v3502
      %v3504 = vpop.f32.mrf.mxu0
      %v3505 = vadd.f32 %v3188, %v3504
      %3506 = vmatprep.mubr.f32.mxu0 %v1678
      %3507 = vmatmul.mubr.f32.gmra.mxu0 %v1482
      %v3508 = vpop.f32.mrf.mxu0
      %v3509 = vadd.f32 %v3192, %v3508
      %v3510 = vpop.f32.mrf.mxu0
      %v3511 = vadd.f32 %v3194, %v3510
      %3512 = vmatprep.mubr.f32.mxu0 %v1681
      %3513 = vmatmul.mubr.f32.gmra.mxu0 %v1488
      %v3514 = vpop.f32.mrf.mxu0
      %v3515 = vadd.f32 %v3198, %v3514
      %v3516 = vpop.f32.mrf.mxu0
      %v3517 = vadd.f32 %v3200, %v3516
      %3518 = vmatprep.mubr.f32.mxu0 %v1684
      %3519 = vmatmul.mubr.f32.gmra.mxu0 %v1494
      %v3520 = vpop.f32.mrf.mxu0
      %v3521 = vadd.f32 %v3204, %v3520
      %v3522 = vpop.f32.mrf.mxu0
      %v3523 = vadd.f32 %v3206, %v3522
      %3524 = vmatprep.mubr.f32.mxu0 %v1687
      %3525 = vmatmul.mubr.f32.gmra.mxu0 %v1500
      %v3526 = vpop.f32.mrf.mxu0
      %v3527 = vadd.f32 %v3210, %v3526
      %v3528 = vpop.f32.mrf.mxu0
      %v3529 = vadd.f32 %v3212, %v3528
      %3530 = vmatprep.mubr.f32.mxu0 %v1690
      %3531 = vmatmul.mubr.f32.gmra.mxu0 %v1506
      %v3532 = vpop.f32.mrf.mxu0
      %v3533 = vadd.f32 %v3216, %v3532
      %v3534 = vpop.f32.mrf.mxu0
      %v3535 = vadd.f32 %v3218, %v3534
      %3536 = vmatprep.mubr.f32.mxu0 %v1693
      %3537 = vmatmul.mubr.f32.gmra.mxu0 %v1512
      %v3538 = vpop.f32.mrf.mxu0
      %v3539 = vadd.f32 %v3222, %v3538
      %v3540 = vpop.f32.mrf.mxu0
      %v3541 = vadd.f32 %v3224, %v3540
      %3542 = vmatprep.mubr.f32.mxu0 %v1696
      %3543 = vmatmul.mubr.f32.gmra.mxu0 %v1518
      %v3544 = vpop.f32.mrf.mxu0
      %v3545 = vadd.f32 %v3228, %v3544
      %v3546 = vpop.f32.mrf.mxu0
      %v3547 = vadd.f32 %v3230, %v3546
      %3548 = vmatprep.mubr.f32.mxu0 %v1699
      %3549 = vmatmul.mubr.f32.gmra.mxu0 %v1524
      %v3550 = vpop.f32.mrf.mxu0
      %v3551 = vadd.f32 %v3234, %v3550
      %v3552 = vpop.f32.mrf.mxu0
      %v3553 = vadd.f32 %v3236, %v3552
      %3554 = vmatprep.mubr.f32.mxu0 %v1702
      %3555 = vmatmul.mubr.f32.gmra.mxu0 %v1530
      %v3556 = vpop.f32.mrf.mxu0
      %v3557 = vadd.f32 %v3240, %v3556
      %v3558 = vpop.f32.mrf.mxu0
      %v3559 = vadd.f32 %v3242, %v3558
      %3560 = vmatprep.mubr.f32.mxu0 %v1705
      %3561 = vmatmul.mubr.f32.gmra.mxu0 %v1536
      %v3562 = vpop.f32.mrf.mxu0
      %v3563 = vadd.f32 %v3246, %v3562
      %v3564 = vpop.f32.mrf.mxu0
      %v3565 = vadd.f32 %v3248, %v3564
      %3566 = vmatprep.mubr.f32.mxu0 %v1708
      %3567 = vmatmul.mubr.f32.gmra.mxu0 %v1542
      %v3568 = vpop.f32.mrf.mxu0
      %v3569 = vadd.f32 %v3252, %v3568
      %v3570 = vpop.f32.mrf.mxu0
      %v3571 = vadd.f32 %v3254, %v3570
      %3572 = vmatprep.mubr.f32.mxu0 %v1711
      %3573 = vmatmul.mubr.f32.gmra.mxu0 %v1548
      %v3574 = vpop.f32.mrf.mxu0
      %v3575 = vadd.f32 %v3258, %v3574
      %v3576 = vpop.f32.mrf.mxu0
      %v3577 = vadd.f32 %v3260, %v3576
      %3578 = vmatprep.mubr.f32.mxu0 %v1714
      %3579 = vmatmul.mubr.f32.gmra.mxu0 %v1554
      %v3580 = vpop.f32.mrf.mxu0
      %v3581 = vadd.f32 %v3264, %v3580
      %v3582 = vpop.f32.mrf.mxu0
      %v3583 = vadd.f32 %v3266, %v3582
      %3584 = vmatprep.mubr.f32.mxu0 %v1717
      %3585 = vmatmul.mubr.f32.gmra.mxu0 %v1560
      %v3586 = vpop.f32.mrf.mxu0
      %v3587 = vadd.f32 %v3270, %v3586
      %v3588 = vpop.f32.mrf.mxu0
      %v3589 = vadd.f32 %v3272, %v3588
      %3590 = vmatprep.mubr.f32.mxu0 %v1720
      %3591 = vmatmul.mubr.f32.gmra.mxu0 %v1566
      %v3592 = vpop.f32.mrf.mxu0
      %v3593 = vadd.f32 %v3276, %v3592
      %v3594 = vpop.f32.mrf.mxu0
      %v3595 = vadd.f32 %v3278, %v3594
      %3596 = vmatprep.mubr.f32.mxu0 %v1723
      %3597 = vmatmul.mubr.f32.gmra.mxu0 %v1572
      %v3598 = vpop.f32.mrf.mxu0
      %v3599 = vadd.f32 %v3282, %v3598
      %v3600 = vpop.f32.mrf.mxu0
      %v3601 = vadd.f32 %v3284, %v3600
      %3602 = vmatprep.mubr.f32.mxu0 %v1726
      %3603 = vmatmul.mubr.f32.gmra.mxu0 %v1578
      %v3604 = vpop.f32.mrf.mxu0
      %v3605 = vadd.f32 %v3288, %v3604
      %v3606 = vpop.f32.mrf.mxu0
      %v3607 = vadd.f32 %v3290, %v3606
      %3608 = vmatprep.mubr.f32.mxu0 %v1729
      %3609 = vmatmul.mubr.f32.gmra.mxu0 %v1584
      %v3610 = vpop.f32.mrf.mxu0
      %v3611 = vadd.f32 %v3294, %v3610
      %v3612 = vpop.f32.mrf.mxu0
      %v3613 = vadd.f32 %v3296, %v3612
      %3614 = vmatprep.mubr.f32.mxu0 %v1732
      %3615 = vmatmul.mubr.f32.gmra.mxu0 %v1590
      %v3616 = vpop.f32.mrf.mxu0
      %v3617 = vadd.f32 %v3300, %v3616
      %v3618 = vpop.f32.mrf.mxu0
      %v3619 = vadd.f32 %v3302, %v3618
      %3620 = vmatprep.mubr.f32.mxu0 %v1735
      %3621 = vmatmul.mubr.f32.gmra.mxu0 %v1596
      %v3622 = vpop.f32.mrf.mxu0
      %v3623 = vadd.f32 %v3306, %v3622
      %v3624 = vpop.f32.mrf.mxu0
      %v3625 = vadd.f32 %v3308, %v3624
      %3626 = vmatprep.mubr.f32.mxu0 %v1738
      %3627 = vmatmul.mubr.f32.gmra.mxu0 %v1602
      %v3628 = vpop.f32.mrf.mxu0
      %v3629 = vadd.f32 %v3312, %v3628
      %v3630 = vpop.f32.mrf.mxu0
      %v3631 = vadd.f32 %v3314, %v3630
      %3632 = vmatprep.mubr.f32.mxu0 %v1741
      %3633 = vmatmul.mubr.f32.gmra.mxu0 %v1608
      %v3634 = vpop.f32.mrf.mxu0
      %v3635 = vadd.f32 %v3318, %v3634
      %v3636 = vpop.f32.mrf.mxu0
      %v3637 = vadd.f32 %v3320, %v3636
      %3638 = vmatprep.mubr.f32.mxu0 %v1744
      %3639 = vmatmul.mubr.f32.gmra.mxu0 %v1614
      %v3640 = vpop.f32.mrf.mxu0
      %v3641 = vadd.f32 %v3324, %v3640
      %v3642 = vpop.f32.mrf.mxu0
      %v3643 = vadd.f32 %v3326, %v3642
      %3644 = vmatprep.mubr.f32.mxu0 %v1747
      %3645 = vmatmul.mubr.f32.gmra.mxu0 %v1620
      %v3646 = vpop.f32.mrf.mxu0
      %v3647 = vadd.f32 %v3330, %v3646
      %v3648 = vpop.f32.mrf.mxu0
      %v3649 = vadd.f32 %v3332, %v3648
      %3650 = vdwg.mxu0
      %3651 = vmatprep.subr.mxu0 %v892
      %3652 = vmatpush1.msra.mxu0 %v891
      %3653 = vmatprep.subr.mxu0 %v885
      %3654 = vmatpush1.msra.mxu0 %v884
      %3655 = vmatprep.subr.mxu0 %v878
      %3656 = vmatpush1.msra.mxu0 %v877
      %3657 = vmatprep.subr.mxu0 %v871
      %3658 = vmatpush1.msra.mxu0 %v870
      %3659 = vmatprep.subr.mxu0 %v864
      %3660 = vmatpush1.msra.mxu0 %v863
      %3661 = vmatprep.subr.mxu0 %v857
      %3662 = vmatpush1.msra.mxu0 %v856
      %3663 = vmatprep.subr.mxu0 %v850
      %3664 = vmatpush1.msra.mxu0 %v849
      %3665 = vmatprep.subr.mxu0 %v843
      %3666 = vmatpush1.msra.mxu0 %v842
      %3667 = vmatprep.subr.mxu0 %v836
      %3668 = vmatpush1.msra.mxu0 %v835
      %3669 = vmatprep.subr.mxu0 %v829
      %3670 = vmatpush1.msra.mxu0 %v828
      %3671 = vmatprep.subr.mxu0 %v822
      %3672 = vmatpush1.msra.mxu0 %v821
      %3673 = vmatprep.subr.mxu0 %v815
      %3674 = vmatpush1.msra.mxu0 %v814
      %3675 = vmatprep.subr.mxu0 %v808
      %3676 = vmatpush1.msra.mxu0 %v807
      %3677 = vmatprep.subr.mxu0 %v801
      %3678 = vmatpush1.msra.mxu0 %v800
      %3679 = vmatprep.subr.mxu0 %v794
      %3680 = vmatpush1.msra.mxu0 %v793
      %3681 = vmatprep.subr.mxu0 %v787
      %3682 = vmatpush1.msra.mxu0 %v786
      %3683 = vmatprep.subr.mxu0 %v1004
      %3684 = vmatpush2.msra.mxu0 %v1003
      %3685 = vmatprep.subr.mxu0 %v997
      %3686 = vmatpush2.msra.mxu0 %v996
      %3687 = vmatprep.subr.mxu0 %v990
      %3688 = vmatpush2.msra.mxu0 %v989
      %3689 = vmatprep.subr.mxu0 %v983
      %3690 = vmatpush2.msra.mxu0 %v982
      %3691 = vmatprep.subr.mxu0 %v976
      %3692 = vmatpush2.msra.mxu0 %v975
      %3693 = vmatprep.subr.mxu0 %v969
      %3694 = vmatpush2.msra.mxu0 %v968
      %3695 = vmatprep.subr.mxu0 %v962
      %3696 = vmatpush2.msra.mxu0 %v961
      %3697 = vmatprep.subr.mxu0 %v955
      %3698 = vmatpush2.msra.mxu0 %v954
      %3699 = vmatprep.subr.mxu0 %v948
      %3700 = vmatpush2.msra.mxu0 %v947
      %3701 = vmatprep.subr.mxu0 %v941
      %3702 = vmatpush2.msra.mxu0 %v940
      %3703 = vmatprep.subr.mxu0 %v934
      %3704 = vmatpush2.msra.mxu0 %v933
      %3705 = vmatprep.subr.mxu0 %v927
      %3706 = vmatpush2.msra.mxu0 %v926
      %3707 = vmatprep.subr.mxu0 %v920
      %3708 = vmatpush2.msra.mxu0 %v919
      %3709 = vmatprep.subr.mxu0 %v913
      %3710 = vmatpush2.msra.mxu0 %v912
      %3711 = vmatprep.subr.mxu0 %v906
      %3712 = vmatpush2.msra.mxu0 %v905
      %3713 = vmatprep.subr.mxu0 %v899
      %3714 = vmatpush2.msra.mxu0 %v898
      %3715 = vmatprep.mubr.f32.mxu0 %v1371
      %3716 = vmatmul.mubr.f32.gmra.mxu0 %v1370
      %v3717 = vpop.f32.mrf.mxu0
      %v3718 = vadd.f32 0.0, %v3717
      %v3719 = vpop.f32.mrf.mxu0
      %v3720 = vadd.f32 0.0, %v3719
      %3721 = vmatprep.mubr.f32.mxu0 %v1377
      %3722 = vmatmul.mubr.f32.gmra.mxu0 %v1376
      %v3723 = vpop.f32.mrf.mxu0
      %v3724 = vadd.f32 0.0, %v3723
      %v3725 = vpop.f32.mrf.mxu0
      %v3726 = vadd.f32 0.0, %v3725
      %3727 = vmatprep.mubr.f32.mxu0 %v1383
      %3728 = vmatmul.mubr.f32.gmra.mxu0 %v1382
      %v3729 = vpop.f32.mrf.mxu0
      %v3730 = vadd.f32 0.0, %v3729
      %v3731 = vpop.f32.mrf.mxu0
      %v3732 = vadd.f32 0.0, %v3731
      %3733 = vmatprep.mubr.f32.mxu0 %v1389
      %3734 = vmatmul.mubr.f32.gmra.mxu0 %v1388
      %v3735 = vpop.f32.mrf.mxu0
      %v3736 = vadd.f32 0.0, %v3735
      %v3737 = vpop.f32.mrf.mxu0
      %v3738 = vadd.f32 0.0, %v3737
      %3739 = vmatprep.mubr.f32.mxu0 %v1395
      %3740 = vmatmul.mubr.f32.gmra.mxu0 %v1394
      %v3741 = vpop.f32.mrf.mxu0
      %v3742 = vadd.f32 0.0, %v3741
      %v3743 = vpop.f32.mrf.mxu0
      %v3744 = vadd.f32 0.0, %v3743
      %3745 = vmatprep.mubr.f32.mxu0 %v1401
      %3746 = vmatmul.mubr.f32.gmra.mxu0 %v1400
      %v3747 = vpop.f32.mrf.mxu0
      %v3748 = vadd.f32 0.0, %v3747
      %v3749 = vpop.f32.mrf.mxu0
      %v3750 = vadd.f32 0.0, %v3749
      %3751 = vmatprep.mubr.f32.mxu0 %v1407
      %3752 = vmatmul.mubr.f32.gmra.mxu0 %v1406
      %v3753 = vpop.f32.mrf.mxu0
      %v3754 = vadd.f32 0.0, %v3753
      %v3755 = vpop.f32.mrf.mxu0
      %v3756 = vadd.f32 0.0, %v3755
      %3757 = vmatprep.mubr.f32.mxu0 %v1413
      %3758 = vmatmul.mubr.f32.gmra.mxu0 %v1412
      %v3759 = vpop.f32.mrf.mxu0
      %v3760 = vadd.f32 0.0, %v3759
      %v3761 = vpop.f32.mrf.mxu0
      %v3762 = vadd.f32 0.0, %v3761
      %3763 = vmatprep.mubr.f32.mxu0 %v1419
      %3764 = vmatmul.mubr.f32.gmra.mxu0 %v1418
      %v3765 = vpop.f32.mrf.mxu0
      %v3766 = vadd.f32 0.0, %v3765
      %v3767 = vpop.f32.mrf.mxu0
      %v3768 = vadd.f32 0.0, %v3767
      %3769 = vmatprep.mubr.f32.mxu0 %v1425
      %3770 = vmatmul.mubr.f32.gmra.mxu0 %v1424
      %v3771 = vpop.f32.mrf.mxu0
      %v3772 = vadd.f32 0.0, %v3771
      %v3773 = vpop.f32.mrf.mxu0
      %v3774 = vadd.f32 0.0, %v3773
      %3775 = vmatprep.mubr.f32.mxu0 %v1431
      %3776 = vmatmul.mubr.f32.gmra.mxu0 %v1430
      %v3777 = vpop.f32.mrf.mxu0
      %v3778 = vadd.f32 0.0, %v3777
      %v3779 = vpop.f32.mrf.mxu0
      %v3780 = vadd.f32 0.0, %v3779
      %3781 = vmatprep.mubr.f32.mxu0 %v1437
      %3782 = vmatmul.mubr.f32.gmra.mxu0 %v1436
      %v3783 = vpop.f32.mrf.mxu0
      %v3784 = vadd.f32 0.0, %v3783
      %v3785 = vpop.f32.mrf.mxu0
      %v3786 = vadd.f32 0.0, %v3785
      %3787 = vmatprep.mubr.f32.mxu0 %v1443
      %3788 = vmatmul.mubr.f32.gmra.mxu0 %v1442
      %v3789 = vpop.f32.mrf.mxu0
      %v3790 = vadd.f32 0.0, %v3789
      %v3791 = vpop.f32.mrf.mxu0
      %v3792 = vadd.f32 0.0, %v3791
      %3793 = vmatprep.mubr.f32.mxu0 %v1449
      %3794 = vmatmul.mubr.f32.gmra.mxu0 %v1448
      %v3795 = vpop.f32.mrf.mxu0
      %v3796 = vadd.f32 0.0, %v3795
      %v3797 = vpop.f32.mrf.mxu0
      %v3798 = vadd.f32 0.0, %v3797
      %3799 = vmatprep.mubr.f32.mxu0 %v1455
      %3800 = vmatmul.mubr.f32.gmra.mxu0 %v1454
      %v3801 = vpop.f32.mrf.mxu0
      %v3802 = vadd.f32 0.0, %v3801
      %v3803 = vpop.f32.mrf.mxu0
      %v3804 = vadd.f32 0.0, %v3803
      %3805 = vmatprep.mubr.f32.mxu0 %v1461
      %3806 = vmatmul.mubr.f32.gmra.mxu0 %v1460
      %v3807 = vpop.f32.mrf.mxu0
      %v3808 = vadd.f32 0.0, %v3807
      %v3809 = vpop.f32.mrf.mxu0
      %v3810 = vadd.f32 0.0, %v3809
      %3811 = vmatprep.mubr.f32.mxu0 %v1467
      %3812 = vmatmul.mubr.f32.gmra.mxu0 %v1466
      %v3813 = vpop.f32.mrf.mxu0
      %v3814 = vadd.f32 0.0, %v3813
      %v3815 = vpop.f32.mrf.mxu0
      %v3816 = vadd.f32 0.0, %v3815
      %3817 = vmatprep.mubr.f32.mxu0 %v1473
      %3818 = vmatmul.mubr.f32.gmra.mxu0 %v1472
      %v3819 = vpop.f32.mrf.mxu0
      %v3820 = vadd.f32 0.0, %v3819
      %v3821 = vpop.f32.mrf.mxu0
      %v3822 = vadd.f32 0.0, %v3821
      %3823 = vmatprep.mubr.f32.mxu0 %v1479
      %3824 = vmatmul.mubr.f32.gmra.mxu0 %v1478
      %v3825 = vpop.f32.mrf.mxu0
      %v3826 = vadd.f32 0.0, %v3825
      %v3827 = vpop.f32.mrf.mxu0
      %v3828 = vadd.f32 0.0, %v3827
      %3829 = vmatprep.mubr.f32.mxu0 %v1485
      %3830 = vmatmul.mubr.f32.gmra.mxu0 %v1484
      %v3831 = vpop.f32.mrf.mxu0
      %v3832 = vadd.f32 0.0, %v3831
      %v3833 = vpop.f32.mrf.mxu0
      %v3834 = vadd.f32 0.0, %v3833
      %3835 = vmatprep.mubr.f32.mxu0 %v1491
      %3836 = vmatmul.mubr.f32.gmra.mxu0 %v1490
      %v3837 = vpop.f32.mrf.mxu0
      %v3838 = vadd.f32 0.0, %v3837
      %v3839 = vpop.f32.mrf.mxu0
      %v3840 = vadd.f32 0.0, %v3839
      %3841 = vmatprep.mubr.f32.mxu0 %v1497
      %3842 = vmatmul.mubr.f32.gmra.mxu0 %v1496
      %v3843 = vpop.f32.mrf.mxu0
      %v3844 = vadd.f32 0.0, %v3843
      %v3845 = vpop.f32.mrf.mxu0
      %v3846 = vadd.f32 0.0, %v3845
      %3847 = vmatprep.mubr.f32.mxu0 %v1503
      %3848 = vmatmul.mubr.f32.gmra.mxu0 %v1502
      %v3849 = vpop.f32.mrf.mxu0
      %v3850 = vadd.f32 0.0, %v3849
      %v3851 = vpop.f32.mrf.mxu0
      %v3852 = vadd.f32 0.0, %v3851
      %3853 = vmatprep.mubr.f32.mxu0 %v1509
      %3854 = vmatmul.mubr.f32.gmra.mxu0 %v1508
      %v3855 = vpop.f32.mrf.mxu0
      %v3856 = vadd.f32 0.0, %v3855
      %v3857 = vpop.f32.mrf.mxu0
      %v3858 = vadd.f32 0.0, %v3857
      %3859 = vmatprep.mubr.f32.mxu0 %v1515
      %3860 = vmatmul.mubr.f32.gmra.mxu0 %v1514
      %v3861 = vpop.f32.mrf.mxu0
      %v3862 = vadd.f32 0.0, %v3861
      %v3863 = vpop.f32.mrf.mxu0
      %v3864 = vadd.f32 0.0, %v3863
      %3865 = vmatprep.mubr.f32.mxu0 %v1521
      %3866 = vmatmul.mubr.f32.gmra.mxu0 %v1520
      %v3867 = vpop.f32.mrf.mxu0
      %v3868 = vadd.f32 0.0, %v3867
      %v3869 = vpop.f32.mrf.mxu0
      %v3870 = vadd.f32 0.0, %v3869
      %3871 = vmatprep.mubr.f32.mxu0 %v1527
      %3872 = vmatmul.mubr.f32.gmra.mxu0 %v1526
      %v3873 = vpop.f32.mrf.mxu0
      %v3874 = vadd.f32 0.0, %v3873
      %v3875 = vpop.f32.mrf.mxu0
      %v3876 = vadd.f32 0.0, %v3875
      %3877 = vmatprep.mubr.f32.mxu0 %v1533
      %3878 = vmatmul.mubr.f32.gmra.mxu0 %v1532
      %v3879 = vpop.f32.mrf.mxu0
      %v3880 = vadd.f32 0.0, %v3879
      %v3881 = vpop.f32.mrf.mxu0
      %v3882 = vadd.f32 0.0, %v3881
      %3883 = vmatprep.mubr.f32.mxu0 %v1539
      %3884 = vmatmul.mubr.f32.gmra.mxu0 %v1538
      %v3885 = vpop.f32.mrf.mxu0
      %v3886 = vadd.f32 0.0, %v3885
      %v3887 = vpop.f32.mrf.mxu0
      %v3888 = vadd.f32 0.0, %v3887
      %3889 = vmatprep.mubr.f32.mxu0 %v1545
      %3890 = vmatmul.mubr.f32.gmra.mxu0 %v1544
      %v3891 = vpop.f32.mrf.mxu0
      %v3892 = vadd.f32 0.0, %v3891
      %v3893 = vpop.f32.mrf.mxu0
      %v3894 = vadd.f32 0.0, %v3893
      %3895 = vmatprep.mubr.f32.mxu0 %v1551
      %3896 = vmatmul.mubr.f32.gmra.mxu0 %v1550
      %v3897 = vpop.f32.mrf.mxu0
      %v3898 = vadd.f32 0.0, %v3897
      %v3899 = vpop.f32.mrf.mxu0
      %v3900 = vadd.f32 0.0, %v3899
      %3901 = vmatprep.mubr.f32.mxu0 %v1557
      %3902 = vmatmul.mubr.f32.gmra.mxu0 %v1556
      %v3903 = vpop.f32.mrf.mxu0
      %v3904 = vadd.f32 0.0, %v3903
      %v3905 = vpop.f32.mrf.mxu0
      %v3906 = vadd.f32 0.0, %v3905
      %3907 = vmatprep.mubr.f32.mxu0 %v1563
      %3908 = vmatmul.mubr.f32.gmra.mxu0 %v1562
      %v3909 = vpop.f32.mrf.mxu0
      %v3910 = vadd.f32 0.0, %v3909
      %v3911 = vpop.f32.mrf.mxu0
      %v3912 = vadd.f32 0.0, %v3911
      %3913 = vmatprep.mubr.f32.mxu0 %v1569
      %3914 = vmatmul.mubr.f32.gmra.mxu0 %v1568
      %v3915 = vpop.f32.mrf.mxu0
      %v3916 = vadd.f32 0.0, %v3915
      %v3917 = vpop.f32.mrf.mxu0
      %v3918 = vadd.f32 0.0, %v3917
      %3919 = vmatprep.mubr.f32.mxu0 %v1575
      %3920 = vmatmul.mubr.f32.gmra.mxu0 %v1574
      %v3921 = vpop.f32.mrf.mxu0
      %v3922 = vadd.f32 0.0, %v3921
      %v3923 = vpop.f32.mrf.mxu0
      %v3924 = vadd.f32 0.0, %v3923
      %3925 = vmatprep.mubr.f32.mxu0 %v1581
      %3926 = vmatmul.mubr.f32.gmra.mxu0 %v1580
      %v3927 = vpop.f32.mrf.mxu0
      %v3928 = vadd.f32 0.0, %v3927
      %v3929 = vpop.f32.mrf.mxu0
      %v3930 = vadd.f32 0.0, %v3929
      %3931 = vmatprep.mubr.f32.mxu0 %v1587
      %3932 = vmatmul.mubr.f32.gmra.mxu0 %v1586
      %v3933 = vpop.f32.mrf.mxu0
      %v3934 = vadd.f32 0.0, %v3933
      %v3935 = vpop.f32.mrf.mxu0
      %v3936 = vadd.f32 0.0, %v3935
      %3937 = vmatprep.mubr.f32.mxu0 %v1593
      %3938 = vmatmul.mubr.f32.gmra.mxu0 %v1592
      %v3939 = vpop.f32.mrf.mxu0
      %v3940 = vadd.f32 0.0, %v3939
      %v3941 = vpop.f32.mrf.mxu0
      %v3942 = vadd.f32 0.0, %v3941
      %3943 = vmatprep.mubr.f32.mxu0 %v1599
      %3944 = vmatmul.mubr.f32.gmra.mxu0 %v1598
      %v3945 = vpop.f32.mrf.mxu0
      %v3946 = vadd.f32 0.0, %v3945
      %v3947 = vpop.f32.mrf.mxu0
      %v3948 = vadd.f32 0.0, %v3947
      %3949 = vmatprep.mubr.f32.mxu0 %v1605
      %3950 = vmatmul.mubr.f32.gmra.mxu0 %v1604
      %v3951 = vpop.f32.mrf.mxu0
      %v3952 = vadd.f32 0.0, %v3951
      %v3953 = vpop.f32.mrf.mxu0
      %v3954 = vadd.f32 0.0, %v3953
      %3955 = vmatprep.mubr.f32.mxu0 %v1611
      %3956 = vmatmul.mubr.f32.gmra.mxu0 %v1610
      %v3957 = vpop.f32.mrf.mxu0
      %v3958 = vadd.f32 0.0, %v3957
      %v3959 = vpop.f32.mrf.mxu0
      %v3960 = vadd.f32 0.0, %v3959
      %3961 = vmatprep.mubr.f32.mxu0 %v1617
      %3962 = vmatmul.mubr.f32.gmra.mxu0 %v1616
      %v3963 = vpop.f32.mrf.mxu0
      %v3964 = vadd.f32 0.0, %v3963
      %v3965 = vpop.f32.mrf.mxu0
      %v3966 = vadd.f32 0.0, %v3965
      %3967 = vdwg.mxu0
      %3968 = vmatprep.subr.mxu0 %v1116
      %3969 = vmatpush1.msra.mxu0 %v1115
      %3970 = vmatprep.subr.mxu0 %v1109
      %3971 = vmatpush1.msra.mxu0 %v1108
      %3972 = vmatprep.subr.mxu0 %v1102
      %3973 = vmatpush1.msra.mxu0 %v1101
      %3974 = vmatprep.subr.mxu0 %v1095
      %3975 = vmatpush1.msra.mxu0 %v1094
      %3976 = vmatprep.subr.mxu0 %v1088
      %3977 = vmatpush1.msra.mxu0 %v1087
      %3978 = vmatprep.subr.mxu0 %v1081
      %3979 = vmatpush1.msra.mxu0 %v1080
      %3980 = vmatprep.subr.mxu0 %v1074
      %3981 = vmatpush1.msra.mxu0 %v1073
      %3982 = vmatprep.subr.mxu0 %v1067
      %3983 = vmatpush1.msra.mxu0 %v1066
      %3984 = vmatprep.subr.mxu0 %v1060
      %3985 = vmatpush1.msra.mxu0 %v1059
      %3986 = vmatprep.subr.mxu0 %v1053
      %3987 = vmatpush1.msra.mxu0 %v1052
      %3988 = vmatprep.subr.mxu0 %v1046
      %3989 = vmatpush1.msra.mxu0 %v1045
      %3990 = vmatprep.subr.mxu0 %v1039
      %3991 = vmatpush1.msra.mxu0 %v1038
      %3992 = vmatprep.subr.mxu0 %v1032
      %3993 = vmatpush1.msra.mxu0 %v1031
      %3994 = vmatprep.subr.mxu0 %v1025
      %3995 = vmatpush1.msra.mxu0 %v1024
      %3996 = vmatprep.subr.mxu0 %v1018
      %3997 = vmatpush1.msra.mxu0 %v1017
      %3998 = vmatprep.subr.mxu0 %v1011
      %3999 = vmatpush1.msra.mxu0 %v1010
      %4000 = vmatprep.subr.mxu0 %v1228
      %4001 = vmatpush2.msra.mxu0 %v1227
      %4002 = vmatprep.subr.mxu0 %v1221
      %4003 = vmatpush2.msra.mxu0 %v1220
      %4004 = vmatprep.subr.mxu0 %v1214
      %4005 = vmatpush2.msra.mxu0 %v1213
      %4006 = vmatprep.subr.mxu0 %v1207
      %4007 = vmatpush2.msra.mxu0 %v1206
      %4008 = vmatprep.subr.mxu0 %v1200
      %4009 = vmatpush2.msra.mxu0 %v1199
      %4010 = vmatprep.subr.mxu0 %v1193
      %4011 = vmatpush2.msra.mxu0 %v1192
      %4012 = vmatprep.subr.mxu0 %v1186
      %4013 = vmatpush2.msra.mxu0 %v1185
      %4014 = vmatprep.subr.mxu0 %v1179
      %4015 = vmatpush2.msra.mxu0 %v1178
      %4016 = vmatprep.subr.mxu0 %v1172
      %4017 = vmatpush2.msra.mxu0 %v1171
      %4018 = vmatprep.subr.mxu0 %v1165
      %4019 = vmatpush2.msra.mxu0 %v1164
      %4020 = vmatprep.subr.mxu0 %v1158
      %4021 = vmatpush2.msra.mxu0 %v1157
      %4022 = vmatprep.subr.mxu0 %v1151
      %4023 = vmatpush2.msra.mxu0 %v1150
      %4024 = vmatprep.subr.mxu0 %v1144
      %4025 = vmatpush2.msra.mxu0 %v1143
      %4026 = vmatprep.subr.mxu0 %v1137
      %4027 = vmatpush2.msra.mxu0 %v1136
      %4028 = vmatprep.subr.mxu0 %v1130
      %4029 = vmatpush2.msra.mxu0 %v1129
      %4030 = vmatprep.subr.mxu0 %v1123
      %4031 = vmatpush2.msra.mxu0 %v1122
      %4032 = vmatprep.mubr.f32.mxu0 %v1373
      %4033 = vmatmul.mubr.f32.gmra.mxu0 %v1372
      %v4034 = vpop.f32.mrf.mxu0
      %v4035 = vadd.f32 %v3718, %v4034
      %v4036 = vpop.f32.mrf.mxu0
      %v4037 = vadd.f32 %v3720, %v4036
      %4038 = vmatprep.mubr.f32.mxu0 %v1379
      %4039 = vmatmul.mubr.f32.gmra.mxu0 %v1378
      %v4040 = vpop.f32.mrf.mxu0
      %v4041 = vadd.f32 %v3724, %v4040
      %v4042 = vpop.f32.mrf.mxu0
      %v4043 = vadd.f32 %v3726, %v4042
      %4044 = vmatprep.mubr.f32.mxu0 %v1385
      %4045 = vmatmul.mubr.f32.gmra.mxu0 %v1384
      %v4046 = vpop.f32.mrf.mxu0
      %v4047 = vadd.f32 %v3730, %v4046
      %v4048 = vpop.f32.mrf.mxu0
      %v4049 = vadd.f32 %v3732, %v4048
      %4050 = vmatprep.mubr.f32.mxu0 %v1391
      %4051 = vmatmul.mubr.f32.gmra.mxu0 %v1390
      %v4052 = vpop.f32.mrf.mxu0
      %v4053 = vadd.f32 %v3736, %v4052
      %v4054 = vpop.f32.mrf.mxu0
      %v4055 = vadd.f32 %v3738, %v4054
      %4056 = vmatprep.mubr.f32.mxu0 %v1397
      %4057 = vmatmul.mubr.f32.gmra.mxu0 %v1396
      %v4058 = vpop.f32.mrf.mxu0
      %v4059 = vadd.f32 %v3742, %v4058
      %v4060 = vpop.f32.mrf.mxu0
      %v4061 = vadd.f32 %v3744, %v4060
      %4062 = vmatprep.mubr.f32.mxu0 %v1403
      %4063 = vmatmul.mubr.f32.gmra.mxu0 %v1402
      %v4064 = vpop.f32.mrf.mxu0
      %v4065 = vadd.f32 %v3748, %v4064
      %v4066 = vpop.f32.mrf.mxu0
      %v4067 = vadd.f32 %v3750, %v4066
      %4068 = vmatprep.mubr.f32.mxu0 %v1409
      %4069 = vmatmul.mubr.f32.gmra.mxu0 %v1408
      %v4070 = vpop.f32.mrf.mxu0
      %v4071 = vadd.f32 %v3754, %v4070
      %v4072 = vpop.f32.mrf.mxu0
      %v4073 = vadd.f32 %v3756, %v4072
      %4074 = vmatprep.mubr.f32.mxu0 %v1415
      %4075 = vmatmul.mubr.f32.gmra.mxu0 %v1414
      %v4076 = vpop.f32.mrf.mxu0
      %v4077 = vadd.f32 %v3760, %v4076
      %v4078 = vpop.f32.mrf.mxu0
      %v4079 = vadd.f32 %v3762, %v4078
      %4080 = vmatprep.mubr.f32.mxu0 %v1421
      %4081 = vmatmul.mubr.f32.gmra.mxu0 %v1420
      %v4082 = vpop.f32.mrf.mxu0
      %v4083 = vadd.f32 %v3766, %v4082
      %v4084 = vpop.f32.mrf.mxu0
      %v4085 = vadd.f32 %v3768, %v4084
      %4086 = vmatprep.mubr.f32.mxu0 %v1427
      %4087 = vmatmul.mubr.f32.gmra.mxu0 %v1426
      %v4088 = vpop.f32.mrf.mxu0
      %v4089 = vadd.f32 %v3772, %v4088
      %v4090 = vpop.f32.mrf.mxu0
      %v4091 = vadd.f32 %v3774, %v4090
      %4092 = vmatprep.mubr.f32.mxu0 %v1433
      %4093 = vmatmul.mubr.f32.gmra.mxu0 %v1432
      %v4094 = vpop.f32.mrf.mxu0
      %v4095 = vadd.f32 %v3778, %v4094
      %v4096 = vpop.f32.mrf.mxu0
      %v4097 = vadd.f32 %v3780, %v4096
      %4098 = vmatprep.mubr.f32.mxu0 %v1439
      %4099 = vmatmul.mubr.f32.gmra.mxu0 %v1438
      %v4100 = vpop.f32.mrf.mxu0
      %v4101 = vadd.f32 %v3784, %v4100
      %v4102 = vpop.f32.mrf.mxu0
      %v4103 = vadd.f32 %v3786, %v4102
      %4104 = vmatprep.mubr.f32.mxu0 %v1445
      %4105 = vmatmul.mubr.f32.gmra.mxu0 %v1444
      %v4106 = vpop.f32.mrf.mxu0
      %v4107 = vadd.f32 %v3790, %v4106
      %v4108 = vpop.f32.mrf.mxu0
      %v4109 = vadd.f32 %v3792, %v4108
      %4110 = vmatprep.mubr.f32.mxu0 %v1451
      %4111 = vmatmul.mubr.f32.gmra.mxu0 %v1450
      %v4112 = vpop.f32.mrf.mxu0
      %v4113 = vadd.f32 %v3796, %v4112
      %v4114 = vpop.f32.mrf.mxu0
      %v4115 = vadd.f32 %v3798, %v4114
      %4116 = vmatprep.mubr.f32.mxu0 %v1457
      %4117 = vmatmul.mubr.f32.gmra.mxu0 %v1456
      %v4118 = vpop.f32.mrf.mxu0
      %v4119 = vadd.f32 %v3802, %v4118
      %v4120 = vpop.f32.mrf.mxu0
      %v4121 = vadd.f32 %v3804, %v4120
      %4122 = vmatprep.mubr.f32.mxu0 %v1463
      %4123 = vmatmul.mubr.f32.gmra.mxu0 %v1462
      %v4124 = vpop.f32.mrf.mxu0
      %v4125 = vadd.f32 %v3808, %v4124
      %v4126 = vpop.f32.mrf.mxu0
      %v4127 = vadd.f32 %v3810, %v4126
      %4128 = vmatprep.mubr.f32.mxu0 %v1469
      %4129 = vmatmul.mubr.f32.gmra.mxu0 %v1468
      %v4130 = vpop.f32.mrf.mxu0
      %v4131 = vadd.f32 %v3814, %v4130
      %v4132 = vpop.f32.mrf.mxu0
      %v4133 = vadd.f32 %v3816, %v4132
      %4134 = vmatprep.mubr.f32.mxu0 %v1475
      %4135 = vmatmul.mubr.f32.gmra.mxu0 %v1474
      %v4136 = vpop.f32.mrf.mxu0
      %v4137 = vadd.f32 %v3820, %v4136
      %v4138 = vpop.f32.mrf.mxu0
      %v4139 = vadd.f32 %v3822, %v4138
      %4140 = vmatprep.mubr.f32.mxu0 %v1481
      %4141 = vmatmul.mubr.f32.gmra.mxu0 %v1480
      %v4142 = vpop.f32.mrf.mxu0
      %v4143 = vadd.f32 %v3826, %v4142
      %v4144 = vpop.f32.mrf.mxu0
      %v4145 = vadd.f32 %v3828, %v4144
      %4146 = vmatprep.mubr.f32.mxu0 %v1487
      %4147 = vmatmul.mubr.f32.gmra.mxu0 %v1486
      %v4148 = vpop.f32.mrf.mxu0
      %v4149 = vadd.f32 %v3832, %v4148
      %v4150 = vpop.f32.mrf.mxu0
      %v4151 = vadd.f32 %v3834, %v4150
      %4152 = vmatprep.mubr.f32.mxu0 %v1493
      %4153 = vmatmul.mubr.f32.gmra.mxu0 %v1492
      %v4154 = vpop.f32.mrf.mxu0
      %v4155 = vadd.f32 %v3838, %v4154
      %v4156 = vpop.f32.mrf.mxu0
      %v4157 = vadd.f32 %v3840, %v4156
      %4158 = vmatprep.mubr.f32.mxu0 %v1499
      %4159 = vmatmul.mubr.f32.gmra.mxu0 %v1498
      %v4160 = vpop.f32.mrf.mxu0
      %v4161 = vadd.f32 %v3844, %v4160
      %v4162 = vpop.f32.mrf.mxu0
      %v4163 = vadd.f32 %v3846, %v4162
      %4164 = vmatprep.mubr.f32.mxu0 %v1505
      %4165 = vmatmul.mubr.f32.gmra.mxu0 %v1504
      %v4166 = vpop.f32.mrf.mxu0
      %v4167 = vadd.f32 %v3850, %v4166
      %v4168 = vpop.f32.mrf.mxu0
      %v4169 = vadd.f32 %v3852, %v4168
      %4170 = vmatprep.mubr.f32.mxu0 %v1511
      %4171 = vmatmul.mubr.f32.gmra.mxu0 %v1510
      %v4172 = vpop.f32.mrf.mxu0
      %v4173 = vadd.f32 %v3856, %v4172
      %v4174 = vpop.f32.mrf.mxu0
      %v4175 = vadd.f32 %v3858, %v4174
      %4176 = vmatprep.mubr.f32.mxu0 %v1517
      %4177 = vmatmul.mubr.f32.gmra.mxu0 %v1516
      %v4178 = vpop.f32.mrf.mxu0
      %v4179 = vadd.f32 %v3862, %v4178
      %v4180 = vpop.f32.mrf.mxu0
      %v4181 = vadd.f32 %v3864, %v4180
      %4182 = vmatprep.mubr.f32.mxu0 %v1523
      %4183 = vmatmul.mubr.f32.gmra.mxu0 %v1522
      %v4184 = vpop.f32.mrf.mxu0
      %v4185 = vadd.f32 %v3868, %v4184
      %v4186 = vpop.f32.mrf.mxu0
      %v4187 = vadd.f32 %v3870, %v4186
      %4188 = vmatprep.mubr.f32.mxu0 %v1529
      %4189 = vmatmul.mubr.f32.gmra.mxu0 %v1528
      %v4190 = vpop.f32.mrf.mxu0
      %v4191 = vadd.f32 %v3874, %v4190
      %v4192 = vpop.f32.mrf.mxu0
      %v4193 = vadd.f32 %v3876, %v4192
      %4194 = vmatprep.mubr.f32.mxu0 %v1535
      %4195 = vmatmul.mubr.f32.gmra.mxu0 %v1534
      %v4196 = vpop.f32.mrf.mxu0
      %v4197 = vadd.f32 %v3880, %v4196
      %v4198 = vpop.f32.mrf.mxu0
      %v4199 = vadd.f32 %v3882, %v4198
      %4200 = vmatprep.mubr.f32.mxu0 %v1541
      %4201 = vmatmul.mubr.f32.gmra.mxu0 %v1540
      %v4202 = vpop.f32.mrf.mxu0
      %v4203 = vadd.f32 %v3886, %v4202
      %v4204 = vpop.f32.mrf.mxu0
      %v4205 = vadd.f32 %v3888, %v4204
      %4206 = vmatprep.mubr.f32.mxu0 %v1547
      %4207 = vmatmul.mubr.f32.gmra.mxu0 %v1546
      %v4208 = vpop.f32.mrf.mxu0
      %v4209 = vadd.f32 %v3892, %v4208
      %v4210 = vpop.f32.mrf.mxu0
      %v4211 = vadd.f32 %v3894, %v4210
      %4212 = vmatprep.mubr.f32.mxu0 %v1553
      %4213 = vmatmul.mubr.f32.gmra.mxu0 %v1552
      %v4214 = vpop.f32.mrf.mxu0
      %v4215 = vadd.f32 %v3898, %v4214
      %v4216 = vpop.f32.mrf.mxu0
      %v4217 = vadd.f32 %v3900, %v4216
      %4218 = vmatprep.mubr.f32.mxu0 %v1559
      %4219 = vmatmul.mubr.f32.gmra.mxu0 %v1558
      %v4220 = vpop.f32.mrf.mxu0
      %v4221 = vadd.f32 %v3904, %v4220
      %v4222 = vpop.f32.mrf.mxu0
      %v4223 = vadd.f32 %v3906, %v4222
      %4224 = vmatprep.mubr.f32.mxu0 %v1565
      %4225 = vmatmul.mubr.f32.gmra.mxu0 %v1564
      %v4226 = vpop.f32.mrf.mxu0
      %v4227 = vadd.f32 %v3910, %v4226
      %v4228 = vpop.f32.mrf.mxu0
      %v4229 = vadd.f32 %v3912, %v4228
      %4230 = vmatprep.mubr.f32.mxu0 %v1571
      %4231 = vmatmul.mubr.f32.gmra.mxu0 %v1570
      %v4232 = vpop.f32.mrf.mxu0
      %v4233 = vadd.f32 %v3916, %v4232
      %v4234 = vpop.f32.mrf.mxu0
      %v4235 = vadd.f32 %v3918, %v4234
      %4236 = vmatprep.mubr.f32.mxu0 %v1577
      %4237 = vmatmul.mubr.f32.gmra.mxu0 %v1576
      %v4238 = vpop.f32.mrf.mxu0
      %v4239 = vadd.f32 %v3922, %v4238
      %v4240 = vpop.f32.mrf.mxu0
      %v4241 = vadd.f32 %v3924, %v4240
      %4242 = vmatprep.mubr.f32.mxu0 %v1583
      %4243 = vmatmul.mubr.f32.gmra.mxu0 %v1582
      %v4244 = vpop.f32.mrf.mxu0
      %v4245 = vadd.f32 %v3928, %v4244
      %v4246 = vpop.f32.mrf.mxu0
      %v4247 = vadd.f32 %v3930, %v4246
      %4248 = vmatprep.mubr.f32.mxu0 %v1589
      %4249 = vmatmul.mubr.f32.gmra.mxu0 %v1588
      %v4250 = vpop.f32.mrf.mxu0
      %v4251 = vadd.f32 %v3934, %v4250
      %v4252 = vpop.f32.mrf.mxu0
      %v4253 = vadd.f32 %v3936, %v4252
      %4254 = vmatprep.mubr.f32.mxu0 %v1595
      %4255 = vmatmul.mubr.f32.gmra.mxu0 %v1594
      %v4256 = vpop.f32.mrf.mxu0
      %v4257 = vadd.f32 %v3940, %v4256
      %v4258 = vpop.f32.mrf.mxu0
      %v4259 = vadd.f32 %v3942, %v4258
      %4260 = vmatprep.mubr.f32.mxu0 %v1601
      %4261 = vmatmul.mubr.f32.gmra.mxu0 %v1600
      %v4262 = vpop.f32.mrf.mxu0
      %v4263 = vadd.f32 %v3946, %v4262
      %v4264 = vpop.f32.mrf.mxu0
      %v4265 = vadd.f32 %v3948, %v4264
      %4266 = vmatprep.mubr.f32.mxu0 %v1607
      %4267 = vmatmul.mubr.f32.gmra.mxu0 %v1606
      %v4268 = vpop.f32.mrf.mxu0
      %v4269 = vadd.f32 %v3952, %v4268
      %v4270 = vpop.f32.mrf.mxu0
      %v4271 = vadd.f32 %v3954, %v4270
      %4272 = vmatprep.mubr.f32.mxu0 %v1613
      %4273 = vmatmul.mubr.f32.gmra.mxu0 %v1612
      %v4274 = vpop.f32.mrf.mxu0
      %v4275 = vadd.f32 %v3958, %v4274
      %v4276 = vpop.f32.mrf.mxu0
      %v4277 = vadd.f32 %v3960, %v4276
      %4278 = vmatprep.mubr.f32.mxu0 %v1619
      %4279 = vmatmul.mubr.f32.gmra.mxu0 %v1618
      %v4280 = vpop.f32.mrf.mxu0
      %v4281 = vadd.f32 %v3964, %v4280
      %v4282 = vpop.f32.mrf.mxu0
      %v4283 = vadd.f32 %v3966, %v4282
      %4284 = vdwg.mxu0
      %4285 = vmatprep.subr.mxu0 %v1340
      %4286 = vmatpush1.msra.mxu0 %v1339
      %4287 = vmatprep.subr.mxu0 %v1333
      %4288 = vmatpush1.msra.mxu0 %v1332
      %4289 = vmatprep.subr.mxu0 %v1326
      %4290 = vmatpush1.msra.mxu0 %v1325
      %4291 = vmatprep.subr.mxu0 %v1319
      %4292 = vmatpush1.msra.mxu0 %v1318
      %4293 = vmatprep.subr.mxu0 %v1312
      %4294 = vmatpush1.msra.mxu0 %v1311
      %4295 = vmatprep.subr.mxu0 %v1305
      %4296 = vmatpush1.msra.mxu0 %v1304
      %4297 = vmatprep.subr.mxu0 %v1298
      %4298 = vmatpush1.msra.mxu0 %v1297
      %4299 = vmatprep.subr.mxu0 %v1291
      %4300 = vmatpush1.msra.mxu0 %v1290
      %4301 = vmatprep.subr.mxu0 %v1284
      %4302 = vmatpush1.msra.mxu0 %v1283
      %4303 = vmatprep.subr.mxu0 %v1277
      %4304 = vmatpush1.msra.mxu0 %v1276
      %4305 = vmatprep.subr.mxu0 %v1270
      %4306 = vmatpush1.msra.mxu0 %v1269
      %4307 = vmatprep.subr.mxu0 %v1263
      %4308 = vmatpush1.msra.mxu0 %v1262
      %4309 = vmatprep.subr.mxu0 %v1256
      %4310 = vmatpush1.msra.mxu0 %v1255
      %4311 = vmatprep.subr.mxu0 %v1249
      %4312 = vmatpush1.msra.mxu0 %v1248
      %4313 = vmatprep.subr.mxu0 %v1242
      %4314 = vmatpush1.msra.mxu0 %v1241
      %4315 = vmatprep.subr.mxu0 %v1235
      %4316 = vmatpush1.msra.mxu0 %v1234
      %4317 = vmatprep.subr.mxu0 0.0
      %4318 = vmatpush2.msra.mxu0 0.0
      %4319 = vmatprep.subr.mxu0 0.0
      %4320 = vmatpush2.msra.mxu0 0.0
      %4321 = vmatprep.subr.mxu0 0.0
      %4322 = vmatpush2.msra.mxu0 0.0
      %4323 = vmatprep.subr.mxu0 0.0
      %4324 = vmatpush2.msra.mxu0 0.0
      %4325 = vmatprep.subr.mxu0 0.0
      %4326 = vmatpush2.msra.mxu0 0.0
      %4327 = vmatprep.subr.mxu0 0.0
      %4328 = vmatpush2.msra.mxu0 0.0
      %4329 = vmatprep.subr.mxu0 0.0
      %4330 = vmatpush2.msra.mxu0 0.0
      %4331 = vmatprep.subr.mxu0 0.0
      %4332 = vmatpush2.msra.mxu0 0.0
      %4333 = vmatprep.subr.mxu0 0.0
      %4334 = vmatpush2.msra.mxu0 0.0
      %4335 = vmatprep.subr.mxu0 0.0
      %4336 = vmatpush2.msra.mxu0 0.0
      %4337 = vmatprep.subr.mxu0 0.0
      %4338 = vmatpush2.msra.mxu0 0.0
      %4339 = vmatprep.subr.mxu0 0.0
      %4340 = vmatpush2.msra.mxu0 0.0
      %4341 = vmatprep.subr.mxu0 %v1368
      %4342 = vmatpush2.msra.mxu0 %v1367
      %4343 = vmatprep.subr.mxu0 %v1361
      %4344 = vmatpush2.msra.mxu0 %v1360
      %4345 = vmatprep.subr.mxu0 %v1354
      %4346 = vmatpush2.msra.mxu0 %v1353
      %4347 = vmatprep.subr.mxu0 %v1347
      %4348 = vmatpush2.msra.mxu0 %v1346
      %4349 = vmatprep.mubr.f32.mxu0 %v1624
      %4350 = vmatmul.mubr.f32.gmra.mxu0 %v1374
      %v4351 = vpop.f32.mrf.mxu0
      %v4352 = vadd.f32 %v4035, %v4351
      %v4353 = vpop.f32.mrf.mxu0
      %v4354 = vadd.f32 %v4037, %v4353
      %4355 = vmatprep.mubr.f32.mxu0 %v1627
      %4356 = vmatmul.mubr.f32.gmra.mxu0 %v1380
      %v4357 = vpop.f32.mrf.mxu0
      %v4358 = vadd.f32 %v4041, %v4357
      %v4359 = vpop.f32.mrf.mxu0
      %v4360 = vadd.f32 %v4043, %v4359
      %4361 = vmatprep.mubr.f32.mxu0 %v1630
      %4362 = vmatmul.mubr.f32.gmra.mxu0 %v1386
      %v4363 = vpop.f32.mrf.mxu0
      %v4364 = vadd.f32 %v4047, %v4363
      %v4365 = vpop.f32.mrf.mxu0
      %v4366 = vadd.f32 %v4049, %v4365
      %4367 = vmatprep.mubr.f32.mxu0 %v1633
      %4368 = vmatmul.mubr.f32.gmra.mxu0 %v1392
      %v4369 = vpop.f32.mrf.mxu0
      %v4370 = vadd.f32 %v4053, %v4369
      %v4371 = vpop.f32.mrf.mxu0
      %v4372 = vadd.f32 %v4055, %v4371
      %4373 = vmatprep.mubr.f32.mxu0 %v1636
      %4374 = vmatmul.mubr.f32.gmra.mxu0 %v1398
      %v4375 = vpop.f32.mrf.mxu0
      %v4376 = vadd.f32 %v4059, %v4375
      %v4377 = vpop.f32.mrf.mxu0
      %v4378 = vadd.f32 %v4061, %v4377
      %4379 = vmatprep.mubr.f32.mxu0 %v1639
      %4380 = vmatmul.mubr.f32.gmra.mxu0 %v1404
      %v4381 = vpop.f32.mrf.mxu0
      %v4382 = vadd.f32 %v4065, %v4381
      %v4383 = vpop.f32.mrf.mxu0
      %v4384 = vadd.f32 %v4067, %v4383
      %4385 = vmatprep.mubr.f32.mxu0 %v1642
      %4386 = vmatmul.mubr.f32.gmra.mxu0 %v1410
      %v4387 = vpop.f32.mrf.mxu0
      %v4388 = vadd.f32 %v4071, %v4387
      %v4389 = vpop.f32.mrf.mxu0
      %v4390 = vadd.f32 %v4073, %v4389
      %4391 = vmatprep.mubr.f32.mxu0 %v1645
      %4392 = vmatmul.mubr.f32.gmra.mxu0 %v1416
      %v4393 = vpop.f32.mrf.mxu0
      %v4394 = vadd.f32 %v4077, %v4393
      %v4395 = vpop.f32.mrf.mxu0
      %v4396 = vadd.f32 %v4079, %v4395
      %4397 = vmatprep.mubr.f32.mxu0 %v1648
      %4398 = vmatmul.mubr.f32.gmra.mxu0 %v1422
      %v4399 = vpop.f32.mrf.mxu0
      %v4400 = vadd.f32 %v4083, %v4399
      %v4401 = vpop.f32.mrf.mxu0
      %v4402 = vadd.f32 %v4085, %v4401
      %4403 = vmatprep.mubr.f32.mxu0 %v1651
      %4404 = vmatmul.mubr.f32.gmra.mxu0 %v1428
      %v4405 = vpop.f32.mrf.mxu0
      %v4406 = vadd.f32 %v4089, %v4405
      %v4407 = vpop.f32.mrf.mxu0
      %v4408 = vadd.f32 %v4091, %v4407
      %4409 = vmatprep.mubr.f32.mxu0 %v1654
      %4410 = vmatmul.mubr.f32.gmra.mxu0 %v1434
      %v4411 = vpop.f32.mrf.mxu0
      %v4412 = vadd.f32 %v4095, %v4411
      %v4413 = vpop.f32.mrf.mxu0
      %v4414 = vadd.f32 %v4097, %v4413
      %4415 = vmatprep.mubr.f32.mxu0 %v1657
      %4416 = vmatmul.mubr.f32.gmra.mxu0 %v1440
      %v4417 = vpop.f32.mrf.mxu0
      %v4418 = vadd.f32 %v4101, %v4417
      %v4419 = vpop.f32.mrf.mxu0
      %v4420 = vadd.f32 %v4103, %v4419
      %4421 = vmatprep.mubr.f32.mxu0 %v1660
      %4422 = vmatmul.mubr.f32.gmra.mxu0 %v1446
      %v4423 = vpop.f32.mrf.mxu0
      %v4424 = vadd.f32 %v4107, %v4423
      %v4425 = vpop.f32.mrf.mxu0
      %v4426 = vadd.f32 %v4109, %v4425
      %4427 = vmatprep.mubr.f32.mxu0 %v1663
      %4428 = vmatmul.mubr.f32.gmra.mxu0 %v1452
      %v4429 = vpop.f32.mrf.mxu0
      %v4430 = vadd.f32 %v4113, %v4429
      %v4431 = vpop.f32.mrf.mxu0
      %v4432 = vadd.f32 %v4115, %v4431
      %4433 = vmatprep.mubr.f32.mxu0 %v1666
      %4434 = vmatmul.mubr.f32.gmra.mxu0 %v1458
      %v4435 = vpop.f32.mrf.mxu0
      %v4436 = vadd.f32 %v4119, %v4435
      %v4437 = vpop.f32.mrf.mxu0
      %v4438 = vadd.f32 %v4121, %v4437
      %4439 = vmatprep.mubr.f32.mxu0 %v1669
      %4440 = vmatmul.mubr.f32.gmra.mxu0 %v1464
      %v4441 = vpop.f32.mrf.mxu0
      %v4442 = vadd.f32 %v4125, %v4441
      %v4443 = vpop.f32.mrf.mxu0
      %v4444 = vadd.f32 %v4127, %v4443
      %4445 = vmatprep.mubr.f32.mxu0 %v1672
      %4446 = vmatmul.mubr.f32.gmra.mxu0 %v1470
      %v4447 = vpop.f32.mrf.mxu0
      %v4448 = vadd.f32 %v4131, %v4447
      %v4449 = vpop.f32.mrf.mxu0
      %v4450 = vadd.f32 %v4133, %v4449
      %4451 = vmatprep.mubr.f32.mxu0 %v1675
      %4452 = vmatmul.mubr.f32.gmra.mxu0 %v1476
      %v4453 = vpop.f32.mrf.mxu0
      %v4454 = vadd.f32 %v4137, %v4453
      %v4455 = vpop.f32.mrf.mxu0
      %v4456 = vadd.f32 %v4139, %v4455
      %4457 = vmatprep.mubr.f32.mxu0 %v1678
      %4458 = vmatmul.mubr.f32.gmra.mxu0 %v1482
      %v4459 = vpop.f32.mrf.mxu0
      %v4460 = vadd.f32 %v4143, %v4459
      %v4461 = vpop.f32.mrf.mxu0
      %v4462 = vadd.f32 %v4145, %v4461
      %4463 = vmatprep.mubr.f32.mxu0 %v1681
      %4464 = vmatmul.mubr.f32.gmra.mxu0 %v1488
      %v4465 = vpop.f32.mrf.mxu0
      %v4466 = vadd.f32 %v4149, %v4465
      %v4467 = vpop.f32.mrf.mxu0
      %v4468 = vadd.f32 %v4151, %v4467
      %4469 = vmatprep.mubr.f32.mxu0 %v1684
      %4470 = vmatmul.mubr.f32.gmra.mxu0 %v1494
      %v4471 = vpop.f32.mrf.mxu0
      %v4472 = vadd.f32 %v4155, %v4471
      %v4473 = vpop.f32.mrf.mxu0
      %v4474 = vadd.f32 %v4157, %v4473
      %4475 = vmatprep.mubr.f32.mxu0 %v1687
      %4476 = vmatmul.mubr.f32.gmra.mxu0 %v1500
      %v4477 = vpop.f32.mrf.mxu0
      %v4478 = vadd.f32 %v4161, %v4477
      %v4479 = vpop.f32.mrf.mxu0
      %v4480 = vadd.f32 %v4163, %v4479
      %4481 = vmatprep.mubr.f32.mxu0 %v1690
      %4482 = vmatmul.mubr.f32.gmra.mxu0 %v1506
      %v4483 = vpop.f32.mrf.mxu0
      %v4484 = vadd.f32 %v4167, %v4483
      %v4485 = vpop.f32.mrf.mxu0
      %v4486 = vadd.f32 %v4169, %v4485
      %4487 = vmatprep.mubr.f32.mxu0 %v1693
      %4488 = vmatmul.mubr.f32.gmra.mxu0 %v1512
      %v4489 = vpop.f32.mrf.mxu0
      %v4490 = vadd.f32 %v4173, %v4489
      %v4491 = vpop.f32.mrf.mxu0
      %v4492 = vadd.f32 %v4175, %v4491
      %4493 = vmatprep.mubr.f32.mxu0 %v1696
      %4494 = vmatmul.mubr.f32.gmra.mxu0 %v1518
      %v4495 = vpop.f32.mrf.mxu0
      %v4496 = vadd.f32 %v4179, %v4495
      %v4497 = vpop.f32.mrf.mxu0
      %v4498 = vadd.f32 %v4181, %v4497
      %4499 = vmatprep.mubr.f32.mxu0 %v1699
      %4500 = vmatmul.mubr.f32.gmra.mxu0 %v1524
      %v4501 = vpop.f32.mrf.mxu0
      %v4502 = vadd.f32 %v4185, %v4501
      %v4503 = vpop.f32.mrf.mxu0
      %v4504 = vadd.f32 %v4187, %v4503
      %4505 = vmatprep.mubr.f32.mxu0 %v1702
      %4506 = vmatmul.mubr.f32.gmra.mxu0 %v1530
      %v4507 = vpop.f32.mrf.mxu0
      %v4508 = vadd.f32 %v4191, %v4507
      %v4509 = vpop.f32.mrf.mxu0
      %v4510 = vadd.f32 %v4193, %v4509
      %4511 = vmatprep.mubr.f32.mxu0 %v1705
      %4512 = vmatmul.mubr.f32.gmra.mxu0 %v1536
      %v4513 = vpop.f32.mrf.mxu0
      %v4514 = vadd.f32 %v4197, %v4513
      %v4515 = vpop.f32.mrf.mxu0
      %v4516 = vadd.f32 %v4199, %v4515
      %4517 = vmatprep.mubr.f32.mxu0 %v1708
      %4518 = vmatmul.mubr.f32.gmra.mxu0 %v1542
      %v4519 = vpop.f32.mrf.mxu0
      %v4520 = vadd.f32 %v4203, %v4519
      %v4521 = vpop.f32.mrf.mxu0
      %v4522 = vadd.f32 %v4205, %v4521
      %4523 = vmatprep.mubr.f32.mxu0 %v1711
      %4524 = vmatmul.mubr.f32.gmra.mxu0 %v1548
      %v4525 = vpop.f32.mrf.mxu0
      %v4526 = vadd.f32 %v4209, %v4525
      %v4527 = vpop.f32.mrf.mxu0
      %v4528 = vadd.f32 %v4211, %v4527
      %4529 = vmatprep.mubr.f32.mxu0 %v1714
      %4530 = vmatmul.mubr.f32.gmra.mxu0 %v1554
      %v4531 = vpop.f32.mrf.mxu0
      %v4532 = vadd.f32 %v4215, %v4531
      %v4533 = vpop.f32.mrf.mxu0
      %v4534 = vadd.f32 %v4217, %v4533
      %4535 = vmatprep.mubr.f32.mxu0 %v1717
      %4536 = vmatmul.mubr.f32.gmra.mxu0 %v1560
      %v4537 = vpop.f32.mrf.mxu0
      %v4538 = vadd.f32 %v4221, %v4537
      %v4539 = vpop.f32.mrf.mxu0
      %v4540 = vadd.f32 %v4223, %v4539
      %4541 = vmatprep.mubr.f32.mxu0 %v1720
      %4542 = vmatmul.mubr.f32.gmra.mxu0 %v1566
      %v4543 = vpop.f32.mrf.mxu0
      %v4544 = vadd.f32 %v4227, %v4543
      %v4545 = vpop.f32.mrf.mxu0
      %v4546 = vadd.f32 %v4229, %v4545
      %4547 = vmatprep.mubr.f32.mxu0 %v1723
      %4548 = vmatmul.mubr.f32.gmra.mxu0 %v1572
      %v4549 = vpop.f32.mrf.mxu0
      %v4550 = vadd.f32 %v4233, %v4549
      %v4551 = vpop.f32.mrf.mxu0
      %v4552 = vadd.f32 %v4235, %v4551
      %4553 = vmatprep.mubr.f32.mxu0 %v1726
      %4554 = vmatmul.mubr.f32.gmra.mxu0 %v1578
      %v4555 = vpop.f32.mrf.mxu0
      %v4556 = vadd.f32 %v4239, %v4555
      %v4557 = vpop.f32.mrf.mxu0
      %v4558 = vadd.f32 %v4241, %v4557
      %4559 = vmatprep.mubr.f32.mxu0 %v1729
      %4560 = vmatmul.mubr.f32.gmra.mxu0 %v1584
      %v4561 = vpop.f32.mrf.mxu0
      %v4562 = vadd.f32 %v4245, %v4561
      %v4563 = vpop.f32.mrf.mxu0
      %v4564 = vadd.f32 %v4247, %v4563
      %4565 = vmatprep.mubr.f32.mxu0 %v1732
      %4566 = vmatmul.mubr.f32.gmra.mxu0 %v1590
      %v4567 = vpop.f32.mrf.mxu0
      %v4568 = vadd.f32 %v4251, %v4567
      %v4569 = vpop.f32.mrf.mxu0
      %v4570 = vadd.f32 %v4253, %v4569
      %4571 = vmatprep.mubr.f32.mxu0 %v1735
      %4572 = vmatmul.mubr.f32.gmra.mxu0 %v1596
      %v4573 = vpop.f32.mrf.mxu0
      %v4574 = vadd.f32 %v4257, %v4573
      %v4575 = vpop.f32.mrf.mxu0
      %v4576 = vadd.f32 %v4259, %v4575
      %4577 = vmatprep.mubr.f32.mxu0 %v1738
      %4578 = vmatmul.mubr.f32.gmra.mxu0 %v1602
      %v4579 = vpop.f32.mrf.mxu0
      %v4580 = vadd.f32 %v4263, %v4579
      %v4581 = vpop.f32.mrf.mxu0
      %v4582 = vadd.f32 %v4265, %v4581
      %4583 = vmatprep.mubr.f32.mxu0 %v1741
      %4584 = vmatmul.mubr.f32.gmra.mxu0 %v1608
      %v4585 = vpop.f32.mrf.mxu0
      %v4586 = vadd.f32 %v4269, %v4585
      %v4587 = vpop.f32.mrf.mxu0
      %v4588 = vadd.f32 %v4271, %v4587
      %4589 = vmatprep.mubr.f32.mxu0 %v1744
      %4590 = vmatmul.mubr.f32.gmra.mxu0 %v1614
      %v4591 = vpop.f32.mrf.mxu0
      %v4592 = vadd.f32 %v4275, %v4591
      %v4593 = vpop.f32.mrf.mxu0
      %v4594 = vadd.f32 %v4277, %v4593
      %4595 = vmatprep.mubr.f32.mxu0 %v1747
      %4596 = vmatmul.mubr.f32.gmra.mxu0 %v1620
      %v4597 = vpop.f32.mrf.mxu0
      %v4598 = vadd.f32 %v4281, %v4597
      %v4599 = vpop.f32.mrf.mxu0
      %v4600 = vadd.f32 %v4283, %v4599
      %4601 = vdwg.mxu0
      %4602 = vmatprep.subr.mxu0 0.0
      %4603 = vmatpush1.msra.mxu0 %v893
      %4604 = vmatprep.subr.mxu0 0.0
      %4605 = vmatpush1.msra.mxu0 %v886
      %4606 = vmatprep.subr.mxu0 0.0
      %4607 = vmatpush1.msra.mxu0 %v879
      %4608 = vmatprep.subr.mxu0 0.0
      %4609 = vmatpush1.msra.mxu0 %v872
      %4610 = vmatprep.subr.mxu0 0.0
      %4611 = vmatpush1.msra.mxu0 %v865
      %4612 = vmatprep.subr.mxu0 0.0
      %4613 = vmatpush1.msra.mxu0 %v858
      %4614 = vmatprep.subr.mxu0 0.0
      %4615 = vmatpush1.msra.mxu0 %v851
      %4616 = vmatprep.subr.mxu0 0.0
      %4617 = vmatpush1.msra.mxu0 %v844
      %4618 = vmatprep.subr.mxu0 0.0
      %4619 = vmatpush1.msra.mxu0 %v837
      %4620 = vmatprep.subr.mxu0 0.0
      %4621 = vmatpush1.msra.mxu0 %v830
      %4622 = vmatprep.subr.mxu0 0.0
      %4623 = vmatpush1.msra.mxu0 %v823
      %4624 = vmatprep.subr.mxu0 0.0
      %4625 = vmatpush1.msra.mxu0 %v816
      %4626 = vmatprep.subr.mxu0 0.0
      %4627 = vmatpush1.msra.mxu0 %v809
      %4628 = vmatprep.subr.mxu0 0.0
      %4629 = vmatpush1.msra.mxu0 %v802
      %4630 = vmatprep.subr.mxu0 0.0
      %4631 = vmatpush1.msra.mxu0 %v795
      %4632 = vmatprep.subr.mxu0 0.0
      %4633 = vmatpush1.msra.mxu0 %v788
      %4634 = vmatprep.subr.mxu0 0.0
      %4635 = vmatpush2.msra.mxu0 %v1005
      %4636 = vmatprep.subr.mxu0 0.0
      %4637 = vmatpush2.msra.mxu0 %v998
      %4638 = vmatprep.subr.mxu0 0.0
      %4639 = vmatpush2.msra.mxu0 %v991
      %4640 = vmatprep.subr.mxu0 0.0
      %4641 = vmatpush2.msra.mxu0 %v984
      %4642 = vmatprep.subr.mxu0 0.0
      %4643 = vmatpush2.msra.mxu0 %v977
      %4644 = vmatprep.subr.mxu0 0.0
      %4645 = vmatpush2.msra.mxu0 %v970
      %4646 = vmatprep.subr.mxu0 0.0
      %4647 = vmatpush2.msra.mxu0 %v963
      %4648 = vmatprep.subr.mxu0 0.0
      %4649 = vmatpush2.msra.mxu0 %v956
      %4650 = vmatprep.subr.mxu0 0.0
      %4651 = vmatpush2.msra.mxu0 %v949
      %4652 = vmatprep.subr.mxu0 0.0
      %4653 = vmatpush2.msra.mxu0 %v942
      %4654 = vmatprep.subr.mxu0 0.0
      %4655 = vmatpush2.msra.mxu0 %v935
      %4656 = vmatprep.subr.mxu0 0.0
      %4657 = vmatpush2.msra.mxu0 %v928
      %4658 = vmatprep.subr.mxu0 0.0
      %4659 = vmatpush2.msra.mxu0 %v921
      %4660 = vmatprep.subr.mxu0 0.0
      %4661 = vmatpush2.msra.mxu0 %v914
      %4662 = vmatprep.subr.mxu0 0.0
      %4663 = vmatpush2.msra.mxu0 %v907
      %4664 = vmatprep.subr.mxu0 0.0
      %4665 = vmatpush2.msra.mxu0 %v900
      %4666 = vmatprep.mubr.f32.mxu0 %v1371
      %4667 = vmatmul.mubr.f32.gmra.mxu0 %v1370
      %v4668 = vpop.f32.mrf.mxu0
      %v4669 = vadd.f32 0.0, %v4668
      %v4670 = vpop.f32.mrf.mxu0
      %4671 = vmatprep.mubr.f32.mxu0 %v1377
      %4672 = vmatmul.mubr.f32.gmra.mxu0 %v1376
      %v4673 = vpop.f32.mrf.mxu0
      %v4674 = vadd.f32 0.0, %v4673
      %v4675 = vpop.f32.mrf.mxu0
      %4676 = vmatprep.mubr.f32.mxu0 %v1383
      %4677 = vmatmul.mubr.f32.gmra.mxu0 %v1382
      %v4678 = vpop.f32.mrf.mxu0
      %v4679 = vadd.f32 0.0, %v4678
      %v4680 = vpop.f32.mrf.mxu0
      %4681 = vmatprep.mubr.f32.mxu0 %v1389
      %4682 = vmatmul.mubr.f32.gmra.mxu0 %v1388
      %v4683 = vpop.f32.mrf.mxu0
      %v4684 = vadd.f32 0.0, %v4683
      %v4685 = vpop.f32.mrf.mxu0
      %4686 = vmatprep.mubr.f32.mxu0 %v1395
      %4687 = vmatmul.mubr.f32.gmra.mxu0 %v1394
      %v4688 = vpop.f32.mrf.mxu0
      %v4689 = vadd.f32 0.0, %v4688
      %v4690 = vpop.f32.mrf.mxu0
      %4691 = vmatprep.mubr.f32.mxu0 %v1401
      %4692 = vmatmul.mubr.f32.gmra.mxu0 %v1400
      %v4693 = vpop.f32.mrf.mxu0
      %v4694 = vadd.f32 0.0, %v4693
      %v4695 = vpop.f32.mrf.mxu0
      %4696 = vmatprep.mubr.f32.mxu0 %v1407
      %4697 = vmatmul.mubr.f32.gmra.mxu0 %v1406
      %v4698 = vpop.f32.mrf.mxu0
      %v4699 = vadd.f32 0.0, %v4698
      %v4700 = vpop.f32.mrf.mxu0
      %4701 = vmatprep.mubr.f32.mxu0 %v1413
      %4702 = vmatmul.mubr.f32.gmra.mxu0 %v1412
      %v4703 = vpop.f32.mrf.mxu0
      %v4704 = vadd.f32 0.0, %v4703
      %v4705 = vpop.f32.mrf.mxu0
      %4706 = vmatprep.mubr.f32.mxu0 %v1419
      %4707 = vmatmul.mubr.f32.gmra.mxu0 %v1418
      %v4708 = vpop.f32.mrf.mxu0
      %v4709 = vadd.f32 0.0, %v4708
      %v4710 = vpop.f32.mrf.mxu0
      %4711 = vmatprep.mubr.f32.mxu0 %v1425
      %4712 = vmatmul.mubr.f32.gmra.mxu0 %v1424
      %v4713 = vpop.f32.mrf.mxu0
      %v4714 = vadd.f32 0.0, %v4713
      %v4715 = vpop.f32.mrf.mxu0
      %4716 = vmatprep.mubr.f32.mxu0 %v1431
      %4717 = vmatmul.mubr.f32.gmra.mxu0 %v1430
      %v4718 = vpop.f32.mrf.mxu0
      %v4719 = vadd.f32 0.0, %v4718
      %v4720 = vpop.f32.mrf.mxu0
      %4721 = vmatprep.mubr.f32.mxu0 %v1437
      %4722 = vmatmul.mubr.f32.gmra.mxu0 %v1436
      %v4723 = vpop.f32.mrf.mxu0
      %v4724 = vadd.f32 0.0, %v4723
      %v4725 = vpop.f32.mrf.mxu0
      %4726 = vmatprep.mubr.f32.mxu0 %v1443
      %4727 = vmatmul.mubr.f32.gmra.mxu0 %v1442
      %v4728 = vpop.f32.mrf.mxu0
      %v4729 = vadd.f32 0.0, %v4728
      %v4730 = vpop.f32.mrf.mxu0
      %4731 = vmatprep.mubr.f32.mxu0 %v1449
      %4732 = vmatmul.mubr.f32.gmra.mxu0 %v1448
      %v4733 = vpop.f32.mrf.mxu0
      %v4734 = vadd.f32 0.0, %v4733
      %v4735 = vpop.f32.mrf.mxu0
      %4736 = vmatprep.mubr.f32.mxu0 %v1455
      %4737 = vmatmul.mubr.f32.gmra.mxu0 %v1454
      %v4738 = vpop.f32.mrf.mxu0
      %v4739 = vadd.f32 0.0, %v4738
      %v4740 = vpop.f32.mrf.mxu0
      %4741 = vmatprep.mubr.f32.mxu0 %v1461
      %4742 = vmatmul.mubr.f32.gmra.mxu0 %v1460
      %v4743 = vpop.f32.mrf.mxu0
      %v4744 = vadd.f32 0.0, %v4743
      %v4745 = vpop.f32.mrf.mxu0
      %4746 = vmatprep.mubr.f32.mxu0 %v1467
      %4747 = vmatmul.mubr.f32.gmra.mxu0 %v1466
      %v4748 = vpop.f32.mrf.mxu0
      %v4749 = vadd.f32 0.0, %v4748
      %v4750 = vpop.f32.mrf.mxu0
      %4751 = vmatprep.mubr.f32.mxu0 %v1473
      %4752 = vmatmul.mubr.f32.gmra.mxu0 %v1472
      %v4753 = vpop.f32.mrf.mxu0
      %v4754 = vadd.f32 0.0, %v4753
      %v4755 = vpop.f32.mrf.mxu0
      %4756 = vmatprep.mubr.f32.mxu0 %v1479
      %4757 = vmatmul.mubr.f32.gmra.mxu0 %v1478
      %v4758 = vpop.f32.mrf.mxu0
      %v4759 = vadd.f32 0.0, %v4758
      %v4760 = vpop.f32.mrf.mxu0
      %4761 = vmatprep.mubr.f32.mxu0 %v1485
      %4762 = vmatmul.mubr.f32.gmra.mxu0 %v1484
      %v4763 = vpop.f32.mrf.mxu0
      %v4764 = vadd.f32 0.0, %v4763
      %v4765 = vpop.f32.mrf.mxu0
      %4766 = vmatprep.mubr.f32.mxu0 %v1491
      %4767 = vmatmul.mubr.f32.gmra.mxu0 %v1490
      %v4768 = vpop.f32.mrf.mxu0
      %v4769 = vadd.f32 0.0, %v4768
      %v4770 = vpop.f32.mrf.mxu0
      %4771 = vmatprep.mubr.f32.mxu0 %v1497
      %4772 = vmatmul.mubr.f32.gmra.mxu0 %v1496
      %v4773 = vpop.f32.mrf.mxu0
      %v4774 = vadd.f32 0.0, %v4773
      %v4775 = vpop.f32.mrf.mxu0
      %4776 = vmatprep.mubr.f32.mxu0 %v1503
      %4777 = vmatmul.mubr.f32.gmra.mxu0 %v1502
      %v4778 = vpop.f32.mrf.mxu0
      %v4779 = vadd.f32 0.0, %v4778
      %v4780 = vpop.f32.mrf.mxu0
      %4781 = vmatprep.mubr.f32.mxu0 %v1509
      %4782 = vmatmul.mubr.f32.gmra.mxu0 %v1508
      %v4783 = vpop.f32.mrf.mxu0
      %v4784 = vadd.f32 0.0, %v4783
      %v4785 = vpop.f32.mrf.mxu0
      %4786 = vmatprep.mubr.f32.mxu0 %v1515
      %4787 = vmatmul.mubr.f32.gmra.mxu0 %v1514
      %v4788 = vpop.f32.mrf.mxu0
      %v4789 = vadd.f32 0.0, %v4788
      %v4790 = vpop.f32.mrf.mxu0
      %4791 = vmatprep.mubr.f32.mxu0 %v1521
      %4792 = vmatmul.mubr.f32.gmra.mxu0 %v1520
      %v4793 = vpop.f32.mrf.mxu0
      %v4794 = vadd.f32 0.0, %v4793
      %v4795 = vpop.f32.mrf.mxu0
      %4796 = vmatprep.mubr.f32.mxu0 %v1527
      %4797 = vmatmul.mubr.f32.gmra.mxu0 %v1526
      %v4798 = vpop.f32.mrf.mxu0
      %v4799 = vadd.f32 0.0, %v4798
      %v4800 = vpop.f32.mrf.mxu0
      %4801 = vmatprep.mubr.f32.mxu0 %v1533
      %4802 = vmatmul.mubr.f32.gmra.mxu0 %v1532
      %v4803 = vpop.f32.mrf.mxu0
      %v4804 = vadd.f32 0.0, %v4803
      %v4805 = vpop.f32.mrf.mxu0
      %4806 = vmatprep.mubr.f32.mxu0 %v1539
      %4807 = vmatmul.mubr.f32.gmra.mxu0 %v1538
      %v4808 = vpop.f32.mrf.mxu0
      %v4809 = vadd.f32 0.0, %v4808
      %v4810 = vpop.f32.mrf.mxu0
      %4811 = vmatprep.mubr.f32.mxu0 %v1545
      %4812 = vmatmul.mubr.f32.gmra.mxu0 %v1544
      %v4813 = vpop.f32.mrf.mxu0
      %v4814 = vadd.f32 0.0, %v4813
      %v4815 = vpop.f32.mrf.mxu0
      %4816 = vmatprep.mubr.f32.mxu0 %v1551
      %4817 = vmatmul.mubr.f32.gmra.mxu0 %v1550
      %v4818 = vpop.f32.mrf.mxu0
      %v4819 = vadd.f32 0.0, %v4818
      %v4820 = vpop.f32.mrf.mxu0
      %4821 = vmatprep.mubr.f32.mxu0 %v1557
      %4822 = vmatmul.mubr.f32.gmra.mxu0 %v1556
      %v4823 = vpop.f32.mrf.mxu0
      %v4824 = vadd.f32 0.0, %v4823
      %v4825 = vpop.f32.mrf.mxu0
      %4826 = vmatprep.mubr.f32.mxu0 %v1563
      %4827 = vmatmul.mubr.f32.gmra.mxu0 %v1562
      %v4828 = vpop.f32.mrf.mxu0
      %v4829 = vadd.f32 0.0, %v4828
      %v4830 = vpop.f32.mrf.mxu0
      %4831 = vmatprep.mubr.f32.mxu0 %v1569
      %4832 = vmatmul.mubr.f32.gmra.mxu0 %v1568
      %v4833 = vpop.f32.mrf.mxu0
      %v4834 = vadd.f32 0.0, %v4833
      %v4835 = vpop.f32.mrf.mxu0
      %4836 = vmatprep.mubr.f32.mxu0 %v1575
      %4837 = vmatmul.mubr.f32.gmra.mxu0 %v1574
      %v4838 = vpop.f32.mrf.mxu0
      %v4839 = vadd.f32 0.0, %v4838
      %v4840 = vpop.f32.mrf.mxu0
      %4841 = vmatprep.mubr.f32.mxu0 %v1581
      %4842 = vmatmul.mubr.f32.gmra.mxu0 %v1580
      %v4843 = vpop.f32.mrf.mxu0
      %v4844 = vadd.f32 0.0, %v4843
      %v4845 = vpop.f32.mrf.mxu0
      %4846 = vmatprep.mubr.f32.mxu0 %v1587
      %4847 = vmatmul.mubr.f32.gmra.mxu0 %v1586
      %v4848 = vpop.f32.mrf.mxu0
      %v4849 = vadd.f32 0.0, %v4848
      %v4850 = vpop.f32.mrf.mxu0
      %4851 = vmatprep.mubr.f32.mxu0 %v1593
      %4852 = vmatmul.mubr.f32.gmra.mxu0 %v1592
      %v4853 = vpop.f32.mrf.mxu0
      %v4854 = vadd.f32 0.0, %v4853
      %v4855 = vpop.f32.mrf.mxu0
      %4856 = vmatprep.mubr.f32.mxu0 %v1599
      %4857 = vmatmul.mubr.f32.gmra.mxu0 %v1598
      %v4858 = vpop.f32.mrf.mxu0
      %v4859 = vadd.f32 0.0, %v4858
      %v4860 = vpop.f32.mrf.mxu0
      %4861 = vmatprep.mubr.f32.mxu0 %v1605
      %4862 = vmatmul.mubr.f32.gmra.mxu0 %v1604
      %v4863 = vpop.f32.mrf.mxu0
      %v4864 = vadd.f32 0.0, %v4863
      %v4865 = vpop.f32.mrf.mxu0
      %4866 = vmatprep.mubr.f32.mxu0 %v1611
      %4867 = vmatmul.mubr.f32.gmra.mxu0 %v1610
      %v4868 = vpop.f32.mrf.mxu0
      %v4869 = vadd.f32 0.0, %v4868
      %v4870 = vpop.f32.mrf.mxu0
      %4871 = vmatprep.mubr.f32.mxu0 %v1617
      %4872 = vmatmul.mubr.f32.gmra.mxu0 %v1616
      %v4873 = vpop.f32.mrf.mxu0
      %v4874 = vadd.f32 0.0, %v4873
      %v4875 = vpop.f32.mrf.mxu0
      %4876 = vdwg.mxu0
      %4877 = vmatprep.subr.mxu0 0.0
      %4878 = vmatpush1.msra.mxu0 %v1117
      %4879 = vmatprep.subr.mxu0 0.0
      %4880 = vmatpush1.msra.mxu0 %v1110
      %4881 = vmatprep.subr.mxu0 0.0
      %4882 = vmatpush1.msra.mxu0 %v1103
      %4883 = vmatprep.subr.mxu0 0.0
      %4884 = vmatpush1.msra.mxu0 %v1096
      %4885 = vmatprep.subr.mxu0 0.0
      %4886 = vmatpush1.msra.mxu0 %v1089
      %4887 = vmatprep.subr.mxu0 0.0
      %4888 = vmatpush1.msra.mxu0 %v1082
      %4889 = vmatprep.subr.mxu0 0.0
      %4890 = vmatpush1.msra.mxu0 %v1075
      %4891 = vmatprep.subr.mxu0 0.0
      %4892 = vmatpush1.msra.mxu0 %v1068
      %4893 = vmatprep.subr.mxu0 0.0
      %4894 = vmatpush1.msra.mxu0 %v1061
      %4895 = vmatprep.subr.mxu0 0.0
      %4896 = vmatpush1.msra.mxu0 %v1054
      %4897 = vmatprep.subr.mxu0 0.0
      %4898 = vmatpush1.msra.mxu0 %v1047
      %4899 = vmatprep.subr.mxu0 0.0
      %4900 = vmatpush1.msra.mxu0 %v1040
      %4901 = vmatprep.subr.mxu0 0.0
      %4902 = vmatpush1.msra.mxu0 %v1033
      %4903 = vmatprep.subr.mxu0 0.0
      %4904 = vmatpush1.msra.mxu0 %v1026
      %4905 = vmatprep.subr.mxu0 0.0
      %4906 = vmatpush1.msra.mxu0 %v1019
      %4907 = vmatprep.subr.mxu0 0.0
      %4908 = vmatpush1.msra.mxu0 %v1012
      %4909 = vmatprep.subr.mxu0 0.0
      %4910 = vmatpush2.msra.mxu0 %v1229
      %4911 = vmatprep.subr.mxu0 0.0
      %4912 = vmatpush2.msra.mxu0 %v1222
      %4913 = vmatprep.subr.mxu0 0.0
      %4914 = vmatpush2.msra.mxu0 %v1215
      %4915 = vmatprep.subr.mxu0 0.0
      %4916 = vmatpush2.msra.mxu0 %v1208
      %4917 = vmatprep.subr.mxu0 0.0
      %4918 = vmatpush2.msra.mxu0 %v1201
      %4919 = vmatprep.subr.mxu0 0.0
      %4920 = vmatpush2.msra.mxu0 %v1194
      %4921 = vmatprep.subr.mxu0 0.0
      %4922 = vmatpush2.msra.mxu0 %v1187
      %4923 = vmatprep.subr.mxu0 0.0
      %4924 = vmatpush2.msra.mxu0 %v1180
      %4925 = vmatprep.subr.mxu0 0.0
      %4926 = vmatpush2.msra.mxu0 %v1173
      %4927 = vmatprep.subr.mxu0 0.0
      %4928 = vmatpush2.msra.mxu0 %v1166
      %4929 = vmatprep.subr.mxu0 0.0
      %4930 = vmatpush2.msra.mxu0 %v1159
      %4931 = vmatprep.subr.mxu0 0.0
      %4932 = vmatpush2.msra.mxu0 %v1152
      %4933 = vmatprep.subr.mxu0 0.0
      %4934 = vmatpush2.msra.mxu0 %v1145
      %4935 = vmatprep.subr.mxu0 0.0
      %4936 = vmatpush2.msra.mxu0 %v1138
      %4937 = vmatprep.subr.mxu0 0.0
      %4938 = vmatpush2.msra.mxu0 %v1131
      %4939 = vmatprep.subr.mxu0 0.0
      %4940 = vmatpush2.msra.mxu0 %v1124
      %4941 = vmatprep.mubr.f32.mxu0 %v1373
      %4942 = vmatmul.mubr.f32.gmra.mxu0 %v1372
      %v4943 = vpop.f32.mrf.mxu0
      %v4944 = vadd.f32 %v4669, %v4943
      %v4945 = vpop.f32.mrf.mxu0
      %4946 = vmatprep.mubr.f32.mxu0 %v1379
      %4947 = vmatmul.mubr.f32.gmra.mxu0 %v1378
      %v4948 = vpop.f32.mrf.mxu0
      %v4949 = vadd.f32 %v4674, %v4948
      %v4950 = vpop.f32.mrf.mxu0
      %4951 = vmatprep.mubr.f32.mxu0 %v1385
      %4952 = vmatmul.mubr.f32.gmra.mxu0 %v1384
      %v4953 = vpop.f32.mrf.mxu0
      %v4954 = vadd.f32 %v4679, %v4953
      %v4955 = vpop.f32.mrf.mxu0
      %4956 = vmatprep.mubr.f32.mxu0 %v1391
      %4957 = vmatmul.mubr.f32.gmra.mxu0 %v1390
      %v4958 = vpop.f32.mrf.mxu0
      %v4959 = vadd.f32 %v4684, %v4958
      %v4960 = vpop.f32.mrf.mxu0
      %4961 = vmatprep.mubr.f32.mxu0 %v1397
      %4962 = vmatmul.mubr.f32.gmra.mxu0 %v1396
      %v4963 = vpop.f32.mrf.mxu0
      %v4964 = vadd.f32 %v4689, %v4963
      %v4965 = vpop.f32.mrf.mxu0
      %4966 = vmatprep.mubr.f32.mxu0 %v1403
      %4967 = vmatmul.mubr.f32.gmra.mxu0 %v1402
      %v4968 = vpop.f32.mrf.mxu0
      %v4969 = vadd.f32 %v4694, %v4968
      %v4970 = vpop.f32.mrf.mxu0
      %4971 = vmatprep.mubr.f32.mxu0 %v1409
      %4972 = vmatmul.mubr.f32.gmra.mxu0 %v1408
      %v4973 = vpop.f32.mrf.mxu0
      %v4974 = vadd.f32 %v4699, %v4973
      %v4975 = vpop.f32.mrf.mxu0
      %4976 = vmatprep.mubr.f32.mxu0 %v1415
      %4977 = vmatmul.mubr.f32.gmra.mxu0 %v1414
      %v4978 = vpop.f32.mrf.mxu0
      %v4979 = vadd.f32 %v4704, %v4978
      %v4980 = vpop.f32.mrf.mxu0
      %4981 = vmatprep.mubr.f32.mxu0 %v1421
      %4982 = vmatmul.mubr.f32.gmra.mxu0 %v1420
      %v4983 = vpop.f32.mrf.mxu0
      %v4984 = vadd.f32 %v4709, %v4983
      %v4985 = vpop.f32.mrf.mxu0
      %4986 = vmatprep.mubr.f32.mxu0 %v1427
      %4987 = vmatmul.mubr.f32.gmra.mxu0 %v1426
      %v4988 = vpop.f32.mrf.mxu0
      %v4989 = vadd.f32 %v4714, %v4988
      %v4990 = vpop.f32.mrf.mxu0
      %4991 = vmatprep.mubr.f32.mxu0 %v1433
      %4992 = vmatmul.mubr.f32.gmra.mxu0 %v1432
      %v4993 = vpop.f32.mrf.mxu0
      %v4994 = vadd.f32 %v4719, %v4993
      %v4995 = vpop.f32.mrf.mxu0
      %4996 = vmatprep.mubr.f32.mxu0 %v1439
      %4997 = vmatmul.mubr.f32.gmra.mxu0 %v1438
      %v4998 = vpop.f32.mrf.mxu0
      %v4999 = vadd.f32 %v4724, %v4998
      %v5000 = vpop.f32.mrf.mxu0
      %5001 = vmatprep.mubr.f32.mxu0 %v1445
      %5002 = vmatmul.mubr.f32.gmra.mxu0 %v1444
      %v5003 = vpop.f32.mrf.mxu0
      %v5004 = vadd.f32 %v4729, %v5003
      %v5005 = vpop.f32.mrf.mxu0
      %5006 = vmatprep.mubr.f32.mxu0 %v1451
      %5007 = vmatmul.mubr.f32.gmra.mxu0 %v1450
      %v5008 = vpop.f32.mrf.mxu0
      %v5009 = vadd.f32 %v4734, %v5008
      %v5010 = vpop.f32.mrf.mxu0
      %5011 = vmatprep.mubr.f32.mxu0 %v1457
      %5012 = vmatmul.mubr.f32.gmra.mxu0 %v1456
      %v5013 = vpop.f32.mrf.mxu0
      %v5014 = vadd.f32 %v4739, %v5013
      %v5015 = vpop.f32.mrf.mxu0
      %5016 = vmatprep.mubr.f32.mxu0 %v1463
      %5017 = vmatmul.mubr.f32.gmra.mxu0 %v1462
      %v5018 = vpop.f32.mrf.mxu0
      %v5019 = vadd.f32 %v4744, %v5018
      %v5020 = vpop.f32.mrf.mxu0
      %5021 = vmatprep.mubr.f32.mxu0 %v1469
      %5022 = vmatmul.mubr.f32.gmra.mxu0 %v1468
      %v5023 = vpop.f32.mrf.mxu0
      %v5024 = vadd.f32 %v4749, %v5023
      %v5025 = vpop.f32.mrf.mxu0
      %5026 = vmatprep.mubr.f32.mxu0 %v1475
      %5027 = vmatmul.mubr.f32.gmra.mxu0 %v1474
      %v5028 = vpop.f32.mrf.mxu0
      %v5029 = vadd.f32 %v4754, %v5028
      %v5030 = vpop.f32.mrf.mxu0
      %5031 = vmatprep.mubr.f32.mxu0 %v1481
      %5032 = vmatmul.mubr.f32.gmra.mxu0 %v1480
      %v5033 = vpop.f32.mrf.mxu0
      %v5034 = vadd.f32 %v4759, %v5033
      %v5035 = vpop.f32.mrf.mxu0
      %5036 = vmatprep.mubr.f32.mxu0 %v1487
      %5037 = vmatmul.mubr.f32.gmra.mxu0 %v1486
      %v5038 = vpop.f32.mrf.mxu0
      %v5039 = vadd.f32 %v4764, %v5038
      %v5040 = vpop.f32.mrf.mxu0
      %5041 = vmatprep.mubr.f32.mxu0 %v1493
      %5042 = vmatmul.mubr.f32.gmra.mxu0 %v1492
      %v5043 = vpop.f32.mrf.mxu0
      %v5044 = vadd.f32 %v4769, %v5043
      %v5045 = vpop.f32.mrf.mxu0
      %5046 = vmatprep.mubr.f32.mxu0 %v1499
      %5047 = vmatmul.mubr.f32.gmra.mxu0 %v1498
      %v5048 = vpop.f32.mrf.mxu0
      %v5049 = vadd.f32 %v4774, %v5048
      %v5050 = vpop.f32.mrf.mxu0
      %5051 = vmatprep.mubr.f32.mxu0 %v1505
      %5052 = vmatmul.mubr.f32.gmra.mxu0 %v1504
      %v5053 = vpop.f32.mrf.mxu0
      %v5054 = vadd.f32 %v4779, %v5053
      %v5055 = vpop.f32.mrf.mxu0
      %5056 = vmatprep.mubr.f32.mxu0 %v1511
      %5057 = vmatmul.mubr.f32.gmra.mxu0 %v1510
      %v5058 = vpop.f32.mrf.mxu0
      %v5059 = vadd.f32 %v4784, %v5058
      %v5060 = vpop.f32.mrf.mxu0
      %5061 = vmatprep.mubr.f32.mxu0 %v1517
      %5062 = vmatmul.mubr.f32.gmra.mxu0 %v1516
      %v5063 = vpop.f32.mrf.mxu0
      %v5064 = vadd.f32 %v4789, %v5063
      %v5065 = vpop.f32.mrf.mxu0
      %5066 = vmatprep.mubr.f32.mxu0 %v1523
      %5067 = vmatmul.mubr.f32.gmra.mxu0 %v1522
      %v5068 = vpop.f32.mrf.mxu0
      %v5069 = vadd.f32 %v4794, %v5068
      %v5070 = vpop.f32.mrf.mxu0
      %5071 = vmatprep.mubr.f32.mxu0 %v1529
      %5072 = vmatmul.mubr.f32.gmra.mxu0 %v1528
      %v5073 = vpop.f32.mrf.mxu0
      %v5074 = vadd.f32 %v4799, %v5073
      %v5075 = vpop.f32.mrf.mxu0
      %5076 = vmatprep.mubr.f32.mxu0 %v1535
      %5077 = vmatmul.mubr.f32.gmra.mxu0 %v1534
      %v5078 = vpop.f32.mrf.mxu0
      %v5079 = vadd.f32 %v4804, %v5078
      %v5080 = vpop.f32.mrf.mxu0
      %5081 = vmatprep.mubr.f32.mxu0 %v1541
      %5082 = vmatmul.mubr.f32.gmra.mxu0 %v1540
      %v5083 = vpop.f32.mrf.mxu0
      %v5084 = vadd.f32 %v4809, %v5083
      %v5085 = vpop.f32.mrf.mxu0
      %5086 = vmatprep.mubr.f32.mxu0 %v1547
      %5087 = vmatmul.mubr.f32.gmra.mxu0 %v1546
      %v5088 = vpop.f32.mrf.mxu0
      %v5089 = vadd.f32 %v4814, %v5088
      %v5090 = vpop.f32.mrf.mxu0
      %5091 = vmatprep.mubr.f32.mxu0 %v1553
      %5092 = vmatmul.mubr.f32.gmra.mxu0 %v1552
      %v5093 = vpop.f32.mrf.mxu0
      %v5094 = vadd.f32 %v4819, %v5093
      %v5095 = vpop.f32.mrf.mxu0
      %5096 = vmatprep.mubr.f32.mxu0 %v1559
      %5097 = vmatmul.mubr.f32.gmra.mxu0 %v1558
      %v5098 = vpop.f32.mrf.mxu0
      %v5099 = vadd.f32 %v4824, %v5098
      %v5100 = vpop.f32.mrf.mxu0
      %5101 = vmatprep.mubr.f32.mxu0 %v1565
      %5102 = vmatmul.mubr.f32.gmra.mxu0 %v1564
      %v5103 = vpop.f32.mrf.mxu0
      %v5104 = vadd.f32 %v4829, %v5103
      %v5105 = vpop.f32.mrf.mxu0
      %5106 = vmatprep.mubr.f32.mxu0 %v1571
      %5107 = vmatmul.mubr.f32.gmra.mxu0 %v1570
      %v5108 = vpop.f32.mrf.mxu0
      %v5109 = vadd.f32 %v4834, %v5108
      %v5110 = vpop.f32.mrf.mxu0
      %5111 = vmatprep.mubr.f32.mxu0 %v1577
      %5112 = vmatmul.mubr.f32.gmra.mxu0 %v1576
      %v5113 = vpop.f32.mrf.mxu0
      %v5114 = vadd.f32 %v4839, %v5113
      %v5115 = vpop.f32.mrf.mxu0
      %5116 = vmatprep.mubr.f32.mxu0 %v1583
      %5117 = vmatmul.mubr.f32.gmra.mxu0 %v1582
      %v5118 = vpop.f32.mrf.mxu0
      %v5119 = vadd.f32 %v4844, %v5118
      %v5120 = vpop.f32.mrf.mxu0
      %5121 = vmatprep.mubr.f32.mxu0 %v1589
      %5122 = vmatmul.mubr.f32.gmra.mxu0 %v1588
      %v5123 = vpop.f32.mrf.mxu0
      %v5124 = vadd.f32 %v4849, %v5123
      %v5125 = vpop.f32.mrf.mxu0
      %5126 = vmatprep.mubr.f32.mxu0 %v1595
      %5127 = vmatmul.mubr.f32.gmra.mxu0 %v1594
      %v5128 = vpop.f32.mrf.mxu0
      %v5129 = vadd.f32 %v4854, %v5128
      %v5130 = vpop.f32.mrf.mxu0
      %5131 = vmatprep.mubr.f32.mxu0 %v1601
      %5132 = vmatmul.mubr.f32.gmra.mxu0 %v1600
      %v5133 = vpop.f32.mrf.mxu0
      %v5134 = vadd.f32 %v4859, %v5133
      %v5135 = vpop.f32.mrf.mxu0
      %5136 = vmatprep.mubr.f32.mxu0 %v1607
      %5137 = vmatmul.mubr.f32.gmra.mxu0 %v1606
      %v5138 = vpop.f32.mrf.mxu0
      %v5139 = vadd.f32 %v4864, %v5138
      %v5140 = vpop.f32.mrf.mxu0
      %5141 = vmatprep.mubr.f32.mxu0 %v1613
      %5142 = vmatmul.mubr.f32.gmra.mxu0 %v1612
      %v5143 = vpop.f32.mrf.mxu0
      %v5144 = vadd.f32 %v4869, %v5143
      %v5145 = vpop.f32.mrf.mxu0
      %5146 = vmatprep.mubr.f32.mxu0 %v1619
      %5147 = vmatmul.mubr.f32.gmra.mxu0 %v1618
      %v5148 = vpop.f32.mrf.mxu0
      %v5149 = vadd.f32 %v4874, %v5148
      %v5150 = vpop.f32.mrf.mxu0
      %5151 = vdwg.mxu0
      %5152 = vmatprep.subr.mxu0 0.0
      %5153 = vmatpush1.msra.mxu0 %v1341
      %5154 = vmatprep.subr.mxu0 0.0
      %5155 = vmatpush1.msra.mxu0 %v1334
      %5156 = vmatprep.subr.mxu0 0.0
      %5157 = vmatpush1.msra.mxu0 %v1327
      %5158 = vmatprep.subr.mxu0 0.0
      %5159 = vmatpush1.msra.mxu0 %v1320
      %5160 = vmatprep.subr.mxu0 0.0
      %5161 = vmatpush1.msra.mxu0 %v1313
      %5162 = vmatprep.subr.mxu0 0.0
      %5163 = vmatpush1.msra.mxu0 %v1306
      %5164 = vmatprep.subr.mxu0 0.0
      %5165 = vmatpush1.msra.mxu0 %v1299
      %5166 = vmatprep.subr.mxu0 0.0
      %5167 = vmatpush1.msra.mxu0 %v1292
      %5168 = vmatprep.subr.mxu0 0.0
      %5169 = vmatpush1.msra.mxu0 %v1285
      %5170 = vmatprep.subr.mxu0 0.0
      %5171 = vmatpush1.msra.mxu0 %v1278
      %5172 = vmatprep.subr.mxu0 0.0
      %5173 = vmatpush1.msra.mxu0 %v1271
      %5174 = vmatprep.subr.mxu0 0.0
      %5175 = vmatpush1.msra.mxu0 %v1264
      %5176 = vmatprep.subr.mxu0 0.0
      %5177 = vmatpush1.msra.mxu0 %v1257
      %5178 = vmatprep.subr.mxu0 0.0
      %5179 = vmatpush1.msra.mxu0 %v1250
      %5180 = vmatprep.subr.mxu0 0.0
      %5181 = vmatpush1.msra.mxu0 %v1243
      %5182 = vmatprep.subr.mxu0 0.0
      %5183 = vmatpush1.msra.mxu0 %v1236
      %5184 = vmatprep.subr.mxu0 0.0
      %5185 = vmatpush2.msra.mxu0 0.0
      %5186 = vmatprep.subr.mxu0 0.0
      %5187 = vmatpush2.msra.mxu0 0.0
      %5188 = vmatprep.subr.mxu0 0.0
      %5189 = vmatpush2.msra.mxu0 0.0
      %5190 = vmatprep.subr.mxu0 0.0
      %5191 = vmatpush2.msra.mxu0 0.0
      %5192 = vmatprep.subr.mxu0 0.0
      %5193 = vmatpush2.msra.mxu0 0.0
      %5194 = vmatprep.subr.mxu0 0.0
      %5195 = vmatpush2.msra.mxu0 0.0
      %5196 = vmatprep.subr.mxu0 0.0
      %5197 = vmatpush2.msra.mxu0 0.0
      %5198 = vmatprep.subr.mxu0 0.0
      %5199 = vmatpush2.msra.mxu0 0.0
      %5200 = vmatprep.subr.mxu0 0.0
      %5201 = vmatpush2.msra.mxu0 0.0
      %5202 = vmatprep.subr.mxu0 0.0
      %5203 = vmatpush2.msra.mxu0 0.0
      %5204 = vmatprep.subr.mxu0 0.0
      %5205 = vmatpush2.msra.mxu0 0.0
      %5206 = vmatprep.subr.mxu0 0.0
      %5207 = vmatpush2.msra.mxu0 0.0
      %5208 = vmatprep.subr.mxu0 0.0
      %5209 = vmatpush2.msra.mxu0 %v1369
      %5210 = vmatprep.subr.mxu0 0.0
      %5211 = vmatpush2.msra.mxu0 %v1362
      %5212 = vmatprep.subr.mxu0 0.0
      %5213 = vmatpush2.msra.mxu0 %v1355
      %5214 = vmatprep.subr.mxu0 0.0
      %5215 = vmatpush2.msra.mxu0 %v1348
      %5216 = vmatprep.mubr.f32.mxu0 %v1624
      %5217 = vmatmul.mubr.f32.gmra.mxu0 %v1374
      %v5218 = vpop.f32.mrf.mxu0
      %v5219 = vadd.f32 %v4944, %v5218
      %v5220 = vpop.f32.mrf.mxu0
      %5221 = vmatprep.mubr.f32.mxu0 %v1627
      %5222 = vmatmul.mubr.f32.gmra.mxu0 %v1380
      %v5223 = vpop.f32.mrf.mxu0
      %v5224 = vadd.f32 %v4949, %v5223
      %v5225 = vpop.f32.mrf.mxu0
      %5226 = vmatprep.mubr.f32.mxu0 %v1630
      %5227 = vmatmul.mubr.f32.gmra.mxu0 %v1386
      %v5228 = vpop.f32.mrf.mxu0
      %v5229 = vadd.f32 %v4954, %v5228
      %v5230 = vpop.f32.mrf.mxu0
      %5231 = vmatprep.mubr.f32.mxu0 %v1633
      %5232 = vmatmul.mubr.f32.gmra.mxu0 %v1392
      %v5233 = vpop.f32.mrf.mxu0
      %v5234 = vadd.f32 %v4959, %v5233
      %v5235 = vpop.f32.mrf.mxu0
      %5236 = vmatprep.mubr.f32.mxu0 %v1636
      %5237 = vmatmul.mubr.f32.gmra.mxu0 %v1398
      %v5238 = vpop.f32.mrf.mxu0
      %v5239 = vadd.f32 %v4964, %v5238
      %v5240 = vpop.f32.mrf.mxu0
      %5241 = vmatprep.mubr.f32.mxu0 %v1639
      %5242 = vmatmul.mubr.f32.gmra.mxu0 %v1404
      %v5243 = vpop.f32.mrf.mxu0
      %v5244 = vadd.f32 %v4969, %v5243
      %v5245 = vpop.f32.mrf.mxu0
      %5246 = vmatprep.mubr.f32.mxu0 %v1642
      %5247 = vmatmul.mubr.f32.gmra.mxu0 %v1410
      %v5248 = vpop.f32.mrf.mxu0
      %v5249 = vadd.f32 %v4974, %v5248
      %v5250 = vpop.f32.mrf.mxu0
      %5251 = vmatprep.mubr.f32.mxu0 %v1645
      %5252 = vmatmul.mubr.f32.gmra.mxu0 %v1416
      %v5253 = vpop.f32.mrf.mxu0
      %v5254 = vadd.f32 %v4979, %v5253
      %v5255 = vpop.f32.mrf.mxu0
      %5256 = vmatprep.mubr.f32.mxu0 %v1648
      %5257 = vmatmul.mubr.f32.gmra.mxu0 %v1422
      %v5258 = vpop.f32.mrf.mxu0
      %v5259 = vadd.f32 %v4984, %v5258
      %v5260 = vpop.f32.mrf.mxu0
      %5261 = vmatprep.mubr.f32.mxu0 %v1651
      %5262 = vmatmul.mubr.f32.gmra.mxu0 %v1428
      %v5263 = vpop.f32.mrf.mxu0
      %v5264 = vadd.f32 %v4989, %v5263
      %v5265 = vpop.f32.mrf.mxu0
      %5266 = vmatprep.mubr.f32.mxu0 %v1654
      %5267 = vmatmul.mubr.f32.gmra.mxu0 %v1434
      %v5268 = vpop.f32.mrf.mxu0
      %v5269 = vadd.f32 %v4994, %v5268
      %v5270 = vpop.f32.mrf.mxu0
      %5271 = vmatprep.mubr.f32.mxu0 %v1657
      %5272 = vmatmul.mubr.f32.gmra.mxu0 %v1440
      %v5273 = vpop.f32.mrf.mxu0
      %v5274 = vadd.f32 %v4999, %v5273
      %v5275 = vpop.f32.mrf.mxu0
      %5276 = vmatprep.mubr.f32.mxu0 %v1660
      %5277 = vmatmul.mubr.f32.gmra.mxu0 %v1446
      %v5278 = vpop.f32.mrf.mxu0
      %v5279 = vadd.f32 %v5004, %v5278
      %v5280 = vpop.f32.mrf.mxu0
      %5281 = vmatprep.mubr.f32.mxu0 %v1663
      %5282 = vmatmul.mubr.f32.gmra.mxu0 %v1452
      %v5283 = vpop.f32.mrf.mxu0
      %v5284 = vadd.f32 %v5009, %v5283
      %v5285 = vpop.f32.mrf.mxu0
      %5286 = vmatprep.mubr.f32.mxu0 %v1666
      %5287 = vmatmul.mubr.f32.gmra.mxu0 %v1458
      %v5288 = vpop.f32.mrf.mxu0
      %v5289 = vadd.f32 %v5014, %v5288
      %v5290 = vpop.f32.mrf.mxu0
      %5291 = vmatprep.mubr.f32.mxu0 %v1669
      %5292 = vmatmul.mubr.f32.gmra.mxu0 %v1464
      %v5293 = vpop.f32.mrf.mxu0
      %v5294 = vadd.f32 %v5019, %v5293
      %v5295 = vpop.f32.mrf.mxu0
      %5296 = vmatprep.mubr.f32.mxu0 %v1672
      %5297 = vmatmul.mubr.f32.gmra.mxu0 %v1470
      %v5298 = vpop.f32.mrf.mxu0
      %v5299 = vadd.f32 %v5024, %v5298
      %v5300 = vpop.f32.mrf.mxu0
      %5301 = vmatprep.mubr.f32.mxu0 %v1675
      %5302 = vmatmul.mubr.f32.gmra.mxu0 %v1476
      %v5303 = vpop.f32.mrf.mxu0
      %v5304 = vadd.f32 %v5029, %v5303
      %v5305 = vpop.f32.mrf.mxu0
      %5306 = vmatprep.mubr.f32.mxu0 %v1678
      %5307 = vmatmul.mubr.f32.gmra.mxu0 %v1482
      %v5308 = vpop.f32.mrf.mxu0
      %v5309 = vadd.f32 %v5034, %v5308
      %v5310 = vpop.f32.mrf.mxu0
      %5311 = vmatprep.mubr.f32.mxu0 %v1681
      %5312 = vmatmul.mubr.f32.gmra.mxu0 %v1488
      %v5313 = vpop.f32.mrf.mxu0
      %v5314 = vadd.f32 %v5039, %v5313
      %v5315 = vpop.f32.mrf.mxu0
      %5316 = vmatprep.mubr.f32.mxu0 %v1684
      %5317 = vmatmul.mubr.f32.gmra.mxu0 %v1494
      %v5318 = vpop.f32.mrf.mxu0
      %v5319 = vadd.f32 %v5044, %v5318
      %v5320 = vpop.f32.mrf.mxu0
      %5321 = vmatprep.mubr.f32.mxu0 %v1687
      %5322 = vmatmul.mubr.f32.gmra.mxu0 %v1500
      %v5323 = vpop.f32.mrf.mxu0
      %v5324 = vadd.f32 %v5049, %v5323
      %v5325 = vpop.f32.mrf.mxu0
      %5326 = vmatprep.mubr.f32.mxu0 %v1690
      %5327 = vmatmul.mubr.f32.gmra.mxu0 %v1506
      %v5328 = vpop.f32.mrf.mxu0
      %v5329 = vadd.f32 %v5054, %v5328
      %v5330 = vpop.f32.mrf.mxu0
      %5331 = vmatprep.mubr.f32.mxu0 %v1693
      %5332 = vmatmul.mubr.f32.gmra.mxu0 %v1512
      %v5333 = vpop.f32.mrf.mxu0
      %v5334 = vadd.f32 %v5059, %v5333
      %v5335 = vpop.f32.mrf.mxu0
      %5336 = vmatprep.mubr.f32.mxu0 %v1696
      %5337 = vmatmul.mubr.f32.gmra.mxu0 %v1518
      %v5338 = vpop.f32.mrf.mxu0
      %v5339 = vadd.f32 %v5064, %v5338
      %v5340 = vpop.f32.mrf.mxu0
      %5341 = vmatprep.mubr.f32.mxu0 %v1699
      %5342 = vmatmul.mubr.f32.gmra.mxu0 %v1524
      %v5343 = vpop.f32.mrf.mxu0
      %v5344 = vadd.f32 %v5069, %v5343
      %v5345 = vpop.f32.mrf.mxu0
      %5346 = vmatprep.mubr.f32.mxu0 %v1702
      %5347 = vmatmul.mubr.f32.gmra.mxu0 %v1530
      %v5348 = vpop.f32.mrf.mxu0
      %v5349 = vadd.f32 %v5074, %v5348
      %v5350 = vpop.f32.mrf.mxu0
      %5351 = vmatprep.mubr.f32.mxu0 %v1705
      %5352 = vmatmul.mubr.f32.gmra.mxu0 %v1536
      %v5353 = vpop.f32.mrf.mxu0
      %v5354 = vadd.f32 %v5079, %v5353
      %v5355 = vpop.f32.mrf.mxu0
      %5356 = vmatprep.mubr.f32.mxu0 %v1708
      %5357 = vmatmul.mubr.f32.gmra.mxu0 %v1542
      %v5358 = vpop.f32.mrf.mxu0
      %v5359 = vadd.f32 %v5084, %v5358
      %v5360 = vpop.f32.mrf.mxu0
      %5361 = vmatprep.mubr.f32.mxu0 %v1711
      %5362 = vmatmul.mubr.f32.gmra.mxu0 %v1548
      %v5363 = vpop.f32.mrf.mxu0
      %v5364 = vadd.f32 %v5089, %v5363
      %v5365 = vpop.f32.mrf.mxu0
      %5366 = vmatprep.mubr.f32.mxu0 %v1714
      %5367 = vmatmul.mubr.f32.gmra.mxu0 %v1554
      %v5368 = vpop.f32.mrf.mxu0
      %v5369 = vadd.f32 %v5094, %v5368
      %v5370 = vpop.f32.mrf.mxu0
      %5371 = vmatprep.mubr.f32.mxu0 %v1717
      %5372 = vmatmul.mubr.f32.gmra.mxu0 %v1560
      %v5373 = vpop.f32.mrf.mxu0
      %v5374 = vadd.f32 %v5099, %v5373
      %v5375 = vpop.f32.mrf.mxu0
      %5376 = vmatprep.mubr.f32.mxu0 %v1720
      %5377 = vmatmul.mubr.f32.gmra.mxu0 %v1566
      %v5378 = vpop.f32.mrf.mxu0
      %v5379 = vadd.f32 %v5104, %v5378
      %v5380 = vpop.f32.mrf.mxu0
      %5381 = vmatprep.mubr.f32.mxu0 %v1723
      %5382 = vmatmul.mubr.f32.gmra.mxu0 %v1572
      %v5383 = vpop.f32.mrf.mxu0
      %v5384 = vadd.f32 %v5109, %v5383
      %v5385 = vpop.f32.mrf.mxu0
      %5386 = vmatprep.mubr.f32.mxu0 %v1726
      %5387 = vmatmul.mubr.f32.gmra.mxu0 %v1578
      %v5388 = vpop.f32.mrf.mxu0
      %v5389 = vadd.f32 %v5114, %v5388
      %v5390 = vpop.f32.mrf.mxu0
      %5391 = vmatprep.mubr.f32.mxu0 %v1729
      %5392 = vmatmul.mubr.f32.gmra.mxu0 %v1584
      %v5393 = vpop.f32.mrf.mxu0
      %v5394 = vadd.f32 %v5119, %v5393
      %v5395 = vpop.f32.mrf.mxu0
      %5396 = vmatprep.mubr.f32.mxu0 %v1732
      %5397 = vmatmul.mubr.f32.gmra.mxu0 %v1590
      %v5398 = vpop.f32.mrf.mxu0
      %v5399 = vadd.f32 %v5124, %v5398
      %v5400 = vpop.f32.mrf.mxu0
      %5401 = vmatprep.mubr.f32.mxu0 %v1735
      %5402 = vmatmul.mubr.f32.gmra.mxu0 %v1596
      %v5403 = vpop.f32.mrf.mxu0
      %v5404 = vadd.f32 %v5129, %v5403
      %v5405 = vpop.f32.mrf.mxu0
      %5406 = vmatprep.mubr.f32.mxu0 %v1738
      %5407 = vmatmul.mubr.f32.gmra.mxu0 %v1602
      %v5408 = vpop.f32.mrf.mxu0
      %v5409 = vadd.f32 %v5134, %v5408
      %v5410 = vpop.f32.mrf.mxu0
      %5411 = vmatprep.mubr.f32.mxu0 %v1741
      %5412 = vmatmul.mubr.f32.gmra.mxu0 %v1608
      %v5413 = vpop.f32.mrf.mxu0
      %v5414 = vadd.f32 %v5139, %v5413
      %v5415 = vpop.f32.mrf.mxu0
      %5416 = vmatprep.mubr.f32.mxu0 %v1744
      %5417 = vmatmul.mubr.f32.gmra.mxu0 %v1614
      %v5418 = vpop.f32.mrf.mxu0
      %v5419 = vadd.f32 %v5144, %v5418
      %v5420 = vpop.f32.mrf.mxu0
      %5421 = vmatprep.mubr.f32.mxu0 %v1747
      %5422 = vmatmul.mubr.f32.gmra.mxu0 %v1620
      %v5423 = vpop.f32.mrf.mxu0
      %v5424 = vadd.f32 %v5149, %v5423
      %v5425 = vpop.f32.mrf.mxu0
      %5426 = vdwg.mxu0
      %5427 = vst [vmem:[%s192] sm:$0xff] %v2450
      %5428 = vst [vmem:[%s192 + $0x8] sm:$0xff] %v2452
      %5429 = vst [vmem:[%s192 + $0x10] sm:$0xff] %v3401
      %5430 = vst [vmem:[%s192 + $0x18] sm:$0xff] %v3403
      %5431 = vst [vmem:[%s192 + $0x20] sm:$0xff] %v4352
      %5432 = vst [vmem:[%s192 + $0x28] sm:$0xff] %v4354
      %vm5433 = vcmask 130048
      %5434 = vst.msk [vmem:[%s192 + $0x30] sm:$0xff] %vm5433, %v5219
      %5435 = vst [vmem:[%s192 + $0x38] sm:$0xff] %v2456
      %5436 = vst [vmem:[%s192 + $0x40] sm:$0xff] %v2458
      %5437 = vst [vmem:[%s192 + $0x48] sm:$0xff] %v3407
      %5438 = vst [vmem:[%s192 + $0x50] sm:$0xff] %v3409
      %5439 = vst [vmem:[%s192 + $0x58] sm:$0xff] %v4358
      %5440 = vst [vmem:[%s192 + $0x60] sm:$0xff] %v4360
      %5441 = vst.msk [vmem:[%s192 + $0x68] sm:$0xff] %vm5433, %v5224
      %5442 = vst [vmem:[%s192 + $0x70] sm:$0xff] %v2462
      %5443 = vst [vmem:[%s192 + $0x78] sm:$0xff] %v2464
      %5444 = vst [vmem:[%s192 + $0x80] sm:$0xff] %v3413
      %5445 = vst [vmem:[%s192 + $0x88] sm:$0xff] %v3415
      %5446 = vst [vmem:[%s192 + $0x90] sm:$0xff] %v4364
      %5447 = vst [vmem:[%s192 + $0x98] sm:$0xff] %v4366
      %5448 = vst.msk [vmem:[%s192 + $0xa0] sm:$0xff] %vm5433, %v5229
      %5449 = vst [vmem:[%s192 + $0xa8] sm:$0xff] %v2468
      %5450 = vst [vmem:[%s192 + $0xb0] sm:$0xff] %v2470
      %5451 = vst [vmem:[%s192 + $0xb8] sm:$0xff] %v3419
      %5452 = vst [vmem:[%s192 + $0xc0] sm:$0xff] %v3421
      %5453 = vst [vmem:[%s192 + $0xc8] sm:$0xff] %v4370
      %5454 = vst [vmem:[%s192 + $0xd0] sm:$0xff] %v4372
      %5455 = vst.msk [vmem:[%s192 + $0xd8] sm:$0xff] %vm5433, %v5234
      %5456 = vst [vmem:[%s192 + $0xe0] sm:$0xff] %v2474
      %5457 = vst [vmem:[%s192 + $0xe8] sm:$0xff] %v2476
      %5458 = vst [vmem:[%s192 + $0xf0] sm:$0xff] %v3425
      %5459 = vst [vmem:[%s192 + $0xf8] sm:$0xff] %v3427
      %5460 = vst [vmem:[%s192 + $0x100] sm:$0xff] %v4376
      %5461 = vst [vmem:[%s192 + $0x108] sm:$0xff] %v4378
      %5462 = vst.msk [vmem:[%s192 + $0x110] sm:$0xff] %vm5433, %v5239
      %5463 = vst [vmem:[%s192 + $0x118] sm:$0xff] %v2480
      %5464 = vst [vmem:[%s192 + $0x120] sm:$0xff] %v2482
      %5465 = vst [vmem:[%s192 + $0x128] sm:$0xff] %v3431
      %5466 = vst [vmem:[%s192 + $0x130] sm:$0xff] %v3433
      %5467 = vst [vmem:[%s192 + $0x138] sm:$0xff] %v4382
      %5468 = vst [vmem:[%s192 + $0x140] sm:$0xff] %v4384
      %5469 = vst.msk [vmem:[%s192 + $0x148] sm:$0xff] %vm5433, %v5244
      %5470 = vst [vmem:[%s192 + $0x150] sm:$0xff] %v2486
      %5471 = vst [vmem:[%s192 + $0x158] sm:$0xff] %v2488
      %5472 = vst [vmem:[%s192 + $0x160] sm:$0xff] %v3437
      %5473 = vst [vmem:[%s192 + $0x168] sm:$0xff] %v3439
      %5474 = vst [vmem:[%s192 + $0x170] sm:$0xff] %v4388
      %5475 = vst [vmem:[%s192 + $0x178] sm:$0xff] %v4390
      %5476 = vst.msk [vmem:[%s192 + $0x180] sm:$0xff] %vm5433, %v5249
      %5477 = vst [vmem:[%s192 + $0x188] sm:$0xff] %v2492
      %5478 = vst [vmem:[%s192 + $0x190] sm:$0xff] %v2494
      %5479 = vst [vmem:[%s192 + $0x198] sm:$0xff] %v3443
      %5480 = vst [vmem:[%s192 + $0x1a0] sm:$0xff] %v3445
      %5481 = vst [vmem:[%s192 + $0x1a8] sm:$0xff] %v4394
      %5482 = vst [vmem:[%s192 + $0x1b0] sm:$0xff] %v4396
      %5483 = vst.msk [vmem:[%s192 + $0x1b8] sm:$0xff] %vm5433, %v5254
      %5484 = vst [vmem:[%s192 + $0x1c0] sm:$0xff] %v2498
      %5485 = vst [vmem:[%s192 + $0x1c8] sm:$0xff] %v2500
      %5486 = vst [vmem:[%s192 + $0x1d0] sm:$0xff] %v3449
      %5487 = vst [vmem:[%s192 + $0x1d8] sm:$0xff] %v3451
      %5488 = vst [vmem:[%s192 + $0x1e0] sm:$0xff] %v4400
      %5489 = vst [vmem:[%s192 + $0x1e8] sm:$0xff] %v4402
      %5490 = vst.msk [vmem:[%s192 + $0x1f0] sm:$0xff] %vm5433, %v5259
      %5491 = vst [vmem:[%s192 + $0x1f8] sm:$0xff] %v2504
      %5492 = vst [vmem:[%s192 + $0x200] sm:$0xff] %v2506
      %5493 = vst [vmem:[%s192 + $0x208] sm:$0xff] %v3455
      %5494 = vst [vmem:[%s192 + $0x210] sm:$0xff] %v3457
      %5495 = vst [vmem:[%s192 + $0x218] sm:$0xff] %v4406
      %5496 = vst [vmem:[%s192 + $0x220] sm:$0xff] %v4408
      %5497 = vst.msk [vmem:[%s192 + $0x228] sm:$0xff] %vm5433, %v5264
      %5498 = vst [vmem:[%s192 + $0x230] sm:$0xff] %v2510
      %5499 = vst [vmem:[%s192 + $0x238] sm:$0xff] %v2512
      %5500 = vst [vmem:[%s192 + $0x240] sm:$0xff] %v3461
      %5501 = vst [vmem:[%s192 + $0x248] sm:$0xff] %v3463
      %5502 = vst [vmem:[%s192 + $0x250] sm:$0xff] %v4412
      %5503 = vst [vmem:[%s192 + $0x258] sm:$0xff] %v4414
      %5504 = vst.msk [vmem:[%s192 + $0x260] sm:$0xff] %vm5433, %v5269
      %5505 = vst [vmem:[%s192 + $0x268] sm:$0xff] %v2516
      %5506 = vst [vmem:[%s192 + $0x270] sm:$0xff] %v2518
      %5507 = vst [vmem:[%s192 + $0x278] sm:$0xff] %v3467
      %5508 = vst [vmem:[%s192 + $0x280] sm:$0xff] %v3469
      %5509 = vst [vmem:[%s192 + $0x288] sm:$0xff] %v4418
      %5510 = vst [vmem:[%s192 + $0x290] sm:$0xff] %v4420
      %5511 = vst.msk [vmem:[%s192 + $0x298] sm:$0xff] %vm5433, %v5274
      %5512 = vst [vmem:[%s192 + $0x2a0] sm:$0xff] %v2522
      %5513 = vst [vmem:[%s192 + $0x2a8] sm:$0xff] %v2524
      %5514 = vst [vmem:[%s192 + $0x2b0] sm:$0xff] %v3473
      %5515 = vst [vmem:[%s192 + $0x2b8] sm:$0xff] %v3475
      %5516 = vst [vmem:[%s192 + $0x2c0] sm:$0xff] %v4424
      %5517 = vst [vmem:[%s192 + $0x2c8] sm:$0xff] %v4426
      %5518 = vst.msk [vmem:[%s192 + $0x2d0] sm:$0xff] %vm5433, %v5279
      %5519 = vst [vmem:[%s192 + $0x2d8] sm:$0xff] %v2528
      %5520 = vst [vmem:[%s192 + $0x2e0] sm:$0xff] %v2530
      %5521 = vst [vmem:[%s192 + $0x2e8] sm:$0xff] %v3479
      %5522 = vst [vmem:[%s192 + $0x2f0] sm:$0xff] %v3481
      %5523 = vst [vmem:[%s192 + $0x2f8] sm:$0xff] %v4430
      %5524 = vst [vmem:[%s192 + $0x300] sm:$0xff] %v4432
      %5525 = vst.msk [vmem:[%s192 + $0x308] sm:$0xff] %vm5433, %v5284
      %5526 = vst [vmem:[%s192 + $0x310] sm:$0xff] %v2534
      %5527 = vst [vmem:[%s192 + $0x318] sm:$0xff] %v2536
      %5528 = vst [vmem:[%s192 + $0x320] sm:$0xff] %v3485
      %5529 = vst [vmem:[%s192 + $0x328] sm:$0xff] %v3487
      %5530 = vst [vmem:[%s192 + $0x330] sm:$0xff] %v4436
      %5531 = vst [vmem:[%s192 + $0x338] sm:$0xff] %v4438
      %5532 = vst.msk [vmem:[%s192 + $0x340] sm:$0xff] %vm5433, %v5289
      %5533 = vst [vmem:[%s192 + $0x348] sm:$0xff] %v2540
      %5534 = vst [vmem:[%s192 + $0x350] sm:$0xff] %v2542
      %5535 = vst [vmem:[%s192 + $0x358] sm:$0xff] %v3491
      %5536 = vst [vmem:[%s192 + $0x360] sm:$0xff] %v3493
      %5537 = vst [vmem:[%s192 + $0x368] sm:$0xff] %v4442
      %5538 = vst [vmem:[%s192 + $0x370] sm:$0xff] %v4444
      %5539 = vst.msk [vmem:[%s192 + $0x378] sm:$0xff] %vm5433, %v5294
      %5540 = vst [vmem:[%s192 + $0x380] sm:$0xff] %v2546
      %5541 = vst [vmem:[%s192 + $0x388] sm:$0xff] %v2548
      %5542 = vst [vmem:[%s192 + $0x390] sm:$0xff] %v3497
      %5543 = vst [vmem:[%s192 + $0x398] sm:$0xff] %v3499
      %5544 = vst [vmem:[%s192 + $0x3a0] sm:$0xff] %v4448
      %5545 = vst [vmem:[%s192 + $0x3a8] sm:$0xff] %v4450
      %5546 = vst.msk [vmem:[%s192 + $0x3b0] sm:$0xff] %vm5433, %v5299
      %5547 = vst [vmem:[%s192 + $0x3b8] sm:$0xff] %v2552
      %5548 = vst [vmem:[%s192 + $0x3c0] sm:$0xff] %v2554
      %5549 = vst [vmem:[%s192 + $0x3c8] sm:$0xff] %v3503
      %5550 = vst [vmem:[%s192 + $0x3d0] sm:$0xff] %v3505
      %5551 = vst [vmem:[%s192 + $0x3d8] sm:$0xff] %v4454
      %5552 = vst [vmem:[%s192 + $0x3e0] sm:$0xff] %v4456
      %5553 = vst.msk [vmem:[%s192 + $0x3e8] sm:$0xff] %vm5433, %v5304
      %5554 = vst [vmem:[%s192 + $0x3f0] sm:$0xff] %v2558
      %5555 = vst [vmem:[%s192 + $0x3f8] sm:$0xff] %v2560
      %5556 = vst [vmem:[%s192 + $0x400] sm:$0xff] %v3509
      %5557 = vst [vmem:[%s192 + $0x408] sm:$0xff] %v3511
      %5558 = vst [vmem:[%s192 + $0x410] sm:$0xff] %v4460
      %5559 = vst [vmem:[%s192 + $0x418] sm:$0xff] %v4462
      %5560 = vst.msk [vmem:[%s192 + $0x420] sm:$0xff] %vm5433, %v5309
      %5561 = vst [vmem:[%s192 + $0x428] sm:$0xff] %v2564
      %5562 = vst [vmem:[%s192 + $0x430] sm:$0xff] %v2566
      %5563 = vst [vmem:[%s192 + $0x438] sm:$0xff] %v3515
      %5564 = vst [vmem:[%s192 + $0x440] sm:$0xff] %v3517
      %5565 = vst [vmem:[%s192 + $0x448] sm:$0xff] %v4466
      %5566 = vst [vmem:[%s192 + $0x450] sm:$0xff] %v4468
      %5567 = vst.msk [vmem:[%s192 + $0x458] sm:$0xff] %vm5433, %v5314
      %5568 = vst [vmem:[%s192 + $0x460] sm:$0xff] %v2570
      %5569 = vst [vmem:[%s192 + $0x468] sm:$0xff] %v2572
      %5570 = vst [vmem:[%s192 + $0x470] sm:$0xff] %v3521
      %5571 = vst [vmem:[%s192 + $0x478] sm:$0xff] %v3523
      %5572 = vst [vmem:[%s192 + $0x480] sm:$0xff] %v4472
      %5573 = vst [vmem:[%s192 + $0x488] sm:$0xff] %v4474
      %5574 = vst.msk [vmem:[%s192 + $0x490] sm:$0xff] %vm5433, %v5319
      %5575 = vst [vmem:[%s192 + $0x498] sm:$0xff] %v2576
      %5576 = vst [vmem:[%s192 + $0x4a0] sm:$0xff] %v2578
      %5577 = vst [vmem:[%s192 + $0x4a8] sm:$0xff] %v3527
      %5578 = vst [vmem:[%s192 + $0x4b0] sm:$0xff] %v3529
      %5579 = vst [vmem:[%s192 + $0x4b8] sm:$0xff] %v4478
      %5580 = vst [vmem:[%s192 + $0x4c0] sm:$0xff] %v4480
      %5581 = vst.msk [vmem:[%s192 + $0x4c8] sm:$0xff] %vm5433, %v5324
      %5582 = vst [vmem:[%s192 + $0x4d0] sm:$0xff] %v2582
      %5583 = vst [vmem:[%s192 + $0x4d8] sm:$0xff] %v2584
      %5584 = vst [vmem:[%s192 + $0x4e0] sm:$0xff] %v3533
      %5585 = vst [vmem:[%s192 + $0x4e8] sm:$0xff] %v3535
      %5586 = vst [vmem:[%s192 + $0x4f0] sm:$0xff] %v4484
      %5587 = vst [vmem:[%s192 + $0x4f8] sm:$0xff] %v4486
      %5588 = vst.msk [vmem:[%s192 + $0x500] sm:$0xff] %vm5433, %v5329
      %5589 = vst [vmem:[%s192 + $0x508] sm:$0xff] %v2588
      %5590 = vst [vmem:[%s192 + $0x510] sm:$0xff] %v2590
      %5591 = vst [vmem:[%s192 + $0x518] sm:$0xff] %v3539
      %5592 = vst [vmem:[%s192 + $0x520] sm:$0xff] %v3541
      %5593 = vst [vmem:[%s192 + $0x528] sm:$0xff] %v4490
      %5594 = vst [vmem:[%s192 + $0x530] sm:$0xff] %v4492
      %5595 = vst.msk [vmem:[%s192 + $0x538] sm:$0xff] %vm5433, %v5334
      %5596 = vst [vmem:[%s192 + $0x540] sm:$0xff] %v2594
      %5597 = vst [vmem:[%s192 + $0x548] sm:$0xff] %v2596
      %5598 = vst [vmem:[%s192 + $0x550] sm:$0xff] %v3545
      %5599 = vst [vmem:[%s192 + $0x558] sm:$0xff] %v3547
      %5600 = vst [vmem:[%s192 + $0x560] sm:$0xff] %v4496
      %5601 = vst [vmem:[%s192 + $0x568] sm:$0xff] %v4498
      %5602 = vst.msk [vmem:[%s192 + $0x570] sm:$0xff] %vm5433, %v5339
      %5603 = vst [vmem:[%s192 + $0x578] sm:$0xff] %v2600
      %5604 = vst [vmem:[%s192 + $0x580] sm:$0xff] %v2602
      %5605 = vst [vmem:[%s192 + $0x588] sm:$0xff] %v3551
      %5606 = vst [vmem:[%s192 + $0x590] sm:$0xff] %v3553
      %5607 = vst [vmem:[%s192 + $0x598] sm:$0xff] %v4502
      %5608 = vst [vmem:[%s192 + $0x5a0] sm:$0xff] %v4504
      %5609 = vst.msk [vmem:[%s192 + $0x5a8] sm:$0xff] %vm5433, %v5344
      %5610 = vst [vmem:[%s192 + $0x5b0] sm:$0xff] %v2606
      %5611 = vst [vmem:[%s192 + $0x5b8] sm:$0xff] %v2608
      %5612 = vst [vmem:[%s192 + $0x5c0] sm:$0xff] %v3557
      %5613 = vst [vmem:[%s192 + $0x5c8] sm:$0xff] %v3559
      %5614 = vst [vmem:[%s192 + $0x5d0] sm:$0xff] %v4508
      %5615 = vst [vmem:[%s192 + $0x5d8] sm:$0xff] %v4510
      %5616 = vst.msk [vmem:[%s192 + $0x5e0] sm:$0xff] %vm5433, %v5349
      %5617 = vst [vmem:[%s192 + $0x5e8] sm:$0xff] %v2612
      %5618 = vst [vmem:[%s192 + $0x5f0] sm:$0xff] %v2614
      %5619 = vst [vmem:[%s192 + $0x5f8] sm:$0xff] %v3563
      %5620 = vst [vmem:[%s192 + $0x600] sm:$0xff] %v3565
      %5621 = vst [vmem:[%s192 + $0x608] sm:$0xff] %v4514
      %5622 = vst [vmem:[%s192 + $0x610] sm:$0xff] %v4516
      %5623 = vst.msk [vmem:[%s192 + $0x618] sm:$0xff] %vm5433, %v5354
      %5624 = vst [vmem:[%s192 + $0x620] sm:$0xff] %v2618
      %5625 = vst [vmem:[%s192 + $0x628] sm:$0xff] %v2620
      %5626 = vst [vmem:[%s192 + $0x630] sm:$0xff] %v3569
      %5627 = vst [vmem:[%s192 + $0x638] sm:$0xff] %v3571
      %5628 = vst [vmem:[%s192 + $0x640] sm:$0xff] %v4520
      %5629 = vst [vmem:[%s192 + $0x648] sm:$0xff] %v4522
      %5630 = vst.msk [vmem:[%s192 + $0x650] sm:$0xff] %vm5433, %v5359
      %5631 = vst [vmem:[%s192 + $0x658] sm:$0xff] %v2624
      %5632 = vst [vmem:[%s192 + $0x660] sm:$0xff] %v2626
      %5633 = vst [vmem:[%s192 + $0x668] sm:$0xff] %v3575
      %5634 = vst [vmem:[%s192 + $0x670] sm:$0xff] %v3577
      %5635 = vst [vmem:[%s192 + $0x678] sm:$0xff] %v4526
      %5636 = vst [vmem:[%s192 + $0x680] sm:$0xff] %v4528
      %5637 = vst.msk [vmem:[%s192 + $0x688] sm:$0xff] %vm5433, %v5364
      %5638 = vst [vmem:[%s192 + $0x690] sm:$0xff] %v2630
      %5639 = vst [vmem:[%s192 + $0x698] sm:$0xff] %v2632
      %5640 = vst [vmem:[%s192 + $0x6a0] sm:$0xff] %v3581
      %5641 = vst [vmem:[%s192 + $0x6a8] sm:$0xff] %v3583
      %5642 = vst [vmem:[%s192 + $0x6b0] sm:$0xff] %v4532
      %5643 = vst [vmem:[%s192 + $0x6b8] sm:$0xff] %v4534
      %5644 = vst.msk [vmem:[%s192 + $0x6c0] sm:$0xff] %vm5433, %v5369
      %5645 = vst [vmem:[%s192 + $0x6c8] sm:$0xff] %v2636
      %5646 = vst [vmem:[%s192 + $0x6d0] sm:$0xff] %v2638
      %5647 = vst [vmem:[%s192 + $0x6d8] sm:$0xff] %v3587
      %5648 = vst [vmem:[%s192 + $0x6e0] sm:$0xff] %v3589
      %5649 = vst [vmem:[%s192 + $0x6e8] sm:$0xff] %v4538
      %5650 = vst [vmem:[%s192 + $0x6f0] sm:$0xff] %v4540
      %5651 = vst.msk [vmem:[%s192 + $0x6f8] sm:$0xff] %vm5433, %v5374
      %5652 = vst [vmem:[%s192 + $0x700] sm:$0xff] %v2642
      %5653 = vst [vmem:[%s192 + $0x708] sm:$0xff] %v2644
      %5654 = vst [vmem:[%s192 + $0x710] sm:$0xff] %v3593
      %5655 = vst [vmem:[%s192 + $0x718] sm:$0xff] %v3595
      %5656 = vst [vmem:[%s192 + $0x720] sm:$0xff] %v4544
      %5657 = vst [vmem:[%s192 + $0x728] sm:$0xff] %v4546
      %5658 = vst.msk [vmem:[%s192 + $0x730] sm:$0xff] %vm5433, %v5379
      %5659 = vst [vmem:[%s192 + $0x738] sm:$0xff] %v2648
      %5660 = vst [vmem:[%s192 + $0x740] sm:$0xff] %v2650
      %5661 = vst [vmem:[%s192 + $0x748] sm:$0xff] %v3599
      %5662 = vst [vmem:[%s192 + $0x750] sm:$0xff] %v3601
      %5663 = vst [vmem:[%s192 + $0x758] sm:$0xff] %v4550
      %5664 = vst [vmem:[%s192 + $0x760] sm:$0xff] %v4552
      %5665 = vst.msk [vmem:[%s192 + $0x768] sm:$0xff] %vm5433, %v5384
      %5666 = vst [vmem:[%s192 + $0x770] sm:$0xff] %v2654
      %5667 = vst [vmem:[%s192 + $0x778] sm:$0xff] %v2656
      %5668 = vst [vmem:[%s192 + $0x780] sm:$0xff] %v3605
      %5669 = vst [vmem:[%s192 + $0x788] sm:$0xff] %v3607
      %5670 = vst [vmem:[%s192 + $0x790] sm:$0xff] %v4556
      %5671 = vst [vmem:[%s192 + $0x798] sm:$0xff] %v4558
      %5672 = vst.msk [vmem:[%s192 + $0x7a0] sm:$0xff] %vm5433, %v5389
      %5673 = vst [vmem:[%s192 + $0x7a8] sm:$0xff] %v2660
      %5674 = vst [vmem:[%s192 + $0x7b0] sm:$0xff] %v2662
      %5675 = vst [vmem:[%s192 + $0x7b8] sm:$0xff] %v3611
      %5676 = vst [vmem:[%s192 + $0x7c0] sm:$0xff] %v3613
      %5677 = vst [vmem:[%s192 + $0x7c8] sm:$0xff] %v4562
      %5678 = vst [vmem:[%s192 + $0x7d0] sm:$0xff] %v4564
      %5679 = vst.msk [vmem:[%s192 + $0x7d8] sm:$0xff] %vm5433, %v5394
      %5680 = vst [vmem:[%s192 + $0x7e0] sm:$0xff] %v2666
      %5681 = vst [vmem:[%s192 + $0x7e8] sm:$0xff] %v2668
      %5682 = vst [vmem:[%s192 + $0x7f0] sm:$0xff] %v3617
      %5683 = vst [vmem:[%s192 + $0x7f8] sm:$0xff] %v3619
      %5684 = vst [vmem:[%s192 + $0x800] sm:$0xff] %v4568
      %5685 = vst [vmem:[%s192 + $0x808] sm:$0xff] %v4570
      %5686 = vst.msk [vmem:[%s192 + $0x810] sm:$0xff] %vm5433, %v5399
      %5687 = vst [vmem:[%s192 + $0x818] sm:$0xff] %v2672
      %5688 = vst [vmem:[%s192 + $0x820] sm:$0xff] %v2674
      %5689 = vst [vmem:[%s192 + $0x828] sm:$0xff] %v3623
      %5690 = vst [vmem:[%s192 + $0x830] sm:$0xff] %v3625
      %5691 = vst [vmem:[%s192 + $0x838] sm:$0xff] %v4574
      %5692 = vst [vmem:[%s192 + $0x840] sm:$0xff] %v4576
      %5693 = vst.msk [vmem:[%s192 + $0x848] sm:$0xff] %vm5433, %v5404
      %5694 = vst [vmem:[%s192 + $0x850] sm:$0xff] %v2678
      %5695 = vst [vmem:[%s192 + $0x858] sm:$0xff] %v2680
      %5696 = vst [vmem:[%s192 + $0x860] sm:$0xff] %v3629
      %5697 = vst [vmem:[%s192 + $0x868] sm:$0xff] %v3631
      %5698 = vst [vmem:[%s192 + $0x870] sm:$0xff] %v4580
      %5699 = vst [vmem:[%s192 + $0x878] sm:$0xff] %v4582
      %5700 = vst.msk [vmem:[%s192 + $0x880] sm:$0xff] %vm5433, %v5409
      %5701 = vst [vmem:[%s192 + $0x888] sm:$0xff] %v2684
      %5702 = vst [vmem:[%s192 + $0x890] sm:$0xff] %v2686
      %5703 = vst [vmem:[%s192 + $0x898] sm:$0xff] %v3635
      %5704 = vst [vmem:[%s192 + $0x8a0] sm:$0xff] %v3637
      %5705 = vst [vmem:[%s192 + $0x8a8] sm:$0xff] %v4586
      %5706 = vst [vmem:[%s192 + $0x8b0] sm:$0xff] %v4588
      %5707 = vst.msk [vmem:[%s192 + $0x8b8] sm:$0xff] %vm5433, %v5414
      %5708 = vst [vmem:[%s192 + $0x8c0] sm:$0xff] %v2690
      %5709 = vst [vmem:[%s192 + $0x8c8] sm:$0xff] %v2692
      %5710 = vst [vmem:[%s192 + $0x8d0] sm:$0xff] %v3641
      %5711 = vst [vmem:[%s192 + $0x8d8] sm:$0xff] %v3643
      %5712 = vst [vmem:[%s192 + $0x8e0] sm:$0xff] %v4592
      %5713 = vst [vmem:[%s192 + $0x8e8] sm:$0xff] %v4594
      %5714 = vst.msk [vmem:[%s192 + $0x8f0] sm:$0xff] %vm5433, %v5419
      %5715 = vst [vmem:[%s192 + $0x8f8] sm:$0xff] %v2696
      %5716 = vst [vmem:[%s192 + $0x900] sm:$0xff] %v2698
      %5717 = vst [vmem:[%s192 + $0x908] sm:$0xff] %v3647
      %5718 = vst [vmem:[%s192 + $0x910] sm:$0xff] %v3649
      %5719 = vst [vmem:[%s192 + $0x918] sm:$0xff] %v4598
      %5720 = vst [vmem:[%s192 + $0x920] sm:$0xff] %v4600
      %5721 = vst.msk [vmem:[%s192 + $0x928] sm:$0xff] %vm5433, %v5424
      %s5722 = smul.u32 42, %s18
      %p5723 = scmp.lt.s32.totalorder %s17, 0
      %s5724 = scalar_select %p5723, %s17, 0
      %p5725 = scmp.lt.s32.totalorder %s5722, 83
      %s5726 = scalar_select %p5725, %s5722, 83
      %s5727 = smul.addr %s5726, 7
      %s5728 = smul.addr %s5724, 588
      %s5729 = sadd.s32 %s5727, %s5728
      %s5730 = smul.addr %s5729, 8
      %s5731 = scalar_lea.vmem %s2, %s5730
      // Predicated region
      $region29: #{relu_conv1x1.1} parent=27 // pred_check
        %p5732 = pneg %p97
      $region30: #{relu_conv1x1.1} parent=27 // pred_check_branch
        %5734 = sbr.rel (%p5732) target = $region32
      $region31: #{relu_conv1x1.1} parent=27 // pred_region
        %s5735 = smul.u32 42, %s18
      $region32: #{relu_conv1x1.1} parent=27 // pred_fallthru
        _
    $region28: #{relu_conv1x1.1} parent=5 // pred_fallthru
      _
    %p5736 = scmp.le.s32.totalorder 2, %s8
    // Predicated region
    $region33: #{relu_conv1x1.1} parent=5 // pred_check
      %p5737 = pneg %p5736
    $region34: #{relu_conv1x1.1} parent=5 // pred_check_branch
      %5739 = sbr.rel (%p5737) target = $region36
    $region35: #{relu_conv1x1.1} parent=5 // pred_region
      %s5740 = ssub.s32 %s8, 2
      // Predicated region
      $region37: #{relu_conv1x1.1} parent=35 // pred_check
        %p5741 = pneg %p103
      $region38: #{relu_conv1x1.1} parent=35 // pred_check_branch
        %5743 = sbr.rel (%p5741) target = $region40
      $region39: #{relu_conv1x1.1} parent=35 // pred_region
        %s5744 = smul.u32 42, %s20
        %p5745 = scmp.lt.s32.totalorder %s19, 0
        %s5746 = scalar_select %p5745, %s19, 0
        %p5747 = scmp.lt.s32.totalorder %s5744, 83
        %s5748 = scalar_select %p5747, %s5744, 83
        %s5749 = smul.addr %s5748, 7
        %s5750 = smul.addr %s5746, 588
        %s5751 = sadd.s32 %s5749, %s5750
        %s5752 = smul.addr %s5751, 8
        %s5753 = scalar_lea.vmem %s2, %s5752
      $region40: #{relu_conv1x1.1} parent=35 // pred_fallthru
        _
    $region36: #{relu_conv1x1.1} parent=5 // pred_fallthru
      _
  $region6: #{relu_conv1x1.1} parent=0 // loop_footer
    %s12 = sadd.s32 1, %s8
  $region7: #{relu_conv1x1.1} parent=0 // loop_footer_branch
    %7 = sbr.rel target = $region3
  $region8: #{relu_conv1x1.1} parent=0 // loop_exit
    _

</llo_original>
